<compile_context>
chip_gen: v7x
topology: tpu7x:2x2x1
jax: 0.10.0
libtpu: 0.0.40
codegen_flags: <defaults>
</compile_context>

<pallas_src>
import functools
import math

import jax
import jax.numpy as jnp
from jax.experimental import pallas as pl
from jax.experimental.pallas import tpu as pltpu

# ---------------- config (small, shape-consistent with BLIP's ViT) ----------
IMG = 32          # image H = W
PATCH = 16        # ViT-B/16 patch size
EMBED = 128       # embedding dim (768 in blip_base)
HEADS = 4         # attention heads (12 in blip_base)
DEPTH = 2         # transformer blocks (12 in blip_base)
MLP_HIDDEN = 4 * EMBED
EPS = 1e-6        # BLIP ViT uses LayerNorm(eps=1e-6)


def _layernorm(x, g, b):
    mu = jnp.mean(x, axis=-1, keepdims=True)
    var = jnp.mean((x - mu) ** 2, axis=-1, keepdims=True)
    return (x - mu) * jax.lax.rsqrt(var + EPS) * g + b


# ---------------- single fused Pallas kernel --------------------------------
def _blip_vit_kernel(patches_ref, wp_ref, bp_ref, cls_ref, pos_ref,
                     ln1g_ref, ln1b_ref, wqkv_ref, bqkv_ref, wo_ref, bo_ref,
                     ln2g_ref, ln2b_ref, w1_ref, b1_ref, w2_ref, b2_ref,
                     ng_ref, nb_ref, o_ref, x_buf, att_buf,
                     *, depth, num_heads, batch, seq_real, seq_pad):
    d = o_ref.shape[-1]
    hd = d // num_heads
    npatch = seq_real - 1
    scale = 1.0 / math.sqrt(hd)

    # ---- patch embedding (Conv2d(3,D,k=16,s=16) as matmul), bf16 MXU, f32 acc
    pe = (jnp.dot(patches_ref[...].astype(jnp.bfloat16), wp_ref[...],
                  preferred_element_type=jnp.float32) + bp_ref[...])

    # ---- assemble padded token tensor: [CLS | patches] + pos, zeroed pad rows
    x_buf[...] = jnp.zeros_like(x_buf)
    for b in range(batch):
        r0 = b * seq_pad
        x_buf[r0:r0 + 1, :] = cls_ref[...] + pos_ref[0:1, :]
        x_buf[r0 + 1:r0 + 1 + npatch, :] = (
            pe[b * npatch:(b + 1) * npatch, :] + pos_ref[1:seq_real, :])
    x = x_buf[...]                                    # (batch*seq_pad, d) f32

    # additive bias masking padded key columns out of every softmax
    kidx = jax.lax.broadcasted_iota(jnp.int32, (1, seq_pad), 1)
    key_bias = jnp.where(kidx < seq_real, 0.0, -1e30).astype(jnp.float32)

    for layer in range(depth):
        # --- multi-head self-attention (pre-LN) ---
        h = _layernorm(x, ln1g_ref[layer], ln1b_ref[layer])
        qkv = (jnp.dot(h.astype(jnp.bfloat16), wqkv_ref[layer],
                       preferred_element_type=jnp.float32)
               + bqkv_ref[layer])                     # (batch*seq_pad, 3d)
        for b in range(batch):
            r0 = b * seq_pad
            qkv_b = qkv[r0:r0 + seq_pad, :]
            for hh in range(num_heads):
                q = qkv_b[:, hh * hd:(hh + 1) * hd].astype(jnp.bfloat16)
                k = qkv_b[:, d + hh * hd:d + (hh + 1) * hd].astype(jnp.bfloat16)
                v = qkv_b[:, 2 * d + hh * hd:2 * d + (hh + 1) * hd].astype(
                    jnp.bfloat16)
                s = jax.lax.dot_general(
                    q, k, (((1,), (1,)), ((), ())),
                    preferred_element_type=jnp.float32) * scale + key_bias
                s = s - jnp.max(s, axis=-1, keepdims=True)
                p = jnp.exp(s)
                p = p * pl.reciprocal(jnp.sum(p, axis=-1, keepdims=True),
                                      approx=True)
                att_buf[r0:r0 + seq_pad, hh * hd:(hh + 1) * hd] = jnp.dot(
                    p.astype(jnp.bfloat16), v,
                    preferred_element_type=jnp.float32)
        att = att_buf[...]                            # (batch*seq_pad, d)
        # single K=128 output projection for all heads
        x = x + (jnp.dot(att.astype(jnp.bfloat16), wo_ref[layer],
                         preferred_element_type=jnp.float32) + bo_ref[layer])

        # --- MLP (pre-LN, exact GELU) ---
        h2 = _layernorm(x, ln2g_ref[layer], ln2b_ref[layer])
        h2 = (jnp.dot(h2.astype(jnp.bfloat16), w1_ref[layer],
                      preferred_element_type=jnp.float32) + b1_ref[layer])
        h2 = 0.5 * h2 * (1.0 + jax.lax.erf(h2 * (1.0 / math.sqrt(2.0))))
        h2 = (jnp.dot(h2.astype(jnp.bfloat16), w2_ref[layer],
                      preferred_element_type=jnp.float32) + b2_ref[layer])
        x = x + h2

    # --- final LayerNorm (folded into the same kernel) ---
    o_ref[...] = _layernorm(x, ng_ref[...], nb_ref[...]).astype(o_ref.dtype)


# ---------------- wrapper ----------------------------------------------------
def blip_image_model(img, params):
    """BLIP 'image' mode: ViT visual encoder, returns CLS feature of image 0."""
    bsz, c, h, w = img.shape
    ph, pw = h // PATCH, w // PATCH
    num_patches = ph * pw
    seq_real = num_patches + 1
    seq_pad = ((seq_real + 7) // 8) * 8      # pad token axis to a sublane tile

    # im2col: Conv2d(C, D, kernel=stride=PATCH) as a single matmul
    patches = img.reshape(bsz, c, ph, PATCH, pw, PATCH)
    patches = patches.transpose(0, 2, 4, 1, 3, 5).reshape(
        bsz * num_patches, c * PATCH * PATCH)

    kernel = functools.partial(
        _blip_vit_kernel, depth=DEPTH, num_heads=HEADS,
        batch=bsz, seq_real=seq_real, seq_pad=seq_pad)
    vmem = pl.BlockSpec(memory_space=pltpu.MemorySpace.VMEM)

    out = pl.pallas_call(
        kernel,
        out_shape=jax.ShapeDtypeStruct((bsz * seq_pad, EMBED), jnp.float32),
        in_specs=[vmem] * 19,
        out_specs=vmem,
        scratch_shapes=[pltpu.VMEM((bsz * seq_pad, EMBED), jnp.float32),   # x assembly
                        pltpu.VMEM((bsz * seq_pad, EMBED), jnp.float32)],  # head outputs
    )(patches, params['patch_w_mat'], params['patch_b'], params['cls_token'],
      params['pos_embed'],
      params['ln1_g'], params['ln1_b'], params['wqkv'], params['bqkv'],
      params['wo'], params['bo'], params['ln2_g'], params['ln2_b'],
      params['w1'], params['b1'], params['w2'], params['b2'],
      params['norm_g'], params['norm_b'])

    # model(img, '', mode='image')[0, 0] -> CLS token of the first image
    return out[0]


# ---------------- deterministic parameter init -------------------------------
def init_params(key):
    std = 0.02
    keys = iter(jax.random.split(key, 3 + DEPTH * 4))
    num_patches = (IMG // PATCH) ** 2

    w_conv = jax.random.normal(next(keys), (EMBED, 3, PATCH, PATCH),
                               jnp.float32) * std
    p = {
        # conv weight pre-flattened to the matmul layout; bf16 for the MXU
        'patch_w_mat': w_conv.reshape(EMBED, 3 * PATCH * PATCH).T.astype(
            jnp.bfloat16),
        'patch_b': jnp.zeros((1, EMBED), jnp.float32),
        'cls_token': jax.random.normal(next(keys), (1, EMBED),
                                       jnp.float32) * std,
        'pos_embed': jax.random.normal(next(keys), (num_patches + 1, EMBED),
                                       jnp.float32) * std,
        'norm_g': jnp.ones((1, EMBED), jnp.float32),
        'norm_b': jnp.zeros((1, EMBED), jnp.float32),
    }

    wqkv, wo, w1, w2 = [], [], [], []
    for _ in range(DEPTH):
        wqkv.append(jax.random.normal(next(keys), (EMBED, 3 * EMBED),
                                      jnp.float32) * std)
        wo.append(jax.random.normal(next(keys), (EMBED, EMBED),
                                    jnp.float32) * std)
        w1.append(jax.random.normal(next(keys), (EMBED, MLP_HIDDEN),
                                    jnp.float32) * std)
        w2.append(jax.random.normal(next(keys), (MLP_HIDDEN, EMBED),
                                    jnp.float32) * std)

    p.update({
        'ln1_g': jnp.ones((DEPTH, 1, EMBED), jnp.float32),
        'ln1_b': jnp.zeros((DEPTH, 1, EMBED), jnp.float32),
        'wqkv': jnp.stack(wqkv).astype(jnp.bfloat16),
        'bqkv': jnp.zeros((DEPTH, 1, 3 * EMBED), jnp.float32),
        'wo': jnp.stack(wo).astype(jnp.bfloat16),
        'bo': jnp.zeros((DEPTH, 1, EMBED), jnp.float32),
        'ln2_g': jnp.ones((DEPTH, 1, EMBED), jnp.float32),
        'ln2_b': jnp.zeros((DEPTH, 1, EMBED), jnp.float32),
        'w1': jnp.stack(w1).astype(jnp.bfloat16),
        'b1': jnp.zeros((DEPTH, 1, MLP_HIDDEN), jnp.float32),
        'w2': jnp.stack(w2).astype(jnp.bfloat16),
        'b2': jnp.zeros((DEPTH, 1, EMBED), jnp.float32),
    })
    return p


# TODO(synk): pretrained BLIP-base checkpoint weights and the text/caption
# branch are not reproducible in-script; weights are synthetic and the text
# path is dead code in mode='image'.

if __name__ == "__main__":
    root = jax.random.PRNGKey(0)
    pkey, ikey = jax.random.split(root)
    params = init_params(pkey)
    img = jax.random.normal(ikey, (2, 3, IMG, IMG), jnp.float32)  # NCHW

    feat = jax.jit(blip_image_model)(img, params)
    feat = jax.block_until_ready(feat)
    assert feat.shape == (EMBED,) and feat.dtype == jnp.float32
    print("KERNEL_OK")
</pallas_src>

<mosaic_0001>
module attributes {stable_mosaic.version = 11 : i64} {
  func.func @_blip_vit_kernel(%arg0: memref<8x768xf32, #tpu.memory_space<vmem>>, %arg1: memref<768x128xbf16, #tpu.memory_space<vmem>>, %arg2: memref<1x128xf32, #tpu.memory_space<vmem>>, %arg3: memref<1x128xf32, #tpu.memory_space<vmem>>, %arg4: memref<5x128xf32, #tpu.memory_space<vmem>>, %arg5: memref<2x1x128xf32, #tpu.memory_space<vmem>>, %arg6: memref<2x1x128xf32, #tpu.memory_space<vmem>>, %arg7: memref<2x128x384xbf16, #tpu.memory_space<vmem>>, %arg8: memref<2x1x384xf32, #tpu.memory_space<vmem>>, %arg9: memref<2x128x128xbf16, #tpu.memory_space<vmem>>, %arg10: memref<2x1x128xf32, #tpu.memory_space<vmem>>, %arg11: memref<2x1x128xf32, #tpu.memory_space<vmem>>, %arg12: memref<2x1x128xf32, #tpu.memory_space<vmem>>, %arg13: memref<2x128x512xbf16, #tpu.memory_space<vmem>>, %arg14: memref<2x1x512xf32, #tpu.memory_space<vmem>>, %arg15: memref<2x512x128xbf16, #tpu.memory_space<vmem>>, %arg16: memref<2x1x128xf32, #tpu.memory_space<vmem>>, %arg17: memref<1x128xf32, #tpu.memory_space<vmem>>, %arg18: memref<1x128xf32, #tpu.memory_space<vmem>>, %arg19: memref<16x128xf32, #tpu.memory_space<vmem>>, %arg20: memref<16x128xf32, #tpu.memory_space<vmem>>, %arg21: memref<16x128xf32, #tpu.memory_space<vmem>>) attributes {dimension_semantics = [], scalar_prefetch = 0 : i64, scratch_operands = 2 : i64, tpu.core_type = #tpu.core_type<tc>} {
    %c0 = arith.constant 0 : index
    %c0_0 = arith.constant 0 : index
    %0 = vector.load %arg0[%c0, %c0_0] : memref<8x768xf32, #tpu.memory_space<vmem>>, vector<8x768xf32>
    %1 = arith.truncf %0 : vector<8x768xf32> to vector<8x768xbf16>
    %c0_1 = arith.constant 0 : index
    %c0_2 = arith.constant 0 : index
    %2 = vector.load %arg1[%c0_1, %c0_2] : memref<768x128xbf16, #tpu.memory_space<vmem>>, vector<768x128xbf16>
    %cst = arith.constant dense<0.000000e+00> : vector<8x128xf32>
    %3 = tpu.matmul %1, %2, %cst {dimension_numbers = #tpu.dot_dimension_numbers<[1], [0], [0], [1], [0, 0, 1, 1], [], []>} : vector<8x768xbf16>, vector<768x128xbf16>, vector<8x128xf32> -> vector<8x128xf32>
    %c0_3 = arith.constant 0 : index
    %c0_4 = arith.constant 0 : index
    %4 = vector.load %arg2[%c0_3, %c0_4] : memref<1x128xf32, #tpu.memory_space<vmem>>, vector<1x128xf32>
    %5 = vector.broadcast %4 : vector<1x128xf32> to vector<8x128xf32>
    %6 = arith.addf %3, %5 : vector<8x128xf32>
    %cst_5 = arith.constant 0.000000e+00 : f32
    %7 = vector.broadcast %cst_5 : f32 to vector<16x128xf32>
    %c0_6 = arith.constant 0 : index
    %c0_7 = arith.constant 0 : index
    %8 = vector.load %arg20[%c0_6, %c0_7] : memref<16x128xf32, #tpu.memory_space<vmem>>, vector<16x128xf32>
    tpu.vector_store %arg20[%c0_6, %c0_7], %7 {strides = array<i32>} : memref<16x128xf32, #tpu.memory_space<vmem>>, vector<16x128xf32>,
    %c0_8 = arith.constant 0 : index
    %c0_9 = arith.constant 0 : index
    %9 = vector.load %arg3[%c0_8, %c0_9] : memref<1x128xf32, #tpu.memory_space<vmem>>, vector<1x128xf32>
    %c0_10 = arith.constant 0 : index
    %c0_11 = arith.constant 0 : index
    %10 = vector.load %arg4[%c0_10, %c0_11] : memref<5x128xf32, #tpu.memory_space<vmem>>, vector<1x128xf32>
    %11 = arith.addf %9, %10 : vector<1x128xf32>
    %c0_12 = arith.constant 0 : index
    %c0_13 = arith.constant 0 : index
    %12 = vector.load %arg20[%c0_12, %c0_13] : memref<16x128xf32, #tpu.memory_space<vmem>>, vector<1x128xf32>
    tpu.vector_store %arg20[%c0_12, %c0_13], %11 {strides = array<i32>} : memref<16x128xf32, #tpu.memory_space<vmem>>, vector<1x128xf32>,
    %13 = vector.extract_strided_slice %6 {offsets = [0, 0], sizes = [4, 128], strides = [1, 1]} : vector<8x128xf32> to vector<4x128xf32>
    %c1 = arith.constant 1 : index
    %c0_14 = arith.constant 0 : index
    %14 = vector.load %arg4[%c1, %c0_14] : memref<5x128xf32, #tpu.memory_space<vmem>>, vector<4x128xf32>
    %15 = arith.addf %13, %14 : vector<4x128xf32>
    %c1_15 = arith.constant 1 : index
    %c0_16 = arith.constant 0 : index
    %16 = vector.load %arg20[%c1_15, %c0_16] : memref<16x128xf32, #tpu.memory_space<vmem>>, vector<4x128xf32>
    tpu.vector_store %arg20[%c1_15, %c0_16], %15 {strides = array<i32>} : memref<16x128xf32, #tpu.memory_space<vmem>>, vector<4x128xf32>,
    %c0_17 = arith.constant 0 : index
    %c0_18 = arith.constant 0 : index
    %17 = vector.load %arg3[%c0_17, %c0_18] : memref<1x128xf32, #tpu.memory_space<vmem>>, vector<1x128xf32>
    %c0_19 = arith.constant 0 : index
    %c0_20 = arith.constant 0 : index
    %18 = vector.load %arg4[%c0_19, %c0_20] : memref<5x128xf32, #tpu.memory_space<vmem>>, vector<1x128xf32>
    %19 = arith.addf %17, %18 : vector<1x128xf32>
    %c8 = arith.constant 8 : index
    %c0_21 = arith.constant 0 : index
    %20 = vector.load %arg20[%c8, %c0_21] : memref<16x128xf32, #tpu.memory_space<vmem>>, vector<1x128xf32>
    tpu.vector_store %arg20[%c8, %c0_21], %19 {strides = array<i32>} : memref<16x128xf32, #tpu.memory_space<vmem>>, vector<1x128xf32>,
    %21 = vector.extract_strided_slice %6 {offsets = [4, 0], sizes = [4, 128], strides = [1, 1]} : vector<8x128xf32> to vector<4x128xf32>
    %c1_22 = arith.constant 1 : index
    %c0_23 = arith.constant 0 : index
    %22 = vector.load %arg4[%c1_22, %c0_23] : memref<5x128xf32, #tpu.memory_space<vmem>>, vector<4x128xf32>
    %23 = arith.addf %21, %22 : vector<4x128xf32>
    %c9 = arith.constant 9 : index
    %c0_24 = arith.constant 0 : index
    %24 = vector.load %arg20[%c9, %c0_24] : memref<16x128xf32, #tpu.memory_space<vmem>>, vector<4x128xf32>
    tpu.vector_store %arg20[%c9, %c0_24], %23 {strides = array<i32>} : memref<16x128xf32, #tpu.memory_space<vmem>>, vector<4x128xf32>,
    %c0_25 = arith.constant 0 : index
    %c0_26 = arith.constant 0 : index
    %25 = vector.load %arg20[%c0_25, %c0_26] : memref<16x128xf32, #tpu.memory_space<vmem>>, vector<16x128xf32>
    %26 = tpu.iota {dimensions = array<i32: 1>} : vector<1x8xi32>
    %c5_i32 = arith.constant 5 : i32
    %27 = vector.broadcast %c5_i32 : i32 to vector<1x8xi32>
    %28 = arith.cmpi slt, %26, %27 : vector<1x8xi32>
    %cst_27 = arith.constant 0.000000e+00 : f32
    %cst_28 = arith.constant -1.000000e+30 : f32
    %29 = vector.broadcast %cst_27 : f32 to vector<1x8xf32>
    %30 = vector.broadcast %cst_28 : f32 to vector<1x8xf32>
    %31 = arith.select %28, %29, %30 : vector<1x8xi1>, vector<1x8xf32>
    %c0_29 = arith.constant 0 : index
    %c0_30 = arith.constant 0 : index
    %c0_31 = arith.constant 0 : index
    %32 = vector.load %arg5[%c0_29, %c0_30, %c0_31] : memref<2x1x128xf32, #tpu.memory_space<vmem>>, vector<1x1x128xf32>
    %33 = vector.shape_cast %32 : vector<1x1x128xf32> to vector<1x128xf32>
    %c0_32 = arith.constant 0 : index
    %c0_33 = arith.constant 0 : index
    %c0_34 = arith.constant 0 : index
    %34 = vector.load %arg6[%c0_32, %c0_33, %c0_34] : memref<2x1x128xf32, #tpu.memory_space<vmem>>, vector<1x1x128xf32>
    %35 = vector.shape_cast %34 : vector<1x1x128xf32> to vector<1x128xf32>
    %cst_35 = arith.constant dense<0.000000e+00> : vector<16xf32>
    %36 = vector.multi_reduction <add>, %25, %cst_35 [1] : vector<16x128xf32> to vector<16xf32>
    %37 = vector.shape_cast %36 : vector<16xf32> to vector<16x1xf32>
    %cst_36 = arith.constant 1.280000e+02 : f32
    %38 = vector.broadcast %cst_36 : f32 to vector<16x1xf32>
    %39 = arith.divf %37, %38 : vector<16x1xf32>
    %40 = vector.broadcast %39 : vector<16x1xf32> to vector<16x128xf32>
    %41 = arith.subf %25, %40 : vector<16x128xf32>
    %42 = arith.mulf %41, %41 : vector<16x128xf32>
    %cst_37 = arith.constant dense<0.000000e+00> : vector<16xf32>
    %43 = vector.multi_reduction <add>, %42, %cst_37 [1] : vector<16x128xf32> to vector<16xf32>
    %44 = vector.shape_cast %43 : vector<16xf32> to vector<16x1xf32>
    %cst_38 = arith.constant 1.280000e+02 : f32
    %45 = vector.broadcast %cst_38 : f32 to vector<16x1xf32>
    %46 = arith.divf %44, %45 : vector<16x1xf32>
    %47 = vector.broadcast %39 : vector<16x1xf32> to vector<16x128xf32>
    %48 = arith.subf %25, %47 : vector<16x128xf32>
    %cst_39 = arith.constant 9.99999997E-7 : f32
    %49 = vector.broadcast %cst_39 : f32 to vector<16x1xf32>
    %50 = arith.addf %46, %49 : vector<16x1xf32>
    %51 = math.rsqrt %50 : vector<16x1xf32>
    %52 = vector.broadcast %51 : vector<16x1xf32> to vector<16x128xf32>
    %53 = arith.mulf %48, %52 : vector<16x128xf32>
    %54 = vector.broadcast %33 : vector<1x128xf32> to vector<16x128xf32>
    %55 = arith.mulf %53, %54 : vector<16x128xf32>
    %56 = vector.broadcast %35 : vector<1x128xf32> to vector<16x128xf32>
    %57 = arith.addf %55, %56 : vector<16x128xf32>
    %58 = arith.truncf %57 : vector<16x128xf32> to vector<16x128xbf16>
    %c0_40 = arith.constant 0 : index
    %c0_41 = arith.constant 0 : index
    %c0_42 = arith.constant 0 : index
    %59 = vector.load %arg7[%c0_40, %c0_41, %c0_42] : memref<2x128x384xbf16, #tpu.memory_space<vmem>>, vector<1x128x384xbf16>
    %60 = vector.shape_cast %59 : vector<1x128x384xbf16> to vector<128x384xbf16>
    %cst_43 = arith.constant dense<0.000000e+00> : vector<16x384xf32>
    %61 = tpu.matmul %58, %60, %cst_43 {dimension_numbers = #tpu.dot_dimension_numbers<[1], [0], [0], [1], [0, 0, 1, 1], [], []>} : vector<16x128xbf16>, vector<128x384xbf16>, vector<16x384xf32> -> vector<16x384xf32>
    %c0_44 = arith.constant 0 : index
    %c0_45 = arith.constant 0 : index
    %c0_46 = arith.constant 0 : index
    %62 = vector.load %arg8[%c0_44, %c0_45, %c0_46] : memref<2x1x384xf32, #tpu.memory_space<vmem>>, vector<1x1x384xf32>
    %63 = vector.shape_cast %62 : vector<1x1x384xf32> to vector<1x384xf32>
    %64 = vector.broadcast %63 : vector<1x384xf32> to vector<16x384xf32>
    %65 = arith.addf %61, %64 : vector<16x384xf32>
    %66 = vector.extract_strided_slice %65 {offsets = [0, 0], sizes = [8, 384], strides = [1, 1]} : vector<16x384xf32> to vector<8x384xf32>
    %67 = vector.extract_strided_slice %66 {offsets = [0, 0], sizes = [8, 32], strides = [1, 1]} : vector<8x384xf32> to vector<8x32xf32>
    %68 = arith.truncf %67 : vector<8x32xf32> to vector<8x32xbf16>
    %69 = vector.extract_strided_slice %66 {offsets = [0, 128], sizes = [8, 32], strides = [1, 1]} : vector<8x384xf32> to vector<8x32xf32>
    %70 = arith.truncf %69 : vector<8x32xf32> to vector<8x32xbf16>
    %71 = vector.extract_strided_slice %66 {offsets = [0, 256], sizes = [8, 32], strides = [1, 1]} : vector<8x384xf32> to vector<8x32xf32>
    %72 = arith.truncf %71 : vector<8x32xf32> to vector<8x32xbf16>
    %cst_47 = arith.constant dense<0.000000e+00> : vector<8x8xf32>
    %73 = tpu.matmul %68, %70, %cst_47 {dimension_numbers = #tpu.dot_dimension_numbers<[1], [1], [0], [0], [0, 0, 1, 0], [], []>} : vector<8x32xbf16>, vector<8x32xbf16>, vector<8x8xf32> -> vector<8x8xf32>
    %cst_48 = arith.constant 0.176776692 : f32
    %74 = vector.broadcast %cst_48 : f32 to vector<8x8xf32>
    %75 = arith.mulf %73, %74 : vector<8x8xf32>
    %76 = vector.broadcast %31 : vector<1x8xf32> to vector<8x8xf32>
    %77 = arith.addf %75, %76 : vector<8x8xf32>
    %cst_49 = arith.constant dense<0xFF800000> : vector<8xf32>
    %78 = vector.multi_reduction <maximumf>, %77, %cst_49 [1] : vector<8x8xf32> to vector<8xf32>
    %79 = vector.shape_cast %78 : vector<8xf32> to vector<8x1xf32>
    %80 = vector.broadcast %79 : vector<8x1xf32> to vector<8x8xf32>
    %81 = arith.subf %77, %80 : vector<8x8xf32>
    %82 = math.exp %81 : vector<8x8xf32>
    %cst_50 = arith.constant dense<0.000000e+00> : vector<8xf32>
    %83 = vector.multi_reduction <add>, %82, %cst_50 [1] : vector<8x8xf32> to vector<8xf32>
    %84 = vector.shape_cast %83 : vector<8xf32> to vector<8x1xf32>
    %85 = tpu.reciprocal %84 {approx = true} : vector<8x1xf32> -> vector<8x1xf32>
    %86 = vector.broadcast %85 : vector<8x1xf32> to vector<8x8xf32>
    %87 = arith.mulf %82, %86 : vector<8x8xf32>
    %88 = arith.truncf %87 : vector<8x8xf32> to vector<8x8xbf16>
    %cst_51 = arith.constant dense<0.000000e+00> : vector<8x32xf32>
    %89 = tpu.matmul %88, %72, %cst_51 {dimension_numbers = #tpu.dot_dimension_numbers<[1], [0], [0], [1], [0, 0, 1, 1], [], []>} : vector<8x8xbf16>, vector<8x32xbf16>, vector<8x32xf32> -> vector<8x32xf32>
    %c0_52 = arith.constant 0 : index
    %c0_53 = arith.constant 0 : index
    %90 = vector.load %arg21[%c0_52, %c0_53] : memref<16x128xf32, #tpu.memory_space<vmem>>, vector<8x32xf32>
    tpu.vector_store %arg21[%c0_52, %c0_53], %89 {strides = array<i32>} : memref<16x128xf32, #tpu.memory_space<vmem>>, vector<8x32xf32>,
    %91 = vector.extract_strided_slice %66 {offsets = [0, 32], sizes = [8, 32], strides = [1, 1]} : vector<8x384xf32> to vector<8x32xf32>
    %92 = arith.truncf %91 : vector<8x32xf32> to vector<8x32xbf16>
    %93 = vector.extract_strided_slice %66 {offsets = [0, 160], sizes = [8, 32], strides = [1, 1]} : vector<8x384xf32> to vector<8x32xf32>
    %94 = arith.truncf %93 : vector<8x32xf32> to vector<8x32xbf16>
    %95 = vector.extract_strided_slice %66 {offsets = [0, 288], sizes = [8, 32], strides = [1, 1]} : vector<8x384xf32> to vector<8x32xf32>
    %96 = arith.truncf %95 : vector<8x32xf32> to vector<8x32xbf16>
    %cst_54 = arith.constant dense<0.000000e+00> : vector<8x8xf32>
    %97 = tpu.matmul %92, %94, %cst_54 {dimension_numbers = #tpu.dot_dimension_numbers<[1], [1], [0], [0], [0, 0, 1, 0], [], []>} : vector<8x32xbf16>, vector<8x32xbf16>, vector<8x8xf32> -> vector<8x8xf32>
    %cst_55 = arith.constant 0.176776692 : f32
    %98 = vector.broadcast %cst_55 : f32 to vector<8x8xf32>
    %99 = arith.mulf %97, %98 : vector<8x8xf32>
    %100 = vector.broadcast %31 : vector<1x8xf32> to vector<8x8xf32>
    %101 = arith.addf %99, %100 : vector<8x8xf32>
    %cst_56 = arith.constant dense<0xFF800000> : vector<8xf32>
    %102 = vector.multi_reduction <maximumf>, %101, %cst_56 [1] : vector<8x8xf32> to vector<8xf32>
    %103 = vector.shape_cast %102 : vector<8xf32> to vector<8x1xf32>
    %104 = vector.broadcast %103 : vector<8x1xf32> to vector<8x8xf32>
    %105 = arith.subf %101, %104 : vector<8x8xf32>
    %106 = math.exp %105 : vector<8x8xf32>
    %cst_57 = arith.constant dense<0.000000e+00> : vector<8xf32>
    %107 = vector.multi_reduction <add>, %106, %cst_57 [1] : vector<8x8xf32> to vector<8xf32>
    %108 = vector.shape_cast %107 : vector<8xf32> to vector<8x1xf32>
    %109 = tpu.reciprocal %108 {approx = true} : vector<8x1xf32> -> vector<8x1xf32>
    %110 = vector.broadcast %109 : vector<8x1xf32> to vector<8x8xf32>
    %111 = arith.mulf %106, %110 : vector<8x8xf32>
    %112 = arith.truncf %111 : vector<8x8xf32> to vector<8x8xbf16>
    %cst_58 = arith.constant dense<0.000000e+00> : vector<8x32xf32>
    %113 = tpu.matmul %112, %96, %cst_58 {dimension_numbers = #tpu.dot_dimension_numbers<[1], [0], [0], [1], [0, 0, 1, 1], [], []>} : vector<8x8xbf16>, vector<8x32xbf16>, vector<8x32xf32> -> vector<8x32xf32>
    %c0_59 = arith.constant 0 : index
    %c32 = arith.constant 32 : index
    %114 = vector.load %arg21[%c0_59, %c32] : memref<16x128xf32, #tpu.memory_space<vmem>>, vector<8x32xf32>
    tpu.vector_store %arg21[%c0_59, %c32], %113 {strides = array<i32>} : memref<16x128xf32, #tpu.memory_space<vmem>>, vector<8x32xf32>,
    %115 = vector.extract_strided_slice %66 {offsets = [0, 64], sizes = [8, 32], strides = [1, 1]} : vector<8x384xf32> to vector<8x32xf32>
    %116 = arith.truncf %115 : vector<8x32xf32> to vector<8x32xbf16>
    %117 = vector.extract_strided_slice %66 {offsets = [0, 192], sizes = [8, 32], strides = [1, 1]} : vector<8x384xf32> to vector<8x32xf32>
    %118 = arith.truncf %117 : vector<8x32xf32> to vector<8x32xbf16>
    %119 = vector.extract_strided_slice %66 {offsets = [0, 320], sizes = [8, 32], strides = [1, 1]} : vector<8x384xf32> to vector<8x32xf32>
    %120 = arith.truncf %119 : vector<8x32xf32> to vector<8x32xbf16>
    %cst_60 = arith.constant dense<0.000000e+00> : vector<8x8xf32>
    %121 = tpu.matmul %116, %118, %cst_60 {dimension_numbers = #tpu.dot_dimension_numbers<[1], [1], [0], [0], [0, 0, 1, 0], [], []>} : vector<8x32xbf16>, vector<8x32xbf16>, vector<8x8xf32> -> vector<8x8xf32>
    %cst_61 = arith.constant 0.176776692 : f32
    %122 = vector.broadcast %cst_61 : f32 to vector<8x8xf32>
    %123 = arith.mulf %121, %122 : vector<8x8xf32>
    %124 = vector.broadcast %31 : vector<1x8xf32> to vector<8x8xf32>
    %125 = arith.addf %123, %124 : vector<8x8xf32>
    %cst_62 = arith.constant dense<0xFF800000> : vector<8xf32>
    %126 = vector.multi_reduction <maximumf>, %125, %cst_62 [1] : vector<8x8xf32> to vector<8xf32>
    %127 = vector.shape_cast %126 : vector<8xf32> to vector<8x1xf32>
    %128 = vector.broadcast %127 : vector<8x1xf32> to vector<8x8xf32>
    %129 = arith.subf %125, %128 : vector<8x8xf32>
    %130 = math.exp %129 : vector<8x8xf32>
    %cst_63 = arith.constant dense<0.000000e+00> : vector<8xf32>
    %131 = vector.multi_reduction <add>, %130, %cst_63 [1] : vector<8x8xf32> to vector<8xf32>
    %132 = vector.shape_cast %131 : vector<8xf32> to vector<8x1xf32>
    %133 = tpu.reciprocal %132 {approx = true} : vector<8x1xf32> -> vector<8x1xf32>
    %134 = vector.broadcast %133 : vector<8x1xf32> to vector<8x8xf32>
    %135 = arith.mulf %130, %134 : vector<8x8xf32>
    %136 = arith.truncf %135 : vector<8x8xf32> to vector<8x8xbf16>
    %cst_64 = arith.constant dense<0.000000e+00> : vector<8x32xf32>
    %137 = tpu.matmul %136, %120, %cst_64 {dimension_numbers = #tpu.dot_dimension_numbers<[1], [0], [0], [1], [0, 0, 1, 1], [], []>} : vector<8x8xbf16>, vector<8x32xbf16>, vector<8x32xf32> -> vector<8x32xf32>
    %c0_65 = arith.constant 0 : index
    %c64 = arith.constant 64 : index
    %138 = vector.load %arg21[%c0_65, %c64] : memref<16x128xf32, #tpu.memory_space<vmem>>, vector<8x32xf32>
    tpu.vector_store %arg21[%c0_65, %c64], %137 {strides = array<i32>} : memref<16x128xf32, #tpu.memory_space<vmem>>, vector<8x32xf32>,
    %139 = vector.extract_strided_slice %66 {offsets = [0, 96], sizes = [8, 32], strides = [1, 1]} : vector<8x384xf32> to vector<8x32xf32>
    %140 = arith.truncf %139 : vector<8x32xf32> to vector<8x32xbf16>
    %141 = vector.extract_strided_slice %66 {offsets = [0, 224], sizes = [8, 32], strides = [1, 1]} : vector<8x384xf32> to vector<8x32xf32>
    %142 = arith.truncf %141 : vector<8x32xf32> to vector<8x32xbf16>
    %143 = vector.extract_strided_slice %66 {offsets = [0, 352], sizes = [8, 32], strides = [1, 1]} : vector<8x384xf32> to vector<8x32xf32>
    %144 = arith.truncf %143 : vector<8x32xf32> to vector<8x32xbf16>
    %cst_66 = arith.constant dense<0.000000e+00> : vector<8x8xf32>
    %145 = tpu.matmul %140, %142, %cst_66 {dimension_numbers = #tpu.dot_dimension_numbers<[1], [1], [0], [0], [0, 0, 1, 0], [], []>} : vector<8x32xbf16>, vector<8x32xbf16>, vector<8x8xf32> -> vector<8x8xf32>
    %cst_67 = arith.constant 0.176776692 : f32
    %146 = vector.broadcast %cst_67 : f32 to vector<8x8xf32>
    %147 = arith.mulf %145, %146 : vector<8x8xf32>
    %148 = vector.broadcast %31 : vector<1x8xf32> to vector<8x8xf32>
    %149 = arith.addf %147, %148 : vector<8x8xf32>
    %cst_68 = arith.constant dense<0xFF800000> : vector<8xf32>
    %150 = vector.multi_reduction <maximumf>, %149, %cst_68 [1] : vector<8x8xf32> to vector<8xf32>
    %151 = vector.shape_cast %150 : vector<8xf32> to vector<8x1xf32>
    %152 = vector.broadcast %151 : vector<8x1xf32> to vector<8x8xf32>
    %153 = arith.subf %149, %152 : vector<8x8xf32>
    %154 = math.exp %153 : vector<8x8xf32>
    %cst_69 = arith.constant dense<0.000000e+00> : vector<8xf32>
    %155 = vector.multi_reduction <add>, %154, %cst_69 [1] : vector<8x8xf32> to vector<8xf32>
    %156 = vector.shape_cast %155 : vector<8xf32> to vector<8x1xf32>
    %157 = tpu.reciprocal %156 {approx = true} : vector<8x1xf32> -> vector<8x1xf32>
    %158 = vector.broadcast %157 : vector<8x1xf32> to vector<8x8xf32>
    %159 = arith.mulf %154, %158 : vector<8x8xf32>
    %160 = arith.truncf %159 : vector<8x8xf32> to vector<8x8xbf16>
    %cst_70 = arith.constant dense<0.000000e+00> : vector<8x32xf32>
    %161 = tpu.matmul %160, %144, %cst_70 {dimension_numbers = #tpu.dot_dimension_numbers<[1], [0], [0], [1], [0, 0, 1, 1], [], []>} : vector<8x8xbf16>, vector<8x32xbf16>, vector<8x32xf32> -> vector<8x32xf32>
    %c0_71 = arith.constant 0 : index
    %c96 = arith.constant 96 : index
    %162 = vector.load %arg21[%c0_71, %c96] : memref<16x128xf32, #tpu.memory_space<vmem>>, vector<8x32xf32>
    tpu.vector_store %arg21[%c0_71, %c96], %161 {strides = array<i32>} : memref<16x128xf32, #tpu.memory_space<vmem>>, vector<8x32xf32>,
    %163 = vector.extract_strided_slice %65 {offsets = [8, 0], sizes = [8, 384], strides = [1, 1]} : vector<16x384xf32> to vector<8x384xf32>
    %164 = vector.extract_strided_slice %163 {offsets = [0, 0], sizes = [8, 32], strides = [1, 1]} : vector<8x384xf32> to vector<8x32xf32>
    %165 = arith.truncf %164 : vector<8x32xf32> to vector<8x32xbf16>
    %166 = vector.extract_strided_slice %163 {offsets = [0, 128], sizes = [8, 32], strides = [1, 1]} : vector<8x384xf32> to vector<8x32xf32>
    %167 = arith.truncf %166 : vector<8x32xf32> to vector<8x32xbf16>
    %168 = vector.extract_strided_slice %163 {offsets = [0, 256], sizes = [8, 32], strides = [1, 1]} : vector<8x384xf32> to vector<8x32xf32>
    %169 = arith.truncf %168 : vector<8x32xf32> to vector<8x32xbf16>
    %cst_72 = arith.constant dense<0.000000e+00> : vector<8x8xf32>
    %170 = tpu.matmul %165, %167, %cst_72 {dimension_numbers = #tpu.dot_dimension_numbers<[1], [1], [0], [0], [0, 0, 1, 0], [], []>} : vector<8x32xbf16>, vector<8x32xbf16>, vector<8x8xf32> -> vector<8x8xf32>
    %cst_73 = arith.constant 0.176776692 : f32
    %171 = vector.broadcast %cst_73 : f32 to vector<8x8xf32>
    %172 = arith.mulf %170, %171 : vector<8x8xf32>
    %173 = vector.broadcast %31 : vector<1x8xf32> to vector<8x8xf32>
    %174 = arith.addf %172, %173 : vector<8x8xf32>
    %cst_74 = arith.constant dense<0xFF800000> : vector<8xf32>
    %175 = vector.multi_reduction <maximumf>, %174, %cst_74 [1] : vector<8x8xf32> to vector<8xf32>
    %176 = vector.shape_cast %175 : vector<8xf32> to vector<8x1xf32>
    %177 = vector.broadcast %176 : vector<8x1xf32> to vector<8x8xf32>
    %178 = arith.subf %174, %177 : vector<8x8xf32>
    %179 = math.exp %178 : vector<8x8xf32>
    %cst_75 = arith.constant dense<0.000000e+00> : vector<8xf32>
    %180 = vector.multi_reduction <add>, %179, %cst_75 [1] : vector<8x8xf32> to vector<8xf32>
    %181 = vector.shape_cast %180 : vector<8xf32> to vector<8x1xf32>
    %182 = tpu.reciprocal %181 {approx = true} : vector<8x1xf32> -> vector<8x1xf32>
    %183 = vector.broadcast %182 : vector<8x1xf32> to vector<8x8xf32>
    %184 = arith.mulf %179, %183 : vector<8x8xf32>
    %185 = arith.truncf %184 : vector<8x8xf32> to vector<8x8xbf16>
    %cst_76 = arith.constant dense<0.000000e+00> : vector<8x32xf32>
    %186 = tpu.matmul %185, %169, %cst_76 {dimension_numbers = #tpu.dot_dimension_numbers<[1], [0], [0], [1], [0, 0, 1, 1], [], []>} : vector<8x8xbf16>, vector<8x32xbf16>, vector<8x32xf32> -> vector<8x32xf32>
    %c8_77 = arith.constant 8 : index
    %c0_78 = arith.constant 0 : index
    %187 = vector.load %arg21[%c8_77, %c0_78] : memref<16x128xf32, #tpu.memory_space<vmem>>, vector<8x32xf32>
    tpu.vector_store %arg21[%c8_77, %c0_78], %186 {strides = array<i32>} : memref<16x128xf32, #tpu.memory_space<vmem>>, vector<8x32xf32>,
    %188 = vector.extract_strided_slice %163 {offsets = [0, 32], sizes = [8, 32], strides = [1, 1]} : vector<8x384xf32> to vector<8x32xf32>
    %189 = arith.truncf %188 : vector<8x32xf32> to vector<8x32xbf16>
    %190 = vector.extract_strided_slice %163 {offsets = [0, 160], sizes = [8, 32], strides = [1, 1]} : vector<8x384xf32> to vector<8x32xf32>
    %191 = arith.truncf %190 : vector<8x32xf32> to vector<8x32xbf16>
    %192 = vector.extract_strided_slice %163 {offsets = [0, 288], sizes = [8, 32], strides = [1, 1]} : vector<8x384xf32> to vector<8x32xf32>
    %193 = arith.truncf %192 : vector<8x32xf32> to vector<8x32xbf16>
    %cst_79 = arith.constant dense<0.000000e+00> : vector<8x8xf32>
    %194 = tpu.matmul %189, %191, %cst_79 {dimension_numbers = #tpu.dot_dimension_numbers<[1], [1], [0], [0], [0, 0, 1, 0], [], []>} : vector<8x32xbf16>, vector<8x32xbf16>, vector<8x8xf32> -> vector<8x8xf32>
    %cst_80 = arith.constant 0.176776692 : f32
    %195 = vector.broadcast %cst_80 : f32 to vector<8x8xf32>
    %196 = arith.mulf %194, %195 : vector<8x8xf32>
    %197 = vector.broadcast %31 : vector<1x8xf32> to vector<8x8xf32>
    %198 = arith.addf %196, %197 : vector<8x8xf32>
    %cst_81 = arith.constant dense<0xFF800000> : vector<8xf32>
    %199 = vector.multi_reduction <maximumf>, %198, %cst_81 [1] : vector<8x8xf32> to vector<8xf32>
    %200 = vector.shape_cast %199 : vector<8xf32> to vector<8x1xf32>
    %201 = vector.broadcast %200 : vector<8x1xf32> to vector<8x8xf32>
    %202 = arith.subf %198, %201 : vector<8x8xf32>
    %203 = math.exp %202 : vector<8x8xf32>
    %cst_82 = arith.constant dense<0.000000e+00> : vector<8xf32>
    %204 = vector.multi_reduction <add>, %203, %cst_82 [1] : vector<8x8xf32> to vector<8xf32>
    %205 = vector.shape_cast %204 : vector<8xf32> to vector<8x1xf32>
    %206 = tpu.reciprocal %205 {approx = true} : vector<8x1xf32> -> vector<8x1xf32>
    %207 = vector.broadcast %206 : vector<8x1xf32> to vector<8x8xf32>
    %208 = arith.mulf %203, %207 : vector<8x8xf32>
    %209 = arith.truncf %208 : vector<8x8xf32> to vector<8x8xbf16>
    %cst_83 = arith.constant dense<0.000000e+00> : vector<8x32xf32>
    %210 = tpu.matmul %209, %193, %cst_83 {dimension_numbers = #tpu.dot_dimension_numbers<[1], [0], [0], [1], [0, 0, 1, 1], [], []>} : vector<8x8xbf16>, vector<8x32xbf16>, vector<8x32xf32> -> vector<8x32xf32>
    %c8_84 = arith.constant 8 : index
    %c32_85 = arith.constant 32 : index
    %211 = vector.load %arg21[%c8_84, %c32_85] : memref<16x128xf32, #tpu.memory_space<vmem>>, vector<8x32xf32>
    tpu.vector_store %arg21[%c8_84, %c32_85], %210 {strides = array<i32>} : memref<16x128xf32, #tpu.memory_space<vmem>>, vector<8x32xf32>,
    %212 = vector.extract_strided_slice %163 {offsets = [0, 64], sizes = [8, 32], strides = [1, 1]} : vector<8x384xf32> to vector<8x32xf32>
    %213 = arith.truncf %212 : vector<8x32xf32> to vector<8x32xbf16>
    %214 = vector.extract_strided_slice %163 {offsets = [0, 192], sizes = [8, 32], strides = [1, 1]} : vector<8x384xf32> to vector<8x32xf32>
    %215 = arith.truncf %214 : vector<8x32xf32> to vector<8x32xbf16>
    %216 = vector.extract_strided_slice %163 {offsets = [0, 320], sizes = [8, 32], strides = [1, 1]} : vector<8x384xf32> to vector<8x32xf32>
    %217 = arith.truncf %216 : vector<8x32xf32> to vector<8x32xbf16>
    %cst_86 = arith.constant dense<0.000000e+00> : vector<8x8xf32>
    %218 = tpu.matmul %213, %215, %cst_86 {dimension_numbers = #tpu.dot_dimension_numbers<[1], [1], [0], [0], [0, 0, 1, 0], [], []>} : vector<8x32xbf16>, vector<8x32xbf16>, vector<8x8xf32> -> vector<8x8xf32>
    %cst_87 = arith.constant 0.176776692 : f32
    %219 = vector.broadcast %cst_87 : f32 to vector<8x8xf32>
    %220 = arith.mulf %218, %219 : vector<8x8xf32>
    %221 = vector.broadcast %31 : vector<1x8xf32> to vector<8x8xf32>
    %222 = arith.addf %220, %221 : vector<8x8xf32>
    %cst_88 = arith.constant dense<0xFF800000> : vector<8xf32>
    %223 = vector.multi_reduction <maximumf>, %222, %cst_88 [1] : vector<8x8xf32> to vector<8xf32>
    %224 = vector.shape_cast %223 : vector<8xf32> to vector<8x1xf32>
    %225 = vector.broadcast %224 : vector<8x1xf32> to vector<8x8xf32>
    %226 = arith.subf %222, %225 : vector<8x8xf32>
    %227 = math.exp %226 : vector<8x8xf32>
    %cst_89 = arith.constant dense<0.000000e+00> : vector<8xf32>
    %228 = vector.multi_reduction <add>, %227, %cst_89 [1] : vector<8x8xf32> to vector<8xf32>
    %229 = vector.shape_cast %228 : vector<8xf32> to vector<8x1xf32>
    %230 = tpu.reciprocal %229 {approx = true} : vector<8x1xf32> -> vector<8x1xf32>
    %231 = vector.broadcast %230 : vector<8x1xf32> to vector<8x8xf32>
    %232 = arith.mulf %227, %231 : vector<8x8xf32>
    %233 = arith.truncf %232 : vector<8x8xf32> to vector<8x8xbf16>
    %cst_90 = arith.constant dense<0.000000e+00> : vector<8x32xf32>
    %234 = tpu.matmul %233, %217, %cst_90 {dimension_numbers = #tpu.dot_dimension_numbers<[1], [0], [0], [1], [0, 0, 1, 1], [], []>} : vector<8x8xbf16>, vector<8x32xbf16>, vector<8x32xf32> -> vector<8x32xf32>
    %c8_91 = arith.constant 8 : index
    %c64_92 = arith.constant 64 : index
    %235 = vector.load %arg21[%c8_91, %c64_92] : memref<16x128xf32, #tpu.memory_space<vmem>>, vector<8x32xf32>
    tpu.vector_store %arg21[%c8_91, %c64_92], %234 {strides = array<i32>} : memref<16x128xf32, #tpu.memory_space<vmem>>, vector<8x32xf32>,
    %236 = vector.extract_strided_slice %163 {offsets = [0, 96], sizes = [8, 32], strides = [1, 1]} : vector<8x384xf32> to vector<8x32xf32>
    %237 = arith.truncf %236 : vector<8x32xf32> to vector<8x32xbf16>
    %238 = vector.extract_strided_slice %163 {offsets = [0, 224], sizes = [8, 32], strides = [1, 1]} : vector<8x384xf32> to vector<8x32xf32>
    %239 = arith.truncf %238 : vector<8x32xf32> to vector<8x32xbf16>
    %240 = vector.extract_strided_slice %163 {offsets = [0, 352], sizes = [8, 32], strides = [1, 1]} : vector<8x384xf32> to vector<8x32xf32>
    %241 = arith.truncf %240 : vector<8x32xf32> to vector<8x32xbf16>
    %cst_93 = arith.constant dense<0.000000e+00> : vector<8x8xf32>
    %242 = tpu.matmul %237, %239, %cst_93 {dimension_numbers = #tpu.dot_dimension_numbers<[1], [1], [0], [0], [0, 0, 1, 0], [], []>} : vector<8x32xbf16>, vector<8x32xbf16>, vector<8x8xf32> -> vector<8x8xf32>
    %cst_94 = arith.constant 0.176776692 : f32
    %243 = vector.broadcast %cst_94 : f32 to vector<8x8xf32>
    %244 = arith.mulf %242, %243 : vector<8x8xf32>
    %245 = vector.broadcast %31 : vector<1x8xf32> to vector<8x8xf32>
    %246 = arith.addf %244, %245 : vector<8x8xf32>
    %cst_95 = arith.constant dense<0xFF800000> : vector<8xf32>
    %247 = vector.multi_reduction <maximumf>, %246, %cst_95 [1] : vector<8x8xf32> to vector<8xf32>
    %248 = vector.shape_cast %247 : vector<8xf32> to vector<8x1xf32>
    %249 = vector.broadcast %248 : vector<8x1xf32> to vector<8x8xf32>
    %250 = arith.subf %246, %249 : vector<8x8xf32>
    %251 = math.exp %250 : vector<8x8xf32>
    %cst_96 = arith.constant dense<0.000000e+00> : vector<8xf32>
    %252 = vector.multi_reduction <add>, %251, %cst_96 [1] : vector<8x8xf32> to vector<8xf32>
    %253 = vector.shape_cast %252 : vector<8xf32> to vector<8x1xf32>
    %254 = tpu.reciprocal %253 {approx = true} : vector<8x1xf32> -> vector<8x1xf32>
    %255 = vector.broadcast %254 : vector<8x1xf32> to vector<8x8xf32>
    %256 = arith.mulf %251, %255 : vector<8x8xf32>
    %257 = arith.truncf %256 : vector<8x8xf32> to vector<8x8xbf16>
    %cst_97 = arith.constant dense<0.000000e+00> : vector<8x32xf32>
    %258 = tpu.matmul %257, %241, %cst_97 {dimension_numbers = #tpu.dot_dimension_numbers<[1], [0], [0], [1], [0, 0, 1, 1], [], []>} : vector<8x8xbf16>, vector<8x32xbf16>, vector<8x32xf32> -> vector<8x32xf32>
    %c8_98 = arith.constant 8 : index
    %c96_99 = arith.constant 96 : index
    %259 = vector.load %arg21[%c8_98, %c96_99] : memref<16x128xf32, #tpu.memory_space<vmem>>, vector<8x32xf32>
    tpu.vector_store %arg21[%c8_98, %c96_99], %258 {strides = array<i32>} : memref<16x128xf32, #tpu.memory_space<vmem>>, vector<8x32xf32>,
    %c0_100 = arith.constant 0 : index
    %c0_101 = arith.constant 0 : index
    %260 = vector.load %arg21[%c0_100, %c0_101] : memref<16x128xf32, #tpu.memory_space<vmem>>, vector<16x128xf32>
    %261 = arith.truncf %260 : vector<16x128xf32> to vector<16x128xbf16>
    %c0_102 = arith.constant 0 : index
    %c0_103 = arith.constant 0 : index
    %c0_104 = arith.constant 0 : index
    %262 = vector.load %arg9[%c0_102, %c0_103, %c0_104] : memref<2x128x128xbf16, #tpu.memory_space<vmem>>, vector<1x128x128xbf16>
    %263 = vector.shape_cast %262 : vector<1x128x128xbf16> to vector<128x128xbf16>
    %cst_105 = arith.constant dense<0.000000e+00> : vector<16x128xf32>
    %264 = tpu.matmul %261, %263, %cst_105 {dimension_numbers = #tpu.dot_dimension_numbers<[1], [0], [0], [1], [0, 0, 1, 1], [], []>} : vector<16x128xbf16>, vector<128x128xbf16>, vector<16x128xf32> -> vector<16x128xf32>
    %c0_106 = arith.constant 0 : index
    %c0_107 = arith.constant 0 : index
    %c0_108 = arith.constant 0 : index
    %265 = vector.load %arg10[%c0_106, %c0_107, %c0_108] : memref<2x1x128xf32, #tpu.memory_space<vmem>>, vector<1x1x128xf32>
    %266 = vector.shape_cast %265 : vector<1x1x128xf32> to vector<1x128xf32>
    %267 = vector.broadcast %266 : vector<1x128xf32> to vector<16x128xf32>
    %268 = arith.addf %264, %267 : vector<16x128xf32>
    %269 = arith.addf %25, %268 : vector<16x128xf32>
    %c0_109 = arith.constant 0 : index
    %c0_110 = arith.constant 0 : index
    %c0_111 = arith.constant 0 : index
    %270 = vector.load %arg11[%c0_109, %c0_110, %c0_111] : memref<2x1x128xf32, #tpu.memory_space<vmem>>, vector<1x1x128xf32>
    %271 = vector.shape_cast %270 : vector<1x1x128xf32> to vector<1x128xf32>
    %c0_112 = arith.constant 0 : index
    %c0_113 = arith.constant 0 : index
    %c0_114 = arith.constant 0 : index
    %272 = vector.load %arg12[%c0_112, %c0_113, %c0_114] : memref<2x1x128xf32, #tpu.memory_space<vmem>>, vector<1x1x128xf32>
    %273 = vector.shape_cast %272 : vector<1x1x128xf32> to vector<1x128xf32>
    %cst_115 = arith.constant dense<0.000000e+00> : vector<16xf32>
    %274 = vector.multi_reduction <add>, %269, %cst_115 [1] : vector<16x128xf32> to vector<16xf32>
    %275 = vector.shape_cast %274 : vector<16xf32> to vector<16x1xf32>
    %cst_116 = arith.constant 1.280000e+02 : f32
    %276 = vector.broadcast %cst_116 : f32 to vector<16x1xf32>
    %277 = arith.divf %275, %276 : vector<16x1xf32>
    %278 = vector.broadcast %277 : vector<16x1xf32> to vector<16x128xf32>
    %279 = arith.subf %269, %278 : vector<16x128xf32>
    %280 = arith.mulf %279, %279 : vector<16x128xf32>
    %cst_117 = arith.constant dense<0.000000e+00> : vector<16xf32>
    %281 = vector.multi_reduction <add>, %280, %cst_117 [1] : vector<16x128xf32> to vector<16xf32>
    %282 = vector.shape_cast %281 : vector<16xf32> to vector<16x1xf32>
    %cst_118 = arith.constant 1.280000e+02 : f32
    %283 = vector.broadcast %cst_118 : f32 to vector<16x1xf32>
    %284 = arith.divf %282, %283 : vector<16x1xf32>
    %285 = vector.broadcast %277 : vector<16x1xf32> to vector<16x128xf32>
    %286 = arith.subf %269, %285 : vector<16x128xf32>
    %cst_119 = arith.constant 9.99999997E-7 : f32
    %287 = vector.broadcast %cst_119 : f32 to vector<16x1xf32>
    %288 = arith.addf %284, %287 : vector<16x1xf32>
    %289 = math.rsqrt %288 : vector<16x1xf32>
    %290 = vector.broadcast %289 : vector<16x1xf32> to vector<16x128xf32>
    %291 = arith.mulf %286, %290 : vector<16x128xf32>
    %292 = vector.broadcast %271 : vector<1x128xf32> to vector<16x128xf32>
    %293 = arith.mulf %291, %292 : vector<16x128xf32>
    %294 = vector.broadcast %273 : vector<1x128xf32> to vector<16x128xf32>
    %295 = arith.addf %293, %294 : vector<16x128xf32>
    %296 = arith.truncf %295 : vector<16x128xf32> to vector<16x128xbf16>
    %c0_120 = arith.constant 0 : index
    %c0_121 = arith.constant 0 : index
    %c0_122 = arith.constant 0 : index
    %297 = vector.load %arg13[%c0_120, %c0_121, %c0_122] : memref<2x128x512xbf16, #tpu.memory_space<vmem>>, vector<1x128x512xbf16>
    %298 = vector.shape_cast %297 : vector<1x128x512xbf16> to vector<128x512xbf16>
    %cst_123 = arith.constant dense<0.000000e+00> : vector<16x512xf32>
    %299 = tpu.matmul %296, %298, %cst_123 {dimension_numbers = #tpu.dot_dimension_numbers<[1], [0], [0], [1], [0, 0, 1, 1], [], []>} : vector<16x128xbf16>, vector<128x512xbf16>, vector<16x512xf32> -> vector<16x512xf32>
    %c0_124 = arith.constant 0 : index
    %c0_125 = arith.constant 0 : index
    %c0_126 = arith.constant 0 : index
    %300 = vector.load %arg14[%c0_124, %c0_125, %c0_126] : memref<2x1x512xf32, #tpu.memory_space<vmem>>, vector<1x1x512xf32>
    %301 = vector.shape_cast %300 : vector<1x1x512xf32> to vector<1x512xf32>
    %302 = vector.broadcast %301 : vector<1x512xf32> to vector<16x512xf32>
    %303 = arith.addf %299, %302 : vector<16x512xf32>
    %cst_127 = arith.constant 5.000000e-01 : f32
    %304 = vector.broadcast %cst_127 : f32 to vector<16x512xf32>
    %305 = arith.mulf %304, %303 : vector<16x512xf32>
    %cst_128 = arith.constant 0.707106769 : f32
    %306 = vector.broadcast %cst_128 : f32 to vector<16x512xf32>
    %307 = arith.mulf %303, %306 : vector<16x512xf32>
    %308 = math.erf %307 : vector<16x512xf32>
    %cst_129 = arith.constant 1.000000e+00 : f32
    %309 = vector.broadcast %cst_129 : f32 to vector<16x512xf32>
    %310 = arith.addf %309, %308 : vector<16x512xf32>
    %311 = arith.mulf %305, %310 : vector<16x512xf32>
    %312 = arith.truncf %311 : vector<16x512xf32> to vector<16x512xbf16>
    %c0_130 = arith.constant 0 : index
    %c0_131 = arith.constant 0 : index
    %c0_132 = arith.constant 0 : index
    %313 = vector.load %arg15[%c0_130, %c0_131, %c0_132] : memref<2x512x128xbf16, #tpu.memory_space<vmem>>, vector<1x512x128xbf16>
    %314 = vector.shape_cast %313 : vector<1x512x128xbf16> to vector<512x128xbf16>
    %cst_133 = arith.constant dense<0.000000e+00> : vector<16x128xf32>
    %315 = tpu.matmul %312, %314, %cst_133 {dimension_numbers = #tpu.dot_dimension_numbers<[1], [0], [0], [1], [0, 0, 1, 1], [], []>} : vector<16x512xbf16>, vector<512x128xbf16>, vector<16x128xf32> -> vector<16x128xf32>
    %c0_134 = arith.constant 0 : index
    %c0_135 = arith.constant 0 : index
    %c0_136 = arith.constant 0 : index
    %316 = vector.load %arg16[%c0_134, %c0_135, %c0_136] : memref<2x1x128xf32, #tpu.memory_space<vmem>>, vector<1x1x128xf32>
    %317 = vector.shape_cast %316 : vector<1x1x128xf32> to vector<1x128xf32>
    %318 = vector.broadcast %317 : vector<1x128xf32> to vector<16x128xf32>
    %319 = arith.addf %315, %318 : vector<16x128xf32>
    %320 = arith.addf %269, %319 : vector<16x128xf32>
    %c1_137 = arith.constant 1 : index
    %c0_138 = arith.constant 0 : index
    %c0_139 = arith.constant 0 : index
    %321 = vector.load %arg5[%c1_137, %c0_138, %c0_139] : memref<2x1x128xf32, #tpu.memory_space<vmem>>, vector<1x1x128xf32>
    %322 = vector.shape_cast %321 : vector<1x1x128xf32> to vector<1x128xf32>
    %c1_140 = arith.constant 1 : index
    %c0_141 = arith.constant 0 : index
    %c0_142 = arith.constant 0 : index
    %323 = vector.load %arg6[%c1_140, %c0_141, %c0_142] : memref<2x1x128xf32, #tpu.memory_space<vmem>>, vector<1x1x128xf32>
    %324 = vector.shape_cast %323 : vector<1x1x128xf32> to vector<1x128xf32>
    %cst_143 = arith.constant dense<0.000000e+00> : vector<16xf32>
    %325 = vector.multi_reduction <add>, %320, %cst_143 [1] : vector<16x128xf32> to vector<16xf32>
    %326 = vector.shape_cast %325 : vector<16xf32> to vector<16x1xf32>
    %cst_144 = arith.constant 1.280000e+02 : f32
    %327 = vector.broadcast %cst_144 : f32 to vector<16x1xf32>
    %328 = arith.divf %326, %327 : vector<16x1xf32>
    %329 = vector.broadcast %328 : vector<16x1xf32> to vector<16x128xf32>
    %330 = arith.subf %320, %329 : vector<16x128xf32>
    %331 = arith.mulf %330, %330 : vector<16x128xf32>
    %cst_145 = arith.constant dense<0.000000e+00> : vector<16xf32>
    %332 = vector.multi_reduction <add>, %331, %cst_145 [1] : vector<16x128xf32> to vector<16xf32>
    %333 = vector.shape_cast %332 : vector<16xf32> to vector<16x1xf32>
    %cst_146 = arith.constant 1.280000e+02 : f32
    %334 = vector.broadcast %cst_146 : f32 to vector<16x1xf32>
    %335 = arith.divf %333, %334 : vector<16x1xf32>
    %336 = vector.broadcast %328 : vector<16x1xf32> to vector<16x128xf32>
    %337 = arith.subf %320, %336 : vector<16x128xf32>
    %cst_147 = arith.constant 9.99999997E-7 : f32
    %338 = vector.broadcast %cst_147 : f32 to vector<16x1xf32>
    %339 = arith.addf %335, %338 : vector<16x1xf32>
    %340 = math.rsqrt %339 : vector<16x1xf32>
    %341 = vector.broadcast %340 : vector<16x1xf32> to vector<16x128xf32>
    %342 = arith.mulf %337, %341 : vector<16x128xf32>
    %343 = vector.broadcast %322 : vector<1x128xf32> to vector<16x128xf32>
    %344 = arith.mulf %342, %343 : vector<16x128xf32>
    %345 = vector.broadcast %324 : vector<1x128xf32> to vector<16x128xf32>
    %346 = arith.addf %344, %345 : vector<16x128xf32>
    %347 = arith.truncf %346 : vector<16x128xf32> to vector<16x128xbf16>
    %c1_148 = arith.constant 1 : index
    %c0_149 = arith.constant 0 : index
    %c0_150 = arith.constant 0 : index
    %348 = vector.load %arg7[%c1_148, %c0_149, %c0_150] : memref<2x128x384xbf16, #tpu.memory_space<vmem>>, vector<1x128x384xbf16>
    %349 = vector.shape_cast %348 : vector<1x128x384xbf16> to vector<128x384xbf16>
    %cst_151 = arith.constant dense<0.000000e+00> : vector<16x384xf32>
    %350 = tpu.matmul %347, %349, %cst_151 {dimension_numbers = #tpu.dot_dimension_numbers<[1], [0], [0], [1], [0, 0, 1, 1], [], []>} : vector<16x128xbf16>, vector<128x384xbf16>, vector<16x384xf32> -> vector<16x384xf32>
    %c1_152 = arith.constant 1 : index
    %c0_153 = arith.constant 0 : index
    %c0_154 = arith.constant 0 : index
    %351 = vector.load %arg8[%c1_152, %c0_153, %c0_154] : memref<2x1x384xf32, #tpu.memory_space<vmem>>, vector<1x1x384xf32>
    %352 = vector.shape_cast %351 : vector<1x1x384xf32> to vector<1x384xf32>
    %353 = vector.broadcast %352 : vector<1x384xf32> to vector<16x384xf32>
    %354 = arith.addf %350, %353 : vector<16x384xf32>
    %355 = vector.extract_strided_slice %354 {offsets = [0, 0], sizes = [8, 384], strides = [1, 1]} : vector<16x384xf32> to vector<8x384xf32>
    %356 = vector.extract_strided_slice %355 {offsets = [0, 0], sizes = [8, 32], strides = [1, 1]} : vector<8x384xf32> to vector<8x32xf32>
    %357 = arith.truncf %356 : vector<8x32xf32> to vector<8x32xbf16>
    %358 = vector.extract_strided_slice %355 {offsets = [0, 128], sizes = [8, 32], strides = [1, 1]} : vector<8x384xf32> to vector<8x32xf32>
    %359 = arith.truncf %358 : vector<8x32xf32> to vector<8x32xbf16>
    %360 = vector.extract_strided_slice %355 {offsets = [0, 256], sizes = [8, 32], strides = [1, 1]} : vector<8x384xf32> to vector<8x32xf32>
    %361 = arith.truncf %360 : vector<8x32xf32> to vector<8x32xbf16>
    %cst_155 = arith.constant dense<0.000000e+00> : vector<8x8xf32>
    %362 = tpu.matmul %357, %359, %cst_155 {dimension_numbers = #tpu.dot_dimension_numbers<[1], [1], [0], [0], [0, 0, 1, 0], [], []>} : vector<8x32xbf16>, vector<8x32xbf16>, vector<8x8xf32> -> vector<8x8xf32>
    %cst_156 = arith.constant 0.176776692 : f32
    %363 = vector.broadcast %cst_156 : f32 to vector<8x8xf32>
    %364 = arith.mulf %362, %363 : vector<8x8xf32>
    %365 = vector.broadcast %31 : vector<1x8xf32> to vector<8x8xf32>
    %366 = arith.addf %364, %365 : vector<8x8xf32>
    %cst_157 = arith.constant dense<0xFF800000> : vector<8xf32>
    %367 = vector.multi_reduction <maximumf>, %366, %cst_157 [1] : vector<8x8xf32> to vector<8xf32>
    %368 = vector.shape_cast %367 : vector<8xf32> to vector<8x1xf32>
    %369 = vector.broadcast %368 : vector<8x1xf32> to vector<8x8xf32>
    %370 = arith.subf %366, %369 : vector<8x8xf32>
    %371 = math.exp %370 : vector<8x8xf32>
    %cst_158 = arith.constant dense<0.000000e+00> : vector<8xf32>
    %372 = vector.multi_reduction <add>, %371, %cst_158 [1] : vector<8x8xf32> to vector<8xf32>
    %373 = vector.shape_cast %372 : vector<8xf32> to vector<8x1xf32>
    %374 = tpu.reciprocal %373 {approx = true} : vector<8x1xf32> -> vector<8x1xf32>
    %375 = vector.broadcast %374 : vector<8x1xf32> to vector<8x8xf32>
    %376 = arith.mulf %371, %375 : vector<8x8xf32>
    %377 = arith.truncf %376 : vector<8x8xf32> to vector<8x8xbf16>
    %cst_159 = arith.constant dense<0.000000e+00> : vector<8x32xf32>
    %378 = tpu.matmul %377, %361, %cst_159 {dimension_numbers = #tpu.dot_dimension_numbers<[1], [0], [0], [1], [0, 0, 1, 1], [], []>} : vector<8x8xbf16>, vector<8x32xbf16>, vector<8x32xf32> -> vector<8x32xf32>
    %c0_160 = arith.constant 0 : index
    %c0_161 = arith.constant 0 : index
    %379 = vector.load %arg21[%c0_160, %c0_161] : memref<16x128xf32, #tpu.memory_space<vmem>>, vector<8x32xf32>
    tpu.vector_store %arg21[%c0_160, %c0_161], %378 {strides = array<i32>} : memref<16x128xf32, #tpu.memory_space<vmem>>, vector<8x32xf32>,
    %380 = vector.extract_strided_slice %355 {offsets = [0, 32], sizes = [8, 32], strides = [1, 1]} : vector<8x384xf32> to vector<8x32xf32>
    %381 = arith.truncf %380 : vector<8x32xf32> to vector<8x32xbf16>
    %382 = vector.extract_strided_slice %355 {offsets = [0, 160], sizes = [8, 32], strides = [1, 1]} : vector<8x384xf32> to vector<8x32xf32>
    %383 = arith.truncf %382 : vector<8x32xf32> to vector<8x32xbf16>
    %384 = vector.extract_strided_slice %355 {offsets = [0, 288], sizes = [8, 32], strides = [1, 1]} : vector<8x384xf32> to vector<8x32xf32>
    %385 = arith.truncf %384 : vector<8x32xf32> to vector<8x32xbf16>
    %cst_162 = arith.constant dense<0.000000e+00> : vector<8x8xf32>
    %386 = tpu.matmul %381, %383, %cst_162 {dimension_numbers = #tpu.dot_dimension_numbers<[1], [1], [0], [0], [0, 0, 1, 0], [], []>} : vector<8x32xbf16>, vector<8x32xbf16>, vector<8x8xf32> -> vector<8x8xf32>
    %cst_163 = arith.constant 0.176776692 : f32
    %387 = vector.broadcast %cst_163 : f32 to vector<8x8xf32>
    %388 = arith.mulf %386, %387 : vector<8x8xf32>
    %389 = vector.broadcast %31 : vector<1x8xf32> to vector<8x8xf32>
    %390 = arith.addf %388, %389 : vector<8x8xf32>
    %cst_164 = arith.constant dense<0xFF800000> : vector<8xf32>
    %391 = vector.multi_reduction <maximumf>, %390, %cst_164 [1] : vector<8x8xf32> to vector<8xf32>
    %392 = vector.shape_cast %391 : vector<8xf32> to vector<8x1xf32>
    %393 = vector.broadcast %392 : vector<8x1xf32> to vector<8x8xf32>
    %394 = arith.subf %390, %393 : vector<8x8xf32>
    %395 = math.exp %394 : vector<8x8xf32>
    %cst_165 = arith.constant dense<0.000000e+00> : vector<8xf32>
    %396 = vector.multi_reduction <add>, %395, %cst_165 [1] : vector<8x8xf32> to vector<8xf32>
    %397 = vector.shape_cast %396 : vector<8xf32> to vector<8x1xf32>
    %398 = tpu.reciprocal %397 {approx = true} : vector<8x1xf32> -> vector<8x1xf32>
    %399 = vector.broadcast %398 : vector<8x1xf32> to vector<8x8xf32>
    %400 = arith.mulf %395, %399 : vector<8x8xf32>
    %401 = arith.truncf %400 : vector<8x8xf32> to vector<8x8xbf16>
    %cst_166 = arith.constant dense<0.000000e+00> : vector<8x32xf32>
    %402 = tpu.matmul %401, %385, %cst_166 {dimension_numbers = #tpu.dot_dimension_numbers<[1], [0], [0], [1], [0, 0, 1, 1], [], []>} : vector<8x8xbf16>, vector<8x32xbf16>, vector<8x32xf32> -> vector<8x32xf32>
    %c0_167 = arith.constant 0 : index
    %c32_168 = arith.constant 32 : index
    %403 = vector.load %arg21[%c0_167, %c32_168] : memref<16x128xf32, #tpu.memory_space<vmem>>, vector<8x32xf32>
    tpu.vector_store %arg21[%c0_167, %c32_168], %402 {strides = array<i32>} : memref<16x128xf32, #tpu.memory_space<vmem>>, vector<8x32xf32>,
    %404 = vector.extract_strided_slice %355 {offsets = [0, 64], sizes = [8, 32], strides = [1, 1]} : vector<8x384xf32> to vector<8x32xf32>
    %405 = arith.truncf %404 : vector<8x32xf32> to vector<8x32xbf16>
    %406 = vector.extract_strided_slice %355 {offsets = [0, 192], sizes = [8, 32], strides = [1, 1]} : vector<8x384xf32> to vector<8x32xf32>
    %407 = arith.truncf %406 : vector<8x32xf32> to vector<8x32xbf16>
    %408 = vector.extract_strided_slice %355 {offsets = [0, 320], sizes = [8, 32], strides = [1, 1]} : vector<8x384xf32> to vector<8x32xf32>
    %409 = arith.truncf %408 : vector<8x32xf32> to vector<8x32xbf16>
    %cst_169 = arith.constant dense<0.000000e+00> : vector<8x8xf32>
    %410 = tpu.matmul %405, %407, %cst_169 {dimension_numbers = #tpu.dot_dimension_numbers<[1], [1], [0], [0], [0, 0, 1, 0], [], []>} : vector<8x32xbf16>, vector<8x32xbf16>, vector<8x8xf32> -> vector<8x8xf32>
    %cst_170 = arith.constant 0.176776692 : f32
    %411 = vector.broadcast %cst_170 : f32 to vector<8x8xf32>
    %412 = arith.mulf %410, %411 : vector<8x8xf32>
    %413 = vector.broadcast %31 : vector<1x8xf32> to vector<8x8xf32>
    %414 = arith.addf %412, %413 : vector<8x8xf32>
    %cst_171 = arith.constant dense<0xFF800000> : vector<8xf32>
    %415 = vector.multi_reduction <maximumf>, %414, %cst_171 [1] : vector<8x8xf32> to vector<8xf32>
    %416 = vector.shape_cast %415 : vector<8xf32> to vector<8x1xf32>
    %417 = vector.broadcast %416 : vector<8x1xf32> to vector<8x8xf32>
    %418 = arith.subf %414, %417 : vector<8x8xf32>
    %419 = math.exp %418 : vector<8x8xf32>
    %cst_172 = arith.constant dense<0.000000e+00> : vector<8xf32>
    %420 = vector.multi_reduction <add>, %419, %cst_172 [1] : vector<8x8xf32> to vector<8xf32>
    %421 = vector.shape_cast %420 : vector<8xf32> to vector<8x1xf32>
    %422 = tpu.reciprocal %421 {approx = true} : vector<8x1xf32> -> vector<8x1xf32>
    %423 = vector.broadcast %422 : vector<8x1xf32> to vector<8x8xf32>
    %424 = arith.mulf %419, %423 : vector<8x8xf32>
    %425 = arith.truncf %424 : vector<8x8xf32> to vector<8x8xbf16>
    %cst_173 = arith.constant dense<0.000000e+00> : vector<8x32xf32>
    %426 = tpu.matmul %425, %409, %cst_173 {dimension_numbers = #tpu.dot_dimension_numbers<[1], [0], [0], [1], [0, 0, 1, 1], [], []>} : vector<8x8xbf16>, vector<8x32xbf16>, vector<8x32xf32> -> vector<8x32xf32>
    %c0_174 = arith.constant 0 : index
    %c64_175 = arith.constant 64 : index
    %427 = vector.load %arg21[%c0_174, %c64_175] : memref<16x128xf32, #tpu.memory_space<vmem>>, vector<8x32xf32>
    tpu.vector_store %arg21[%c0_174, %c64_175], %426 {strides = array<i32>} : memref<16x128xf32, #tpu.memory_space<vmem>>, vector<8x32xf32>,
    %428 = vector.extract_strided_slice %355 {offsets = [0, 96], sizes = [8, 32], strides = [1, 1]} : vector<8x384xf32> to vector<8x32xf32>
    %429 = arith.truncf %428 : vector<8x32xf32> to vector<8x32xbf16>
    %430 = vector.extract_strided_slice %355 {offsets = [0, 224], sizes = [8, 32], strides = [1, 1]} : vector<8x384xf32> to vector<8x32xf32>
    %431 = arith.truncf %430 : vector<8x32xf32> to vector<8x32xbf16>
    %432 = vector.extract_strided_slice %355 {offsets = [0, 352], sizes = [8, 32], strides = [1, 1]} : vector<8x384xf32> to vector<8x32xf32>
    %433 = arith.truncf %432 : vector<8x32xf32> to vector<8x32xbf16>
    %cst_176 = arith.constant dense<0.000000e+00> : vector<8x8xf32>
    %434 = tpu.matmul %429, %431, %cst_176 {dimension_numbers = #tpu.dot_dimension_numbers<[1], [1], [0], [0], [0, 0, 1, 0], [], []>} : vector<8x32xbf16>, vector<8x32xbf16>, vector<8x8xf32> -> vector<8x8xf32>
    %cst_177 = arith.constant 0.176776692 : f32
    %435 = vector.broadcast %cst_177 : f32 to vector<8x8xf32>
    %436 = arith.mulf %434, %435 : vector<8x8xf32>
    %437 = vector.broadcast %31 : vector<1x8xf32> to vector<8x8xf32>
    %438 = arith.addf %436, %437 : vector<8x8xf32>
    %cst_178 = arith.constant dense<0xFF800000> : vector<8xf32>
    %439 = vector.multi_reduction <maximumf>, %438, %cst_178 [1] : vector<8x8xf32> to vector<8xf32>
    %440 = vector.shape_cast %439 : vector<8xf32> to vector<8x1xf32>
    %441 = vector.broadcast %440 : vector<8x1xf32> to vector<8x8xf32>
    %442 = arith.subf %438, %441 : vector<8x8xf32>
    %443 = math.exp %442 : vector<8x8xf32>
    %cst_179 = arith.constant dense<0.000000e+00> : vector<8xf32>
    %444 = vector.multi_reduction <add>, %443, %cst_179 [1] : vector<8x8xf32> to vector<8xf32>
    %445 = vector.shape_cast %444 : vector<8xf32> to vector<8x1xf32>
    %446 = tpu.reciprocal %445 {approx = true} : vector<8x1xf32> -> vector<8x1xf32>
    %447 = vector.broadcast %446 : vector<8x1xf32> to vector<8x8xf32>
    %448 = arith.mulf %443, %447 : vector<8x8xf32>
    %449 = arith.truncf %448 : vector<8x8xf32> to vector<8x8xbf16>
    %cst_180 = arith.constant dense<0.000000e+00> : vector<8x32xf32>
    %450 = tpu.matmul %449, %433, %cst_180 {dimension_numbers = #tpu.dot_dimension_numbers<[1], [0], [0], [1], [0, 0, 1, 1], [], []>} : vector<8x8xbf16>, vector<8x32xbf16>, vector<8x32xf32> -> vector<8x32xf32>
    %c0_181 = arith.constant 0 : index
    %c96_182 = arith.constant 96 : index
    %451 = vector.load %arg21[%c0_181, %c96_182] : memref<16x128xf32, #tpu.memory_space<vmem>>, vector<8x32xf32>
    tpu.vector_store %arg21[%c0_181, %c96_182], %450 {strides = array<i32>} : memref<16x128xf32, #tpu.memory_space<vmem>>, vector<8x32xf32>,
    %452 = vector.extract_strided_slice %354 {offsets = [8, 0], sizes = [8, 384], strides = [1, 1]} : vector<16x384xf32> to vector<8x384xf32>
    %453 = vector.extract_strided_slice %452 {offsets = [0, 0], sizes = [8, 32], strides = [1, 1]} : vector<8x384xf32> to vector<8x32xf32>
    %454 = arith.truncf %453 : vector<8x32xf32> to vector<8x32xbf16>
    %455 = vector.extract_strided_slice %452 {offsets = [0, 128], sizes = [8, 32], strides = [1, 1]} : vector<8x384xf32> to vector<8x32xf32>
    %456 = arith.truncf %455 : vector<8x32xf32> to vector<8x32xbf16>
    %457 = vector.extract_strided_slice %452 {offsets = [0, 256], sizes = [8, 32], strides = [1, 1]} : vector<8x384xf32> to vector<8x32xf32>
    %458 = arith.truncf %457 : vector<8x32xf32> to vector<8x32xbf16>
    %cst_183 = arith.constant dense<0.000000e+00> : vector<8x8xf32>
    %459 = tpu.matmul %454, %456, %cst_183 {dimension_numbers = #tpu.dot_dimension_numbers<[1], [1], [0], [0], [0, 0, 1, 0], [], []>} : vector<8x32xbf16>, vector<8x32xbf16>, vector<8x8xf32> -> vector<8x8xf32>
    %cst_184 = arith.constant 0.176776692 : f32
    %460 = vector.broadcast %cst_184 : f32 to vector<8x8xf32>
    %461 = arith.mulf %459, %460 : vector<8x8xf32>
    %462 = vector.broadcast %31 : vector<1x8xf32> to vector<8x8xf32>
    %463 = arith.addf %461, %462 : vector<8x8xf32>
    %cst_185 = arith.constant dense<0xFF800000> : vector<8xf32>
    %464 = vector.multi_reduction <maximumf>, %463, %cst_185 [1] : vector<8x8xf32> to vector<8xf32>
    %465 = vector.shape_cast %464 : vector<8xf32> to vector<8x1xf32>
    %466 = vector.broadcast %465 : vector<8x1xf32> to vector<8x8xf32>
    %467 = arith.subf %463, %466 : vector<8x8xf32>
    %468 = math.exp %467 : vector<8x8xf32>
    %cst_186 = arith.constant dense<0.000000e+00> : vector<8xf32>
    %469 = vector.multi_reduction <add>, %468, %cst_186 [1] : vector<8x8xf32> to vector<8xf32>
    %470 = vector.shape_cast %469 : vector<8xf32> to vector<8x1xf32>
    %471 = tpu.reciprocal %470 {approx = true} : vector<8x1xf32> -> vector<8x1xf32>
    %472 = vector.broadcast %471 : vector<8x1xf32> to vector<8x8xf32>
    %473 = arith.mulf %468, %472 : vector<8x8xf32>
    %474 = arith.truncf %473 : vector<8x8xf32> to vector<8x8xbf16>
    %cst_187 = arith.constant dense<0.000000e+00> : vector<8x32xf32>
    %475 = tpu.matmul %474, %458, %cst_187 {dimension_numbers = #tpu.dot_dimension_numbers<[1], [0], [0], [1], [0, 0, 1, 1], [], []>} : vector<8x8xbf16>, vector<8x32xbf16>, vector<8x32xf32> -> vector<8x32xf32>
    %c8_188 = arith.constant 8 : index
    %c0_189 = arith.constant 0 : index
    %476 = vector.load %arg21[%c8_188, %c0_189] : memref<16x128xf32, #tpu.memory_space<vmem>>, vector<8x32xf32>
    tpu.vector_store %arg21[%c8_188, %c0_189], %475 {strides = array<i32>} : memref<16x128xf32, #tpu.memory_space<vmem>>, vector<8x32xf32>,
    %477 = vector.extract_strided_slice %452 {offsets = [0, 32], sizes = [8, 32], strides = [1, 1]} : vector<8x384xf32> to vector<8x32xf32>
    %478 = arith.truncf %477 : vector<8x32xf32> to vector<8x32xbf16>
    %479 = vector.extract_strided_slice %452 {offsets = [0, 160], sizes = [8, 32], strides = [1, 1]} : vector<8x384xf32> to vector<8x32xf32>
    %480 = arith.truncf %479 : vector<8x32xf32> to vector<8x32xbf16>
    %481 = vector.extract_strided_slice %452 {offsets = [0, 288], sizes = [8, 32], strides = [1, 1]} : vector<8x384xf32> to vector<8x32xf32>
    %482 = arith.truncf %481 : vector<8x32xf32> to vector<8x32xbf16>
    %cst_190 = arith.constant dense<0.000000e+00> : vector<8x8xf32>
    %483 = tpu.matmul %478, %480, %cst_190 {dimension_numbers = #tpu.dot_dimension_numbers<[1], [1], [0], [0], [0, 0, 1, 0], [], []>} : vector<8x32xbf16>, vector<8x32xbf16>, vector<8x8xf32> -> vector<8x8xf32>
    %cst_191 = arith.constant 0.176776692 : f32
    %484 = vector.broadcast %cst_191 : f32 to vector<8x8xf32>
    %485 = arith.mulf %483, %484 : vector<8x8xf32>
    %486 = vector.broadcast %31 : vector<1x8xf32> to vector<8x8xf32>
    %487 = arith.addf %485, %486 : vector<8x8xf32>
    %cst_192 = arith.constant dense<0xFF800000> : vector<8xf32>
    %488 = vector.multi_reduction <maximumf>, %487, %cst_192 [1] : vector<8x8xf32> to vector<8xf32>
    %489 = vector.shape_cast %488 : vector<8xf32> to vector<8x1xf32>
    %490 = vector.broadcast %489 : vector<8x1xf32> to vector<8x8xf32>
    %491 = arith.subf %487, %490 : vector<8x8xf32>
    %492 = math.exp %491 : vector<8x8xf32>
    %cst_193 = arith.constant dense<0.000000e+00> : vector<8xf32>
    %493 = vector.multi_reduction <add>, %492, %cst_193 [1] : vector<8x8xf32> to vector<8xf32>
    %494 = vector.shape_cast %493 : vector<8xf32> to vector<8x1xf32>
    %495 = tpu.reciprocal %494 {approx = true} : vector<8x1xf32> -> vector<8x1xf32>
    %496 = vector.broadcast %495 : vector<8x1xf32> to vector<8x8xf32>
    %497 = arith.mulf %492, %496 : vector<8x8xf32>
    %498 = arith.truncf %497 : vector<8x8xf32> to vector<8x8xbf16>
    %cst_194 = arith.constant dense<0.000000e+00> : vector<8x32xf32>
    %499 = tpu.matmul %498, %482, %cst_194 {dimension_numbers = #tpu.dot_dimension_numbers<[1], [0], [0], [1], [0, 0, 1, 1], [], []>} : vector<8x8xbf16>, vector<8x32xbf16>, vector<8x32xf32> -> vector<8x32xf32>
    %c8_195 = arith.constant 8 : index
    %c32_196 = arith.constant 32 : index
    %500 = vector.load %arg21[%c8_195, %c32_196] : memref<16x128xf32, #tpu.memory_space<vmem>>, vector<8x32xf32>
    tpu.vector_store %arg21[%c8_195, %c32_196], %499 {strides = array<i32>} : memref<16x128xf32, #tpu.memory_space<vmem>>, vector<8x32xf32>,
    %501 = vector.extract_strided_slice %452 {offsets = [0, 64], sizes = [8, 32], strides = [1, 1]} : vector<8x384xf32> to vector<8x32xf32>
    %502 = arith.truncf %501 : vector<8x32xf32> to vector<8x32xbf16>
    %503 = vector.extract_strided_slice %452 {offsets = [0, 192], sizes = [8, 32], strides = [1, 1]} : vector<8x384xf32> to vector<8x32xf32>
    %504 = arith.truncf %503 : vector<8x32xf32> to vector<8x32xbf16>
    %505 = vector.extract_strided_slice %452 {offsets = [0, 320], sizes = [8, 32], strides = [1, 1]} : vector<8x384xf32> to vector<8x32xf32>
    %506 = arith.truncf %505 : vector<8x32xf32> to vector<8x32xbf16>
    %cst_197 = arith.constant dense<0.000000e+00> : vector<8x8xf32>
    %507 = tpu.matmul %502, %504, %cst_197 {dimension_numbers = #tpu.dot_dimension_numbers<[1], [1], [0], [0], [0, 0, 1, 0], [], []>} : vector<8x32xbf16>, vector<8x32xbf16>, vector<8x8xf32> -> vector<8x8xf32>
    %cst_198 = arith.constant 0.176776692 : f32
    %508 = vector.broadcast %cst_198 : f32 to vector<8x8xf32>
    %509 = arith.mulf %507, %508 : vector<8x8xf32>
    %510 = vector.broadcast %31 : vector<1x8xf32> to vector<8x8xf32>
    %511 = arith.addf %509, %510 : vector<8x8xf32>
    %cst_199 = arith.constant dense<0xFF800000> : vector<8xf32>
    %512 = vector.multi_reduction <maximumf>, %511, %cst_199 [1] : vector<8x8xf32> to vector<8xf32>
    %513 = vector.shape_cast %512 : vector<8xf32> to vector<8x1xf32>
    %514 = vector.broadcast %513 : vector<8x1xf32> to vector<8x8xf32>
    %515 = arith.subf %511, %514 : vector<8x8xf32>
    %516 = math.exp %515 : vector<8x8xf32>
    %cst_200 = arith.constant dense<0.000000e+00> : vector<8xf32>
    %517 = vector.multi_reduction <add>, %516, %cst_200 [1] : vector<8x8xf32> to vector<8xf32>
    %518 = vector.shape_cast %517 : vector<8xf32> to vector<8x1xf32>
    %519 = tpu.reciprocal %518 {approx = true} : vector<8x1xf32> -> vector<8x1xf32>
    %520 = vector.broadcast %519 : vector<8x1xf32> to vector<8x8xf32>
    %521 = arith.mulf %516, %520 : vector<8x8xf32>
    %522 = arith.truncf %521 : vector<8x8xf32> to vector<8x8xbf16>
    %cst_201 = arith.constant dense<0.000000e+00> : vector<8x32xf32>
    %523 = tpu.matmul %522, %506, %cst_201 {dimension_numbers = #tpu.dot_dimension_numbers<[1], [0], [0], [1], [0, 0, 1, 1], [], []>} : vector<8x8xbf16>, vector<8x32xbf16>, vector<8x32xf32> -> vector<8x32xf32>
    %c8_202 = arith.constant 8 : index
    %c64_203 = arith.constant 64 : index
    %524 = vector.load %arg21[%c8_202, %c64_203] : memref<16x128xf32, #tpu.memory_space<vmem>>, vector<8x32xf32>
    tpu.vector_store %arg21[%c8_202, %c64_203], %523 {strides = array<i32>} : memref<16x128xf32, #tpu.memory_space<vmem>>, vector<8x32xf32>,
    %525 = vector.extract_strided_slice %452 {offsets = [0, 96], sizes = [8, 32], strides = [1, 1]} : vector<8x384xf32> to vector<8x32xf32>
    %526 = arith.truncf %525 : vector<8x32xf32> to vector<8x32xbf16>
    %527 = vector.extract_strided_slice %452 {offsets = [0, 224], sizes = [8, 32], strides = [1, 1]} : vector<8x384xf32> to vector<8x32xf32>
    %528 = arith.truncf %527 : vector<8x32xf32> to vector<8x32xbf16>
    %529 = vector.extract_strided_slice %452 {offsets = [0, 352], sizes = [8, 32], strides = [1, 1]} : vector<8x384xf32> to vector<8x32xf32>
    %530 = arith.truncf %529 : vector<8x32xf32> to vector<8x32xbf16>
    %cst_204 = arith.constant dense<0.000000e+00> : vector<8x8xf32>
    %531 = tpu.matmul %526, %528, %cst_204 {dimension_numbers = #tpu.dot_dimension_numbers<[1], [1], [0], [0], [0, 0, 1, 0], [], []>} : vector<8x32xbf16>, vector<8x32xbf16>, vector<8x8xf32> -> vector<8x8xf32>
    %cst_205 = arith.constant 0.176776692 : f32
    %532 = vector.broadcast %cst_205 : f32 to vector<8x8xf32>
    %533 = arith.mulf %531, %532 : vector<8x8xf32>
    %534 = vector.broadcast %31 : vector<1x8xf32> to vector<8x8xf32>
    %535 = arith.addf %533, %534 : vector<8x8xf32>
    %cst_206 = arith.constant dense<0xFF800000> : vector<8xf32>
    %536 = vector.multi_reduction <maximumf>, %535, %cst_206 [1] : vector<8x8xf32> to vector<8xf32>
    %537 = vector.shape_cast %536 : vector<8xf32> to vector<8x1xf32>
    %538 = vector.broadcast %537 : vector<8x1xf32> to vector<8x8xf32>
    %539 = arith.subf %535, %538 : vector<8x8xf32>
    %540 = math.exp %539 : vector<8x8xf32>
    %cst_207 = arith.constant dense<0.000000e+00> : vector<8xf32>
    %541 = vector.multi_reduction <add>, %540, %cst_207 [1] : vector<8x8xf32> to vector<8xf32>
    %542 = vector.shape_cast %541 : vector<8xf32> to vector<8x1xf32>
    %543 = tpu.reciprocal %542 {approx = true} : vector<8x1xf32> -> vector<8x1xf32>
    %544 = vector.broadcast %543 : vector<8x1xf32> to vector<8x8xf32>
    %545 = arith.mulf %540, %544 : vector<8x8xf32>
    %546 = arith.truncf %545 : vector<8x8xf32> to vector<8x8xbf16>
    %cst_208 = arith.constant dense<0.000000e+00> : vector<8x32xf32>
    %547 = tpu.matmul %546, %530, %cst_208 {dimension_numbers = #tpu.dot_dimension_numbers<[1], [0], [0], [1], [0, 0, 1, 1], [], []>} : vector<8x8xbf16>, vector<8x32xbf16>, vector<8x32xf32> -> vector<8x32xf32>
    %c8_209 = arith.constant 8 : index
    %c96_210 = arith.constant 96 : index
    %548 = vector.load %arg21[%c8_209, %c96_210] : memref<16x128xf32, #tpu.memory_space<vmem>>, vector<8x32xf32>
    tpu.vector_store %arg21[%c8_209, %c96_210], %547 {strides = array<i32>} : memref<16x128xf32, #tpu.memory_space<vmem>>, vector<8x32xf32>,
    %c0_211 = arith.constant 0 : index
    %c0_212 = arith.constant 0 : index
    %549 = vector.load %arg21[%c0_211, %c0_212] : memref<16x128xf32, #tpu.memory_space<vmem>>, vector<16x128xf32>
    %550 = arith.truncf %549 : vector<16x128xf32> to vector<16x128xbf16>
    %c1_213 = arith.constant 1 : index
    %c0_214 = arith.constant 0 : index
    %c0_215 = arith.constant 0 : index
    %551 = vector.load %arg9[%c1_213, %c0_214, %c0_215] : memref<2x128x128xbf16, #tpu.memory_space<vmem>>, vector<1x128x128xbf16>
    %552 = vector.shape_cast %551 : vector<1x128x128xbf16> to vector<128x128xbf16>
    %cst_216 = arith.constant dense<0.000000e+00> : vector<16x128xf32>
    %553 = tpu.matmul %550, %552, %cst_216 {dimension_numbers = #tpu.dot_dimension_numbers<[1], [0], [0], [1], [0, 0, 1, 1], [], []>} : vector<16x128xbf16>, vector<128x128xbf16>, vector<16x128xf32> -> vector<16x128xf32>
    %c1_217 = arith.constant 1 : index
    %c0_218 = arith.constant 0 : index
    %c0_219 = arith.constant 0 : index
    %554 = vector.load %arg10[%c1_217, %c0_218, %c0_219] : memref<2x1x128xf32, #tpu.memory_space<vmem>>, vector<1x1x128xf32>
    %555 = vector.shape_cast %554 : vector<1x1x128xf32> to vector<1x128xf32>
    %556 = vector.broadcast %555 : vector<1x128xf32> to vector<16x128xf32>
    %557 = arith.addf %553, %556 : vector<16x128xf32>
    %558 = arith.addf %320, %557 : vector<16x128xf32>
    %c1_220 = arith.constant 1 : index
    %c0_221 = arith.constant 0 : index
    %c0_222 = arith.constant 0 : index
    %559 = vector.load %arg11[%c1_220, %c0_221, %c0_222] : memref<2x1x128xf32, #tpu.memory_space<vmem>>, vector<1x1x128xf32>
    %560 = vector.shape_cast %559 : vector<1x1x128xf32> to vector<1x128xf32>
    %c1_223 = arith.constant 1 : index
    %c0_224 = arith.constant 0 : index
    %c0_225 = arith.constant 0 : index
    %561 = vector.load %arg12[%c1_223, %c0_224, %c0_225] : memref<2x1x128xf32, #tpu.memory_space<vmem>>, vector<1x1x128xf32>
    %562 = vector.shape_cast %561 : vector<1x1x128xf32> to vector<1x128xf32>
    %cst_226 = arith.constant dense<0.000000e+00> : vector<16xf32>
    %563 = vector.multi_reduction <add>, %558, %cst_226 [1] : vector<16x128xf32> to vector<16xf32>
    %564 = vector.shape_cast %563 : vector<16xf32> to vector<16x1xf32>
    %cst_227 = arith.constant 1.280000e+02 : f32
    %565 = vector.broadcast %cst_227 : f32 to vector<16x1xf32>
    %566 = arith.divf %564, %565 : vector<16x1xf32>
    %567 = vector.broadcast %566 : vector<16x1xf32> to vector<16x128xf32>
    %568 = arith.subf %558, %567 : vector<16x128xf32>
    %569 = arith.mulf %568, %568 : vector<16x128xf32>
    %cst_228 = arith.constant dense<0.000000e+00> : vector<16xf32>
    %570 = vector.multi_reduction <add>, %569, %cst_228 [1] : vector<16x128xf32> to vector<16xf32>
    %571 = vector.shape_cast %570 : vector<16xf32> to vector<16x1xf32>
    %cst_229 = arith.constant 1.280000e+02 : f32
    %572 = vector.broadcast %cst_229 : f32 to vector<16x1xf32>
    %573 = arith.divf %571, %572 : vector<16x1xf32>
    %574 = vector.broadcast %566 : vector<16x1xf32> to vector<16x128xf32>
    %575 = arith.subf %558, %574 : vector<16x128xf32>
    %cst_230 = arith.constant 9.99999997E-7 : f32
    %576 = vector.broadcast %cst_230 : f32 to vector<16x1xf32>
    %577 = arith.addf %573, %576 : vector<16x1xf32>
    %578 = math.rsqrt %577 : vector<16x1xf32>
    %579 = vector.broadcast %578 : vector<16x1xf32> to vector<16x128xf32>
    %580 = arith.mulf %575, %579 : vector<16x128xf32>
    %581 = vector.broadcast %560 : vector<1x128xf32> to vector<16x128xf32>
    %582 = arith.mulf %580, %581 : vector<16x128xf32>
    %583 = vector.broadcast %562 : vector<1x128xf32> to vector<16x128xf32>
    %584 = arith.addf %582, %583 : vector<16x128xf32>
    %585 = arith.truncf %584 : vector<16x128xf32> to vector<16x128xbf16>
    %c1_231 = arith.constant 1 : index
    %c0_232 = arith.constant 0 : index
    %c0_233 = arith.constant 0 : index
    %586 = vector.load %arg13[%c1_231, %c0_232, %c0_233] : memref<2x128x512xbf16, #tpu.memory_space<vmem>>, vector<1x128x512xbf16>
    %587 = vector.shape_cast %586 : vector<1x128x512xbf16> to vector<128x512xbf16>
    %cst_234 = arith.constant dense<0.000000e+00> : vector<16x512xf32>
    %588 = tpu.matmul %585, %587, %cst_234 {dimension_numbers = #tpu.dot_dimension_numbers<[1], [0], [0], [1], [0, 0, 1, 1], [], []>} : vector<16x128xbf16>, vector<128x512xbf16>, vector<16x512xf32> -> vector<16x512xf32>
    %c1_235 = arith.constant 1 : index
    %c0_236 = arith.constant 0 : index
    %c0_237 = arith.constant 0 : index
    %589 = vector.load %arg14[%c1_235, %c0_236, %c0_237] : memref<2x1x512xf32, #tpu.memory_space<vmem>>, vector<1x1x512xf32>
    %590 = vector.shape_cast %589 : vector<1x1x512xf32> to vector<1x512xf32>
    %591 = vector.broadcast %590 : vector<1x512xf32> to vector<16x512xf32>
    %592 = arith.addf %588, %591 : vector<16x512xf32>
    %cst_238 = arith.constant 5.000000e-01 : f32
    %593 = vector.broadcast %cst_238 : f32 to vector<16x512xf32>
    %594 = arith.mulf %593, %592 : vector<16x512xf32>
    %cst_239 = arith.constant 0.707106769 : f32
    %595 = vector.broadcast %cst_239 : f32 to vector<16x512xf32>
    %596 = arith.mulf %592, %595 : vector<16x512xf32>
    %597 = math.erf %596 : vector<16x512xf32>
    %cst_240 = arith.constant 1.000000e+00 : f32
    %598 = vector.broadcast %cst_240 : f32 to vector<16x512xf32>
    %599 = arith.addf %598, %597 : vector<16x512xf32>
    %600 = arith.mulf %594, %599 : vector<16x512xf32>
    %601 = arith.truncf %600 : vector<16x512xf32> to vector<16x512xbf16>
    %c1_241 = arith.constant 1 : index
    %c0_242 = arith.constant 0 : index
    %c0_243 = arith.constant 0 : index
    %602 = vector.load %arg15[%c1_241, %c0_242, %c0_243] : memref<2x512x128xbf16, #tpu.memory_space<vmem>>, vector<1x512x128xbf16>
    %603 = vector.shape_cast %602 : vector<1x512x128xbf16> to vector<512x128xbf16>
    %cst_244 = arith.constant dense<0.000000e+00> : vector<16x128xf32>
    %604 = tpu.matmul %601, %603, %cst_244 {dimension_numbers = #tpu.dot_dimension_numbers<[1], [0], [0], [1], [0, 0, 1, 1], [], []>} : vector<16x512xbf16>, vector<512x128xbf16>, vector<16x128xf32> -> vector<16x128xf32>
    %c1_245 = arith.constant 1 : index
    %c0_246 = arith.constant 0 : index
    %c0_247 = arith.constant 0 : index
    %605 = vector.load %arg16[%c1_245, %c0_246, %c0_247] : memref<2x1x128xf32, #tpu.memory_space<vmem>>, vector<1x1x128xf32>
    %606 = vector.shape_cast %605 : vector<1x1x128xf32> to vector<1x128xf32>
    %607 = vector.broadcast %606 : vector<1x128xf32> to vector<16x128xf32>
    %608 = arith.addf %604, %607 : vector<16x128xf32>
    %609 = arith.addf %558, %608 : vector<16x128xf32>
    %c0_248 = arith.constant 0 : index
    %c0_249 = arith.constant 0 : index
    %610 = vector.load %arg17[%c0_248, %c0_249] : memref<1x128xf32, #tpu.memory_space<vmem>>, vector<1x128xf32>
    %c0_250 = arith.constant 0 : index
    %c0_251 = arith.constant 0 : index
    %611 = vector.load %arg18[%c0_250, %c0_251] : memref<1x128xf32, #tpu.memory_space<vmem>>, vector<1x128xf32>
    %cst_252 = arith.constant dense<0.000000e+00> : vector<16xf32>
    %612 = vector.multi_reduction <add>, %609, %cst_252 [1] : vector<16x128xf32> to vector<16xf32>
    %613 = vector.shape_cast %612 : vector<16xf32> to vector<16x1xf32>
    %cst_253 = arith.constant 1.280000e+02 : f32
    %614 = vector.broadcast %cst_253 : f32 to vector<16x1xf32>
    %615 = arith.divf %613, %614 : vector<16x1xf32>
    %616 = vector.broadcast %615 : vector<16x1xf32> to vector<16x128xf32>
    %617 = arith.subf %609, %616 : vector<16x128xf32>
    %618 = arith.mulf %617, %617 : vector<16x128xf32>
    %cst_254 = arith.constant dense<0.000000e+00> : vector<16xf32>
    %619 = vector.multi_reduction <add>, %618, %cst_254 [1] : vector<16x128xf32> to vector<16xf32>
    %620 = vector.shape_cast %619 : vector<16xf32> to vector<16x1xf32>
    %cst_255 = arith.constant 1.280000e+02 : f32
    %621 = vector.broadcast %cst_255 : f32 to vector<16x1xf32>
    %622 = arith.divf %620, %621 : vector<16x1xf32>
    %623 = vector.broadcast %615 : vector<16x1xf32> to vector<16x128xf32>
    %624 = arith.subf %609, %623 : vector<16x128xf32>
    %cst_256 = arith.constant 9.99999997E-7 : f32
    %625 = vector.broadcast %cst_256 : f32 to vector<16x1xf32>
    %626 = arith.addf %622, %625 : vector<16x1xf32>
    %627 = math.rsqrt %626 : vector<16x1xf32>
    %628 = vector.broadcast %627 : vector<16x1xf32> to vector<16x128xf32>
    %629 = arith.mulf %624, %628 : vector<16x128xf32>
    %630 = vector.broadcast %610 : vector<1x128xf32> to vector<16x128xf32>
    %631 = arith.mulf %629, %630 : vector<16x128xf32>
    %632 = vector.broadcast %611 : vector<1x128xf32> to vector<16x128xf32>
    %633 = arith.addf %631, %632 : vector<16x128xf32>
    %c0_257 = arith.constant 0 : index
    %c0_258 = arith.constant 0 : index
    %634 = vector.load %arg19[%c0_257, %c0_258] : memref<16x128xf32, #tpu.memory_space<vmem>>, vector<16x128xf32>
    tpu.vector_store %arg19[%c0_257, %c0_258], %633 {strides = array<i32>} : memref<16x128xf32, #tpu.memory_space<vmem>>, vector<16x128xf32>,
    return
  }
}

</mosaic_0001>

<llo_original>
// kernel: blip_image_model.1
$region0: #{blip_image_model.1}
  #allocation0 [shape = 'u32[]', space=smem, size = 0x4, offset = 0x4, fixed_abs, tag = 'smem constant byte address 0x4 - core index']
  #allocation1 [shape = 'u32[144,128]{1,0:T(1,128)}', space=vmem, size = 0x12000, scoped, tag = 'internal scratch']
  #allocation2 [shape = 'f32[16,128]{1,0:T(8,128)}', space=vmem, size = 0x2000, scoped, tag = 'scratch operand']
  #allocation3 [shape = 'f32[16,128]{1,0:T(8,128)}', space=vmem, size = 0x2000, scoped, tag = 'scratch operand']
  %s0 = inlined_call_operand.vmem [shape: f32[8,768], index: 0, kind: input, shape index: {}]
  %s1 = inlined_call_operand.vmem [shape: bf16[768,128], index: 1, kind: input, shape index: {}]
  %s2 = inlined_call_operand.vmem [shape: f32[1,128], index: 2, kind: input, shape index: {}]
  %s3 = inlined_call_operand.hbm [shape: f32[1,128], index: 3, kind: input, shape index: {}]
  %s4 = inlined_call_operand.vmem [shape: f32[5,128], index: 4, kind: input, shape index: {}]
  %s5 = inlined_call_operand.vmem [shape: f32[2,1,128], index: 5, kind: input, shape index: {}]
  %s6 = inlined_call_operand.hbm [shape: f32[2,1,128], index: 6, kind: input, shape index: {}]
  %s7 = inlined_call_operand.vmem [shape: bf16[2,128,384], index: 7, kind: input, shape index: {}]
  %s8 = inlined_call_operand.hbm [shape: f32[2,1,384], index: 8, kind: input, shape index: {}]
  %s9 = inlined_call_operand.hbm [shape: bf16[2,128,128], index: 9, kind: input, shape index: {}]
  %s10 = inlined_call_operand.hbm [shape: f32[2,1,128], index: 10, kind: input, shape index: {}]
  %s11 = inlined_call_operand.hbm [shape: f32[2,1,128], index: 11, kind: input, shape index: {}]
  %s12 = inlined_call_operand.hbm [shape: f32[2,1,128], index: 12, kind: input, shape index: {}]
  %s13 = inlined_call_operand.vmem [shape: bf16[2,128,512], index: 13, kind: input, shape index: {}]
  %s14 = inlined_call_operand.hbm [shape: f32[2,1,512], index: 14, kind: input, shape index: {}]
  %s15 = inlined_call_operand.vmem [shape: bf16[2,512,128], index: 15, kind: input, shape index: {}]
  %s16 = inlined_call_operand.hbm [shape: f32[2,1,128], index: 16, kind: input, shape index: {}]
  %s17 = inlined_call_operand.vmem [shape: f32[1,128], index: 17, kind: input, shape index: {}]
  %s18 = inlined_call_operand.vmem [shape: f32[1,128], index: 18, kind: input, shape index: {}]
  %s19 = inlined_call_operand.vmem [shape: f32[16,128], index: 19, kind: output, shape index: {}]
  %s20 = sld [smem:[#allocation0]]
  $region122: #{blip_image_model.1} parent=0
    _
  %s22 = ssub.s32 1, %s20
  %s23 = scalar_select 0, %s22, %s20
  $region1: #{blip_image_model.1} parent=0
    #allocation4 [shape = 'u8[512]{0}', space=vmem, size = 0x400, scoped, tag = 'input window, operand 3, single buffered']
    #allocation5 [shape = 's32[1]{0}', space=sflag, size = 0x4, scoped, tag = 'scoped memory for blip_image_model.1']
    #allocation6 [shape = 'u8[1024]{0}', space=vmem, size = 0x400, scoped, tag = 'input window, operand 6, single buffered']
    #allocation7 [shape = 's32[1]{0}', space=sflag, size = 0x4, scoped, tag = 'scoped memory for blip_image_model.1']
    #allocation8 [shape = 'u8[3072]{0}', space=vmem, size = 0xc00, scoped, tag = 'input window, operand 8, single buffered']
    #allocation9 [shape = 'u8[65536]{0}', space=vmem, size = 0x10000, scoped, tag = 'input window, operand 9, single buffered']
    #allocation10 [shape = 's32[1]{0}', space=sflag, size = 0x4, scoped, tag = 'scoped memory for blip_image_model.1']
    #allocation11 [shape = 'u8[1024]{0}', space=vmem, size = 0x400, scoped, tag = 'input window, operand 10, single buffered']
    #allocation12 [shape = 'u8[1024]{0}', space=vmem, size = 0x400, scoped, tag = 'input window, operand 11, single buffered']
    #allocation13 [shape = 's32[1]{0}', space=sflag, size = 0x4, scoped, tag = 'scoped memory for blip_image_model.1']
    #allocation14 [shape = 'u8[1024]{0}', space=vmem, size = 0x400, scoped, tag = 'input window, operand 12, single buffered']
    #allocation15 [shape = 'u8[4096]{0}', space=vmem, size = 0x1000, scoped, tag = 'input window, operand 14, single buffered']
    #allocation16 [shape = 's32[1]{0}', space=sflag, size = 0x4, scoped, tag = 'scoped memory for blip_image_model.1']
    #allocation17 [shape = 'u8[1024]{0}', space=vmem, size = 0x400, scoped, tag = 'input window, operand 16, single buffered']
    %24 = vsyncpa [#allocation5], 0
    %25 = vsyncpa [#allocation7], 0
    %26 = vsyncpa [#allocation10], 0
    %27 = vsyncpa [#allocation13], 0
    %28 = vsyncpa [#allocation16], 0
    // Predicated region
    $region2: #{blip_image_model.1} parent=1 // pred_check
      _
    $region3: #{blip_image_model.1} parent=1 // pred_check_branch
      %30 = sbr.rel (0) target = $region5
    $region4: #{blip_image_model.1} parent=1 // pred_region
      _
    $region5: #{blip_image_model.1} parent=1 // pred_fallthru
      _
    // Predicated region
    $region6: #{blip_image_model.1} parent=1 // pred_check
      _
    $region7: #{blip_image_model.1} parent=1 // pred_check_branch
      %32 = sbr.rel (0) target = $region9
    $region8: #{blip_image_model.1} parent=1 // pred_region
      _
    $region9: #{blip_image_model.1} parent=1 // pred_fallthru
      _
    // Predicated region
    $region10: #{blip_image_model.1} parent=1 // pred_check
      _
    $region11: #{blip_image_model.1} parent=1 // pred_check_branch
      %34 = sbr.rel (0) target = $region13
    $region12: #{blip_image_model.1} parent=1 // pred_region
      _
    $region13: #{blip_image_model.1} parent=1 // pred_fallthru
      _
    // Predicated region
    $region14: #{blip_image_model.1} parent=1 // pred_check
      _
    $region15: #{blip_image_model.1} parent=1 // pred_check_branch
      %36 = sbr.rel (0) target = $region17
    $region16: #{blip_image_model.1} parent=1 // pred_region
      %s38 = ssub.s32 16, 16
      %39 = vsyncadd [#allocation5], %s38
      %s41 = sshll.u32 [#allocation4], 4
      %s42 = int_to_ptr.vmem [resolvable:$true] %s41
      %44 = dma.hbm_to_vmem [thread:$0]  %s3, 16, %s42, [#allocation5]
    $region17: #{blip_image_model.1} parent=1 // pred_fallthru
      _
    // Predicated region
    $region18: #{blip_image_model.1} parent=1 // pred_check
      _
    $region19: #{blip_image_model.1} parent=1 // pred_check_branch
      %46 = sbr.rel (0) target = $region21
    $region20: #{blip_image_model.1} parent=1 // pred_region
      _
    $region21: #{blip_image_model.1} parent=1 // pred_fallthru
      _
    // Predicated region
    $region22: #{blip_image_model.1} parent=1 // pred_check
      _
    $region23: #{blip_image_model.1} parent=1 // pred_check_branch
      %48 = sbr.rel (0) target = $region25
    $region24: #{blip_image_model.1} parent=1 // pred_region
      _
    $region25: #{blip_image_model.1} parent=1 // pred_fallthru
      _
    // Predicated region
    $region26: #{blip_image_model.1} parent=1 // pred_check
      _
    $region27: #{blip_image_model.1} parent=1 // pred_check_branch
      %50 = sbr.rel (0) target = $region29
    $region28: #{blip_image_model.1} parent=1 // pred_region
      %s52 = ssub.s32 32, 32
      %53 = vsyncadd [#allocation7], %s52
      %s54 = sshll.u32 [#allocation6], 4
      %s55 = int_to_ptr.vmem [resolvable:$true] %s54
      %60 = dma.hbm_to_vmem [thread:$0]  %s6, 32, %s55, [#allocation7], 16, 16, 1
    $region29: #{blip_image_model.1} parent=1 // pred_fallthru
      _
    // Predicated region
    $region30: #{blip_image_model.1} parent=1 // pred_check
      _
    $region31: #{blip_image_model.1} parent=1 // pred_check_branch
      %62 = sbr.rel (0) target = $region33
    $region32: #{blip_image_model.1} parent=1 // pred_region
      _
    $region33: #{blip_image_model.1} parent=1 // pred_fallthru
      _
    // Predicated region
    $region34: #{blip_image_model.1} parent=1 // pred_check
      _
    $region35: #{blip_image_model.1} parent=1 // pred_check_branch
      %64 = sbr.rel (0) target = $region37
    $region36: #{blip_image_model.1} parent=1 // pred_region
      %s66 = ssub.s32 96, 96
      %67 = vsyncadd [#allocation7], %s66
      %s68 = sshll.u32 [#allocation8], 4
      %s69 = int_to_ptr.vmem [resolvable:$true] %s68
      %74 = dma.hbm_to_vmem [thread:$0]  %s8, 96, %s69, [#allocation7], 48, 48, 3
    $region37: #{blip_image_model.1} parent=1 // pred_fallthru
      _
    // Predicated region
    $region38: #{blip_image_model.1} parent=1 // pred_check
      _
    $region39: #{blip_image_model.1} parent=1 // pred_check_branch
      %76 = sbr.rel (0) target = $region41
    $region40: #{blip_image_model.1} parent=1 // pred_region
      %s78 = ssub.s32 2048, 2048
      %79 = vsyncadd [#allocation10], %s78
      %s80 = sshll.u32 [#allocation9], 4
      %s81 = int_to_ptr.vmem [resolvable:$true] %s80
      %86 = dma.hbm_to_vmem [thread:$0]  %s9, 2048, %s81, [#allocation10], 64, 64, 4
    $region41: #{blip_image_model.1} parent=1 // pred_fallthru
      _
    // Predicated region
    $region42: #{blip_image_model.1} parent=1 // pred_check
      _
    $region43: #{blip_image_model.1} parent=1 // pred_check_branch
      %88 = sbr.rel (0) target = $region45
    $region44: #{blip_image_model.1} parent=1 // pred_region
      %s90 = ssub.s32 32, 32
      %91 = vsyncadd [#allocation10], %s90
      %s92 = sshll.u32 [#allocation11], 4
      %s93 = int_to_ptr.vmem [resolvable:$true] %s92
      %98 = dma.hbm_to_vmem [thread:$0]  %s10, 32, %s93, [#allocation10], 16, 16, 1
    $region45: #{blip_image_model.1} parent=1 // pred_fallthru
      _
    // Predicated region
    $region46: #{blip_image_model.1} parent=1 // pred_check
      _
    $region47: #{blip_image_model.1} parent=1 // pred_check_branch
      %100 = sbr.rel (0) target = $region49
    $region48: #{blip_image_model.1} parent=1 // pred_region
      %s102 = ssub.s32 32, 32
      %103 = vsyncadd [#allocation13], %s102
      %s104 = sshll.u32 [#allocation12], 4
      %s105 = int_to_ptr.vmem [resolvable:$true] %s104
      %110 = dma.hbm_to_vmem [thread:$0]  %s11, 32, %s105, [#allocation13], 16, 16, 1
    $region49: #{blip_image_model.1} parent=1 // pred_fallthru
      _
    // Predicated region
    $region50: #{blip_image_model.1} parent=1 // pred_check
      _
    $region51: #{blip_image_model.1} parent=1 // pred_check_branch
      %112 = sbr.rel (0) target = $region53
    $region52: #{blip_image_model.1} parent=1 // pred_region
      %s114 = ssub.s32 32, 32
      %115 = vsyncadd [#allocation13], %s114
      %s116 = sshll.u32 [#allocation14], 4
      %s117 = int_to_ptr.vmem [resolvable:$true] %s116
      %122 = dma.hbm_to_vmem [thread:$0]  %s12, 32, %s117, [#allocation13], 16, 16, 1
    $region53: #{blip_image_model.1} parent=1 // pred_fallthru
      _
    // Predicated region
    $region54: #{blip_image_model.1} parent=1 // pred_check
      _
    $region55: #{blip_image_model.1} parent=1 // pred_check_branch
      %124 = sbr.rel (0) target = $region57
    $region56: #{blip_image_model.1} parent=1 // pred_region
      _
    $region57: #{blip_image_model.1} parent=1 // pred_fallthru
      _
    // Predicated region
    $region58: #{blip_image_model.1} parent=1 // pred_check
      _
    $region59: #{blip_image_model.1} parent=1 // pred_check_branch
      %126 = sbr.rel (0) target = $region61
    $region60: #{blip_image_model.1} parent=1 // pred_region
      %s128 = ssub.s32 128, 128
      %129 = vsyncadd [#allocation16], %s128
      %s130 = sshll.u32 [#allocation15], 4
      %s131 = int_to_ptr.vmem [resolvable:$true] %s130
      %136 = dma.hbm_to_vmem [thread:$0]  %s14, 128, %s131, [#allocation16], 64, 64, 4
    $region61: #{blip_image_model.1} parent=1 // pred_fallthru
      _
    // Predicated region
    $region62: #{blip_image_model.1} parent=1 // pred_check
      _
    $region63: #{blip_image_model.1} parent=1 // pred_check_branch
      %138 = sbr.rel (0) target = $region65
    $region64: #{blip_image_model.1} parent=1 // pred_region
      _
    $region65: #{blip_image_model.1} parent=1 // pred_fallthru
      _
    // Predicated region
    $region66: #{blip_image_model.1} parent=1 // pred_check
      _
    $region67: #{blip_image_model.1} parent=1 // pred_check_branch
      %140 = sbr.rel (0) target = $region69
    $region68: #{blip_image_model.1} parent=1 // pred_region
      %s142 = ssub.s32 32, 32
      %143 = vsyncadd [#allocation16], %s142
      %s144 = sshll.u32 [#allocation17], 4
      %s145 = int_to_ptr.vmem [resolvable:$true] %s144
      %150 = dma.hbm_to_vmem [thread:$0]  %s16, 32, %s145, [#allocation16], 16, 16, 1
    $region69: #{blip_image_model.1} parent=1 // pred_fallthru
      _
    // Predicated region
    $region70: #{blip_image_model.1} parent=1 // pred_check
      _
    $region71: #{blip_image_model.1} parent=1 // pred_check_branch
      %152 = sbr.rel (0) target = $region73
    $region72: #{blip_image_model.1} parent=1 // pred_region
      _
    $region73: #{blip_image_model.1} parent=1 // pred_fallthru
      _
    // Predicated region
    $region74: #{blip_image_model.1} parent=1 // pred_check
      _
    $region75: #{blip_image_model.1} parent=1 // pred_check_branch
      %154 = sbr.rel (0) target = $region77
    $region76: #{blip_image_model.1} parent=1 // pred_region
      _
    $region77: #{blip_image_model.1} parent=1 // pred_fallthru
      _
    // Predicated region
    $region78: #{blip_image_model.1} parent=1 // pred_check
      _
    $region79: #{blip_image_model.1} parent=1 // pred_check_branch
      %156 = sbr.rel (0) target = $region81
    $region80: #{blip_image_model.1} parent=1 // pred_region
      %157 = dma.done [#allocation5], 16
    $region81: #{blip_image_model.1} parent=1 // pred_fallthru
      _
    // Predicated region
    $region82: #{blip_image_model.1} parent=1 // pred_check
      _
    $region83: #{blip_image_model.1} parent=1 // pred_check_branch
      %159 = sbr.rel (0) target = $region85
    $region84: #{blip_image_model.1} parent=1 // pred_region
      %160 = dma.done [#allocation7], 32
    $region85: #{blip_image_model.1} parent=1 // pred_fallthru
      _
    // Predicated region
    $region86: #{blip_image_model.1} parent=1 // pred_check
      _
    $region87: #{blip_image_model.1} parent=1 // pred_check_branch
      %162 = sbr.rel (0) target = $region89
    $region88: #{blip_image_model.1} parent=1 // pred_region
      %163 = dma.done [#allocation7], 96
    $region89: #{blip_image_model.1} parent=1 // pred_fallthru
      _
    // Predicated region
    $region90: #{blip_image_model.1} parent=1 // pred_check
      _
    $region91: #{blip_image_model.1} parent=1 // pred_check_branch
      %165 = sbr.rel (0) target = $region93
    $region92: #{blip_image_model.1} parent=1 // pred_region
      %166 = dma.done [#allocation10], 2048
    $region93: #{blip_image_model.1} parent=1 // pred_fallthru
      _
    // Predicated region
    $region94: #{blip_image_model.1} parent=1 // pred_check
      _
    $region95: #{blip_image_model.1} parent=1 // pred_check_branch
      %168 = sbr.rel (0) target = $region97
    $region96: #{blip_image_model.1} parent=1 // pred_region
      %169 = dma.done [#allocation10], 32
    $region97: #{blip_image_model.1} parent=1 // pred_fallthru
      _
    // Predicated region
    $region98: #{blip_image_model.1} parent=1 // pred_check
      _
    $region99: #{blip_image_model.1} parent=1 // pred_check_branch
      %171 = sbr.rel (0) target = $region101
    $region100: #{blip_image_model.1} parent=1 // pred_region
      %172 = dma.done [#allocation13], 32
    $region101: #{blip_image_model.1} parent=1 // pred_fallthru
      _
    // Predicated region
    $region102: #{blip_image_model.1} parent=1 // pred_check
      _
    $region103: #{blip_image_model.1} parent=1 // pred_check_branch
      %174 = sbr.rel (0) target = $region105
    $region104: #{blip_image_model.1} parent=1 // pred_region
      %175 = dma.done [#allocation13], 32
    $region105: #{blip_image_model.1} parent=1 // pred_fallthru
      _
    // Predicated region
    $region106: #{blip_image_model.1} parent=1 // pred_check
      _
    $region107: #{blip_image_model.1} parent=1 // pred_check_branch
      %177 = sbr.rel (0) target = $region109
    $region108: #{blip_image_model.1} parent=1 // pred_region
      %178 = dma.done [#allocation16], 128
    $region109: #{blip_image_model.1} parent=1 // pred_fallthru
      _
    // Predicated region
    $region110: #{blip_image_model.1} parent=1 // pred_check
      _
    $region111: #{blip_image_model.1} parent=1 // pred_check_branch
      %180 = sbr.rel (0) target = $region113
    $region112: #{blip_image_model.1} parent=1 // pred_region
      %181 = dma.done [#allocation16], 32
    $region113: #{blip_image_model.1} parent=1 // pred_fallthru
      _
    %v183 = vld [vmem:[%s0] sm:$0xff]
    %v184 = vld [vmem:[%s0 + $0x8] sm:$0xff]
    %v185 = vld [vmem:[%s0 + $0x10] sm:$0xff]
    %v186 = vld [vmem:[%s0 + $0x18] sm:$0xff]
    %v187 = vld [vmem:[%s0 + $0x20] sm:$0xff]
    %v188 = vld [vmem:[%s0 + $0x28] sm:$0xff]
    %v189 = vpack.c.bf16 %v183, %v183
    %v190 = vpack.c.bf16 %v184, %v184
    %v191 = vpack.c.bf16 %v185, %v185
    %v192 = vpack.c.bf16 %v186, %v186
    %v193 = vpack.c.bf16 %v187, %v187
    %v194 = vpack.c.bf16 %v188, %v188
    %v195 = vld [vmem:[%s1] sm:$0xf]
    %v196 = vld [vmem:[%s1 + $0x4] sm:$0xf]
    %v197 = vld [vmem:[%s1 + $0x8] sm:$0xf]
    %v198 = vld [vmem:[%s1 + $0xc] sm:$0xf]
    %v199 = vld [vmem:[%s1 + $0x10] sm:$0xf]
    %v200 = vld [vmem:[%s1 + $0x14] sm:$0xf]
    %v201 = vld [vmem:[%s1 + $0x18] sm:$0xf]
    %v202 = vld [vmem:[%s1 + $0x1c] sm:$0xf]
    %v203 = vld [vmem:[%s1 + $0x20] sm:$0xf]
    %v204 = vld [vmem:[%s1 + $0x24] sm:$0xf]
    %v205 = vld [vmem:[%s1 + $0x28] sm:$0xf]
    %v206 = vld [vmem:[%s1 + $0x2c] sm:$0xf]
    %v207 = vld [vmem:[%s1 + $0x30] sm:$0xf]
    %v208 = vld [vmem:[%s1 + $0x34] sm:$0xf]
    %v209 = vld [vmem:[%s1 + $0x38] sm:$0xf]
    %v210 = vld [vmem:[%s1 + $0x3c] sm:$0xf]
    %v211 = vld [vmem:[%s1 + $0x40] sm:$0xf]
    %v212 = vld [vmem:[%s1 + $0x44] sm:$0xf]
    %v213 = vld [vmem:[%s1 + $0x48] sm:$0xf]
    %v214 = vld [vmem:[%s1 + $0x4c] sm:$0xf]
    %v215 = vld [vmem:[%s1 + $0x50] sm:$0xf]
    %v216 = vld [vmem:[%s1 + $0x54] sm:$0xf]
    %v217 = vld [vmem:[%s1 + $0x58] sm:$0xf]
    %v218 = vld [vmem:[%s1 + $0x5c] sm:$0xf]
    %v219 = vld [vmem:[%s1 + $0x60] sm:$0xf]
    %v220 = vld [vmem:[%s1 + $0x64] sm:$0xf]
    %v221 = vld [vmem:[%s1 + $0x68] sm:$0xf]
    %v222 = vld [vmem:[%s1 + $0x6c] sm:$0xf]
    %v223 = vld [vmem:[%s1 + $0x70] sm:$0xf]
    %v224 = vld [vmem:[%s1 + $0x74] sm:$0xf]
    %v225 = vld [vmem:[%s1 + $0x78] sm:$0xf]
    %v226 = vld [vmem:[%s1 + $0x7c] sm:$0xf]
    %v227 = vld [vmem:[%s1 + $0x80] sm:$0xf]
    %v228 = vld [vmem:[%s1 + $0x84] sm:$0xf]
    %v229 = vld [vmem:[%s1 + $0x88] sm:$0xf]
    %v230 = vld [vmem:[%s1 + $0x8c] sm:$0xf]
    %v231 = vld [vmem:[%s1 + $0x90] sm:$0xf]
    %v232 = vld [vmem:[%s1 + $0x94] sm:$0xf]
    %v233 = vld [vmem:[%s1 + $0x98] sm:$0xf]
    %v234 = vld [vmem:[%s1 + $0x9c] sm:$0xf]
    %v235 = vld [vmem:[%s1 + $0xa0] sm:$0xf]
    %v236 = vld [vmem:[%s1 + $0xa4] sm:$0xf]
    %v237 = vld [vmem:[%s1 + $0xa8] sm:$0xf]
    %v238 = vld [vmem:[%s1 + $0xac] sm:$0xf]
    %v239 = vld [vmem:[%s1 + $0xb0] sm:$0xf]
    %v240 = vld [vmem:[%s1 + $0xb4] sm:$0xf]
    %v241 = vld [vmem:[%s1 + $0xb8] sm:$0xf]
    %v242 = vld [vmem:[%s1 + $0xbc] sm:$0xf]
    %v243 = vld [vmem:[%s1 + $0xc0] sm:$0xf]
    %v244 = vld [vmem:[%s1 + $0xc4] sm:$0xf]
    %v245 = vld [vmem:[%s1 + $0xc8] sm:$0xf]
    %v246 = vld [vmem:[%s1 + $0xcc] sm:$0xf]
    %v247 = vld [vmem:[%s1 + $0xd0] sm:$0xf]
    %v248 = vld [vmem:[%s1 + $0xd4] sm:$0xf]
    %v249 = vld [vmem:[%s1 + $0xd8] sm:$0xf]
    %v250 = vld [vmem:[%s1 + $0xdc] sm:$0xf]
    %v251 = vld [vmem:[%s1 + $0xe0] sm:$0xf]
    %v252 = vld [vmem:[%s1 + $0xe4] sm:$0xf]
    %v253 = vld [vmem:[%s1 + $0xe8] sm:$0xf]
    %v254 = vld [vmem:[%s1 + $0xec] sm:$0xf]
    %v255 = vld [vmem:[%s1 + $0xf0] sm:$0xf]
    %v256 = vld [vmem:[%s1 + $0xf4] sm:$0xf]
    %v257 = vld [vmem:[%s1 + $0xf8] sm:$0xf]
    %v258 = vld [vmem:[%s1 + $0xfc] sm:$0xf]
    %v259 = vld [vmem:[%s1 + $0x100] sm:$0xf]
    %v260 = vld [vmem:[%s1 + $0x104] sm:$0xf]
    %v261 = vld [vmem:[%s1 + $0x108] sm:$0xf]
    %v262 = vld [vmem:[%s1 + $0x10c] sm:$0xf]
    %v263 = vld [vmem:[%s1 + $0x110] sm:$0xf]
    %v264 = vld [vmem:[%s1 + $0x114] sm:$0xf]
    %v265 = vld [vmem:[%s1 + $0x118] sm:$0xf]
    %v266 = vld [vmem:[%s1 + $0x11c] sm:$0xf]
    %v267 = vld [vmem:[%s1 + $0x120] sm:$0xf]
    %v268 = vld [vmem:[%s1 + $0x124] sm:$0xf]
    %v269 = vld [vmem:[%s1 + $0x128] sm:$0xf]
    %v270 = vld [vmem:[%s1 + $0x12c] sm:$0xf]
    %v271 = vld [vmem:[%s1 + $0x130] sm:$0xf]
    %v272 = vld [vmem:[%s1 + $0x134] sm:$0xf]
    %v273 = vld [vmem:[%s1 + $0x138] sm:$0xf]
    %v274 = vld [vmem:[%s1 + $0x13c] sm:$0xf]
    %v275 = vld [vmem:[%s1 + $0x140] sm:$0xf]
    %v276 = vld [vmem:[%s1 + $0x144] sm:$0xf]
    %v277 = vld [vmem:[%s1 + $0x148] sm:$0xf]
    %v278 = vld [vmem:[%s1 + $0x14c] sm:$0xf]
    %v279 = vld [vmem:[%s1 + $0x150] sm:$0xf]
    %v280 = vld [vmem:[%s1 + $0x154] sm:$0xf]
    %v281 = vld [vmem:[%s1 + $0x158] sm:$0xf]
    %v282 = vld [vmem:[%s1 + $0x15c] sm:$0xf]
    %v283 = vld [vmem:[%s1 + $0x160] sm:$0xf]
    %v284 = vld [vmem:[%s1 + $0x164] sm:$0xf]
    %v285 = vld [vmem:[%s1 + $0x168] sm:$0xf]
    %v286 = vld [vmem:[%s1 + $0x16c] sm:$0xf]
    %v287 = vld [vmem:[%s1 + $0x170] sm:$0xf]
    %v288 = vld [vmem:[%s1 + $0x174] sm:$0xf]
    %v289 = vld [vmem:[%s1 + $0x178] sm:$0xf]
    %v290 = vld [vmem:[%s1 + $0x17c] sm:$0xf]
    %v291 = vld [vmem:[%s2] sm:$0x1]
    %v293 = vlaneseq
    %v294 = vshrl.u32 %v293, 7
    %v295 = vsub.s32 0, %v294
    %v296 = vrot.slane %v291, %v295
    %v394 = vunpack.c.l.b16 %v195
    %v395 = vunpack.c.l.b16 %v196
    %v396 = vunpack.c.l.b16 %v197
    %v397 = vunpack.c.l.b16 %v198
    %v398 = vunpack.c.l.b16 %v199
    %v399 = vunpack.c.l.b16 %v200
    %v400 = vunpack.c.l.b16 %v201
    %v401 = vunpack.c.l.b16 %v202
    %v402 = vunpack.c.l.b16 %v203
    %v403 = vunpack.c.l.b16 %v204
    %v404 = vunpack.c.l.b16 %v205
    %v405 = vunpack.c.l.b16 %v206
    %v406 = vunpack.c.l.b16 %v207
    %v407 = vunpack.c.l.b16 %v208
    %v408 = vunpack.c.l.b16 %v209
    %v409 = vunpack.c.l.b16 %v210
    %v410 = vunpack.c.l.b16 %v211
    %v411 = vunpack.c.l.b16 %v212
    %v412 = vunpack.c.l.b16 %v213
    %v413 = vunpack.c.l.b16 %v214
    %v414 = vunpack.c.l.b16 %v215
    %v415 = vunpack.c.l.b16 %v216
    %v416 = vunpack.c.l.b16 %v217
    %v417 = vunpack.c.l.b16 %v218
    %v418 = vunpack.c.l.b16 %v219
    %v419 = vunpack.c.l.b16 %v220
    %v420 = vunpack.c.l.b16 %v221
    %v421 = vunpack.c.l.b16 %v222
    %v422 = vunpack.c.l.b16 %v223
    %v423 = vunpack.c.l.b16 %v224
    %v424 = vunpack.c.l.b16 %v225
    %v425 = vunpack.c.l.b16 %v226
    %v426 = vunpack.c.l.b16 %v227
    %v427 = vunpack.c.l.b16 %v228
    %v428 = vunpack.c.l.b16 %v229
    %v429 = vunpack.c.l.b16 %v230
    %v430 = vunpack.c.l.b16 %v231
    %v431 = vunpack.c.l.b16 %v232
    %v432 = vunpack.c.l.b16 %v233
    %v433 = vunpack.c.l.b16 %v234
    %v434 = vunpack.c.l.b16 %v235
    %v435 = vunpack.c.l.b16 %v236
    %v436 = vunpack.c.l.b16 %v237
    %v437 = vunpack.c.l.b16 %v238
    %v438 = vunpack.c.l.b16 %v239
    %v439 = vunpack.c.l.b16 %v240
    %v440 = vunpack.c.l.b16 %v241
    %v441 = vunpack.c.l.b16 %v242
    %v442 = vunpack.c.l.b16 %v243
    %v443 = vunpack.c.l.b16 %v244
    %v444 = vunpack.c.l.b16 %v245
    %v445 = vunpack.c.l.b16 %v246
    %v446 = vunpack.c.l.b16 %v247
    %v447 = vunpack.c.l.b16 %v248
    %v448 = vunpack.c.l.b16 %v249
    %v449 = vunpack.c.l.b16 %v250
    %v450 = vunpack.c.l.b16 %v251
    %v451 = vunpack.c.l.b16 %v252
    %v452 = vunpack.c.l.b16 %v253
    %v453 = vunpack.c.l.b16 %v254
    %v454 = vunpack.c.l.b16 %v255
    %v455 = vunpack.c.l.b16 %v256
    %v456 = vunpack.c.l.b16 %v257
    %v457 = vunpack.c.l.b16 %v258
    %v458 = vunpack.c.l.b16 %v259
    %v459 = vunpack.c.l.b16 %v260
    %v460 = vunpack.c.l.b16 %v261
    %v461 = vunpack.c.l.b16 %v262
    %v462 = vunpack.c.l.b16 %v263
    %v463 = vunpack.c.l.b16 %v264
    %v464 = vunpack.c.l.b16 %v265
    %v465 = vunpack.c.l.b16 %v266
    %v466 = vunpack.c.l.b16 %v267
    %v467 = vunpack.c.l.b16 %v268
    %v468 = vunpack.c.l.b16 %v269
    %v469 = vunpack.c.l.b16 %v270
    %v470 = vunpack.c.l.b16 %v271
    %v471 = vunpack.c.l.b16 %v272
    %v472 = vunpack.c.l.b16 %v273
    %v473 = vunpack.c.l.b16 %v274
    %v474 = vunpack.c.l.b16 %v275
    %v475 = vunpack.c.l.b16 %v276
    %v476 = vunpack.c.l.b16 %v277
    %v477 = vunpack.c.l.b16 %v278
    %v478 = vunpack.c.l.b16 %v279
    %v479 = vunpack.c.l.b16 %v280
    %v480 = vunpack.c.l.b16 %v281
    %v481 = vunpack.c.l.b16 %v282
    %v482 = vunpack.c.l.b16 %v283
    %v483 = vunpack.c.l.b16 %v284
    %v484 = vunpack.c.l.b16 %v285
    %v485 = vunpack.c.l.b16 %v286
    %v486 = vunpack.c.l.b16 %v287
    %v487 = vunpack.c.l.b16 %v288
    %v488 = vunpack.c.l.b16 %v289
    %v489 = vunpack.c.l.b16 %v290
    %v490 = vpack.c.b16 %v395, %v394
    %v491 = vpack.c.b16 %v397, %v396
    %v492 = vpack.c.b16 %v399, %v398
    %v493 = vpack.c.b16 %v401, %v400
    %v494 = vpack.c.b16 %v403, %v402
    %v495 = vpack.c.b16 %v405, %v404
    %v496 = vpack.c.b16 %v407, %v406
    %v497 = vpack.c.b16 %v409, %v408
    %v498 = vpack.c.b16 %v411, %v410
    %v499 = vpack.c.b16 %v413, %v412
    %v500 = vpack.c.b16 %v415, %v414
    %v501 = vpack.c.b16 %v417, %v416
    %v502 = vpack.c.b16 %v419, %v418
    %v503 = vpack.c.b16 %v421, %v420
    %v504 = vpack.c.b16 %v423, %v422
    %v505 = vpack.c.b16 %v425, %v424
    %v506 = vpack.c.b16 %v427, %v426
    %v507 = vpack.c.b16 %v429, %v428
    %v508 = vpack.c.b16 %v431, %v430
    %v509 = vpack.c.b16 %v433, %v432
    %v510 = vpack.c.b16 %v435, %v434
    %v511 = vpack.c.b16 %v437, %v436
    %v512 = vpack.c.b16 %v439, %v438
    %v513 = vpack.c.b16 %v441, %v440
    %v514 = vpack.c.b16 %v443, %v442
    %v515 = vpack.c.b16 %v445, %v444
    %v516 = vpack.c.b16 %v447, %v446
    %v517 = vpack.c.b16 %v449, %v448
    %v518 = vpack.c.b16 %v451, %v450
    %v519 = vpack.c.b16 %v453, %v452
    %v520 = vpack.c.b16 %v455, %v454
    %v521 = vpack.c.b16 %v457, %v456
    %v522 = vpack.c.b16 %v459, %v458
    %v523 = vpack.c.b16 %v461, %v460
    %v524 = vpack.c.b16 %v463, %v462
    %v525 = vpack.c.b16 %v465, %v464
    %v526 = vpack.c.b16 %v467, %v466
    %v527 = vpack.c.b16 %v469, %v468
    %v528 = vpack.c.b16 %v471, %v470
    %v529 = vpack.c.b16 %v473, %v472
    %v530 = vpack.c.b16 %v475, %v474
    %v531 = vpack.c.b16 %v477, %v476
    %v532 = vpack.c.b16 %v479, %v478
    %v533 = vpack.c.b16 %v481, %v480
    %v534 = vpack.c.b16 %v483, %v482
    %v535 = vpack.c.b16 %v485, %v484
    %v536 = vpack.c.b16 %v487, %v486
    %v537 = vpack.c.b16 %v489, %v488
    %586 = vmatprep.subr.bf16.mxu0 0
    %587 = vmatpush1.bf16.msra.mxu0 %v490
    %588 = vmatprep.subr.bf16.mxu0 0
    %589 = vmatpush1.bf16.msra.mxu0 %v491
    %590 = vmatprep.subr.bf16.mxu0 0
    %591 = vmatpush1.bf16.msra.mxu0 %v492
    %592 = vmatprep.subr.bf16.mxu0 0
    %593 = vmatpush1.bf16.msra.mxu0 %v493
    %594 = vmatprep.subr.bf16.mxu0 0
    %595 = vmatpush1.bf16.msra.mxu0 %v494
    %596 = vmatprep.subr.bf16.mxu0 0
    %597 = vmatpush1.bf16.msra.mxu0 %v495
    %598 = vmatprep.subr.bf16.mxu0 0
    %599 = vmatpush1.bf16.msra.mxu0 %v496
    %600 = vmatprep.subr.bf16.mxu0 0
    %601 = vmatpush1.bf16.msra.mxu0 %v497
    %602 = vmatprep.subr.bf16.mxu0 0
    %603 = vmatpush1.bf16.msra.mxu0 %v498
    %604 = vmatprep.subr.bf16.mxu0 0
    %605 = vmatpush1.bf16.msra.mxu0 %v499
    %606 = vmatprep.subr.bf16.mxu0 0
    %607 = vmatpush1.bf16.msra.mxu0 %v500
    %608 = vmatprep.subr.bf16.mxu0 0
    %609 = vmatpush1.bf16.msra.mxu0 %v501
    %610 = vmatprep.subr.bf16.mxu0 0
    %611 = vmatpush1.bf16.msra.mxu0 %v502
    %612 = vmatprep.subr.bf16.mxu0 0
    %613 = vmatpush1.bf16.msra.mxu0 %v503
    %614 = vmatprep.subr.bf16.mxu0 0
    %615 = vmatpush1.bf16.msra.mxu0 %v504
    %616 = vmatprep.subr.bf16.mxu0 0
    %617 = vmatpush1.bf16.msra.mxu0 %v505
    %618 = vmatprep.mubr.bf16.mxu0 %v190
    %619 = vmatmul.mubr.bf16.gmra.mrb[0].mxu0 %v189
    %v620 = vpop.f32.mrb[0].mxu0
    %v621 = vadd.f32 %v296, %v620
    %v622 = vpop.f32.mrb[0].mxu0
    %v623 = vpop.f32.mrb[0].mxu0
    %v624 = vpop.f32.mrb[0].mxu0
    %625 = vdwg.mxu0
    %626 = vmatprep.subr.bf16.mxu0 0
    %627 = vmatpush1.bf16.msra.mxu0 %v506
    %628 = vmatprep.subr.bf16.mxu0 0
    %629 = vmatpush1.bf16.msra.mxu0 %v507
    %630 = vmatprep.subr.bf16.mxu0 0
    %631 = vmatpush1.bf16.msra.mxu0 %v508
    %632 = vmatprep.subr.bf16.mxu0 0
    %633 = vmatpush1.bf16.msra.mxu0 %v509
    %634 = vmatprep.subr.bf16.mxu0 0
    %635 = vmatpush1.bf16.msra.mxu0 %v510
    %636 = vmatprep.subr.bf16.mxu0 0
    %637 = vmatpush1.bf16.msra.mxu0 %v511
    %638 = vmatprep.subr.bf16.mxu0 0
    %639 = vmatpush1.bf16.msra.mxu0 %v512
    %640 = vmatprep.subr.bf16.mxu0 0
    %641 = vmatpush1.bf16.msra.mxu0 %v513
    %642 = vmatprep.subr.bf16.mxu0 0
    %643 = vmatpush1.bf16.msra.mxu0 %v514
    %644 = vmatprep.subr.bf16.mxu0 0
    %645 = vmatpush1.bf16.msra.mxu0 %v515
    %646 = vmatprep.subr.bf16.mxu0 0
    %647 = vmatpush1.bf16.msra.mxu0 %v516
    %648 = vmatprep.subr.bf16.mxu0 0
    %649 = vmatpush1.bf16.msra.mxu0 %v517
    %650 = vmatprep.subr.bf16.mxu0 0
    %651 = vmatpush1.bf16.msra.mxu0 %v518
    %652 = vmatprep.subr.bf16.mxu0 0
    %653 = vmatpush1.bf16.msra.mxu0 %v519
    %654 = vmatprep.subr.bf16.mxu0 0
    %655 = vmatpush1.bf16.msra.mxu0 %v520
    %656 = vmatprep.subr.bf16.mxu0 0
    %657 = vmatpush1.bf16.msra.mxu0 %v521
    %658 = vmatprep.mubr.bf16.mxu0 %v192
    %659 = vmatmul.mubr.bf16.gmra.mrb[0].mxu0 %v191
    %v660 = vpop.f32.mrb[0].mxu0
    %v661 = vadd.f32 %v621, %v660
    %v662 = vpop.f32.mrb[0].mxu0
    %v663 = vpop.f32.mrb[0].mxu0
    %v664 = vpop.f32.mrb[0].mxu0
    %665 = vdwg.mxu0
    %666 = vmatprep.subr.bf16.mxu0 0
    %667 = vmatpush1.bf16.msra.mxu0 %v522
    %668 = vmatprep.subr.bf16.mxu0 0
    %669 = vmatpush1.bf16.msra.mxu0 %v523
    %670 = vmatprep.subr.bf16.mxu0 0
    %671 = vmatpush1.bf16.msra.mxu0 %v524
    %672 = vmatprep.subr.bf16.mxu0 0
    %673 = vmatpush1.bf16.msra.mxu0 %v525
    %674 = vmatprep.subr.bf16.mxu0 0
    %675 = vmatpush1.bf16.msra.mxu0 %v526
    %676 = vmatprep.subr.bf16.mxu0 0
    %677 = vmatpush1.bf16.msra.mxu0 %v527
    %678 = vmatprep.subr.bf16.mxu0 0
    %679 = vmatpush1.bf16.msra.mxu0 %v528
    %680 = vmatprep.subr.bf16.mxu0 0
    %681 = vmatpush1.bf16.msra.mxu0 %v529
    %682 = vmatprep.subr.bf16.mxu0 0
    %683 = vmatpush1.bf16.msra.mxu0 %v530
    %684 = vmatprep.subr.bf16.mxu0 0
    %685 = vmatpush1.bf16.msra.mxu0 %v531
    %686 = vmatprep.subr.bf16.mxu0 0
    %687 = vmatpush1.bf16.msra.mxu0 %v532
    %688 = vmatprep.subr.bf16.mxu0 0
    %689 = vmatpush1.bf16.msra.mxu0 %v533
    %690 = vmatprep.subr.bf16.mxu0 0
    %691 = vmatpush1.bf16.msra.mxu0 %v534
    %692 = vmatprep.subr.bf16.mxu0 0
    %693 = vmatpush1.bf16.msra.mxu0 %v535
    %694 = vmatprep.subr.bf16.mxu0 0
    %695 = vmatpush1.bf16.msra.mxu0 %v536
    %696 = vmatprep.subr.bf16.mxu0 0
    %697 = vmatpush1.bf16.msra.mxu0 %v537
    %698 = vmatprep.mubr.bf16.mxu0 %v194
    %699 = vmatmul.mubr.bf16.gmra.mrb[0].mxu0 %v193
    %v700 = vpop.f32.mrb[0].mxu0
    %v701 = vadd.f32 %v661, %v700
    %v702 = vpop.f32.mrb[0].mxu0
    %v703 = vpop.f32.mrb[0].mxu0
    %v704 = vpop.f32.mrb[0].mxu0
    %705 = vdwg.mxu0
    %706 = vst [vmem:[#allocation2] sm:$0xff] 0.0
    %707 = vst [vmem:[#allocation2 + $0x8] sm:$0xff] 0.0
    %v708 = vld [vmem:[#allocation4] sm:$0x1]
    %v709 = vld [vmem:[%s4] sm:$0x1]
    %v710 = vadd.f32 %v708, %v709
    %711 = vst [vmem:[#allocation2] sm:$0x1] %v710
    %v712 = vld [vmem:[%s4 + $0x1] sm:$0xf]
    %v713 = vadd.f32 %v701, %v712
    %714 = vst [vmem:[#allocation2 + $0x1] sm:$0xf] %v713
    %v715 = vld [vmem:[#allocation4] sm:$0x1]
    %v716 = vld [vmem:[%s4] sm:$0x1]
    %v717 = vadd.f32 %v715, %v716
    %718 = vst [vmem:[#allocation2 + $0x8] sm:$0x1] %v717
    %v719 = vld [vmem:[%s4 + $0x1] sm:$0xf]
    %v721 = vrot.slane %v719, 4
    %v723 = vadd.f32 %v701, %v721
    %724 = vst [vmem:[#allocation2 + $0x5] sm:$0xf0] %v723
    %v725 = vld [vmem:[#allocation2] sm:$0xff]
    %v726 = vld [vmem:[#allocation2 + $0x8] sm:$0xff]
    %v727 = vlaneseq
    %v728 = vand.u32 %v727, 127
    %vm729 = vcmp.lt.s32.totalorder %v728, 5
    %v730 = vsel %vm729, 0.0, -1e+30
    %v731 = vld [vmem:[%s5] sm:$0x1]
    %v732 = vld [vmem:[#allocation6] sm:$0x1]
    %733 = vadd.xlane.f32.xlu0 %v725
    %v734 = vpop.xlane.xlu0 %733
    %735 = vadd.xlane.f32.xlu0 %v726
    %v736 = vpop.xlane.xlu0 %735
    %v737 = vrcp.pop 128.0
    %v738 = vmul.f32 %v734, %v737
    %v739 = vmul.f32 %v736, %v737
    %v740 = vsub.f32 %v725, %v738
    %v741 = vsub.f32 %v726, %v739
    %v742 = vmul.f32 %v740, %v740
    %v743 = vmul.f32 %v741, %v741
    %744 = vadd.xlane.f32.xlu0 %v742
    %v745 = vpop.xlane.xlu0 %744
    %746 = vadd.xlane.f32.xlu0 %v743
    %v747 = vpop.xlane.xlu0 %746
    %v748 = vmul.f32 %v745, %v737
    %v749 = vmul.f32 %v747, %v737
    %v750 = vadd.f32 %v748, 1e-06
    %v751 = vadd.f32 %v749, 1e-06
    %v752 = vrsqrt.pop %v750
    %v753 = vrsqrt.pop %v751
    %v754 = vmul.f32 %v740, %v752
    %v755 = vmul.f32 %v741, %v753
    %v757 = vlaneseq
    %v758 = vshrl.u32 %v757, 7
    %v759 = vsub.s32 0, %v758
    %v760 = vrot.slane %v731, %v759
    %v762 = vmul.f32 %v754, %v760
    %v763 = vmul.f32 %v755, %v760
    %v765 = vlaneseq
    %v766 = vshrl.u32 %v765, 7
    %v767 = vsub.s32 0, %v766
    %v768 = vrot.slane %v732, %v767
    %v770 = vadd.f32 %v762, %v768
    %v771 = vadd.f32 %v763, %v768
    %v772 = vpack.c.bf16 %v771, %v770
    %v773 = vld [vmem:[%s7] sm:$0xff]
    %v774 = vld [vmem:[%s7 + $0x8] sm:$0xf]
    %v775 = vld [vmem:[%s7 + $0xc] sm:$0xff]
    %v776 = vld [vmem:[%s7 + $0x14] sm:$0xf]
    %v777 = vld [vmem:[%s7 + $0x18] sm:$0xff]
    %v778 = vld [vmem:[%s7 + $0x20] sm:$0xf]
    %v779 = vld [vmem:[%s7 + $0x24] sm:$0xff]
    %v780 = vld [vmem:[%s7 + $0x2c] sm:$0xf]
    %v781 = vld [vmem:[%s7 + $0x30] sm:$0xff]
    %v782 = vld [vmem:[%s7 + $0x38] sm:$0xf]
    %v783 = vld [vmem:[%s7 + $0x3c] sm:$0xff]
    %v784 = vld [vmem:[%s7 + $0x44] sm:$0xf]
    %v785 = vld [vmem:[%s7 + $0x48] sm:$0xff]
    %v786 = vld [vmem:[%s7 + $0x50] sm:$0xf]
    %v787 = vld [vmem:[%s7 + $0x54] sm:$0xff]
    %v788 = vld [vmem:[%s7 + $0x5c] sm:$0xf]
    %v789 = vld [vmem:[%s7 + $0x60] sm:$0xff]
    %v790 = vld [vmem:[%s7 + $0x68] sm:$0xf]
    %v791 = vld [vmem:[%s7 + $0x6c] sm:$0xff]
    %v792 = vld [vmem:[%s7 + $0x74] sm:$0xf]
    %v793 = vld [vmem:[%s7 + $0x78] sm:$0xff]
    %v794 = vld [vmem:[%s7 + $0x80] sm:$0xf]
    %v795 = vld [vmem:[%s7 + $0x84] sm:$0xff]
    %v796 = vld [vmem:[%s7 + $0x8c] sm:$0xf]
    %v797 = vld [vmem:[%s7 + $0x90] sm:$0xff]
    %v798 = vld [vmem:[%s7 + $0x98] sm:$0xf]
    %v799 = vld [vmem:[%s7 + $0x9c] sm:$0xff]
    %v800 = vld [vmem:[%s7 + $0xa4] sm:$0xf]
    %v801 = vld [vmem:[%s7 + $0xa8] sm:$0xff]
    %v802 = vld [vmem:[%s7 + $0xb0] sm:$0xf]
    %v803 = vld [vmem:[%s7 + $0xb4] sm:$0xff]
    %v804 = vld [vmem:[%s7 + $0xbc] sm:$0xf]
    %v805 = vld [vmem:[#allocation8] sm:$0x7]
    %v807 = vlaneseq
    %v808 = vshrl.u32 %v807, 7
    %v809 = vsub.s32 0, %v808
    %v810 = vrot.slane %v805, %v809
    %v811 = vlaneseq
    %v812 = vshrl.u32 %v811, 7
    %v813 = vsub.s32 1, %v812
    %v814 = vrot.slane %v805, %v813
    %v815 = vlaneseq
    %v816 = vshrl.u32 %v815, 7
    %v817 = vsub.s32 2, %v816
    %v818 = vrot.slane %v805, %v817
    %v854 = vunpack.c.l.b16 %v773
    %v855 = vunpack.c.h.b16 %v773
    %v856 = vunpack.c.l.b16 %v774
    %v857 = vunpack.c.l.b16 %v775
    %v858 = vunpack.c.h.b16 %v775
    %v859 = vunpack.c.l.b16 %v776
    %v860 = vunpack.c.l.b16 %v777
    %v861 = vunpack.c.h.b16 %v777
    %v862 = vunpack.c.l.b16 %v778
    %v863 = vunpack.c.l.b16 %v779
    %v864 = vunpack.c.h.b16 %v779
    %v865 = vunpack.c.l.b16 %v780
    %v866 = vunpack.c.l.b16 %v781
    %v867 = vunpack.c.h.b16 %v781
    %v868 = vunpack.c.l.b16 %v782
    %v869 = vunpack.c.l.b16 %v783
    %v870 = vunpack.c.h.b16 %v783
    %v871 = vunpack.c.l.b16 %v784
    %v872 = vunpack.c.l.b16 %v785
    %v873 = vunpack.c.h.b16 %v785
    %v874 = vunpack.c.l.b16 %v786
    %v875 = vunpack.c.l.b16 %v787
    %v876 = vunpack.c.h.b16 %v787
    %v877 = vunpack.c.l.b16 %v788
    %v878 = vunpack.c.l.b16 %v789
    %v879 = vunpack.c.h.b16 %v789
    %v880 = vunpack.c.l.b16 %v790
    %v881 = vunpack.c.l.b16 %v791
    %v882 = vunpack.c.h.b16 %v791
    %v883 = vunpack.c.l.b16 %v792
    %v884 = vunpack.c.l.b16 %v793
    %v885 = vunpack.c.h.b16 %v793
    %v886 = vunpack.c.l.b16 %v794
    %v887 = vunpack.c.l.b16 %v795
    %v888 = vunpack.c.h.b16 %v795
    %v889 = vunpack.c.l.b16 %v796
    %v890 = vunpack.c.l.b16 %v797
    %v891 = vunpack.c.h.b16 %v797
    %v892 = vunpack.c.l.b16 %v798
    %v893 = vunpack.c.l.b16 %v799
    %v894 = vunpack.c.h.b16 %v799
    %v895 = vunpack.c.l.b16 %v800
    %v896 = vunpack.c.l.b16 %v801
    %v897 = vunpack.c.h.b16 %v801
    %v898 = vunpack.c.l.b16 %v802
    %v899 = vunpack.c.l.b16 %v803
    %v900 = vunpack.c.h.b16 %v803
    %v901 = vunpack.c.l.b16 %v804
    %v902 = vpack.c.b16 %v857, %v854
    %v903 = vpack.c.b16 %v858, %v855
    %v904 = vpack.c.b16 %v859, %v856
    %v905 = vpack.c.b16 %v863, %v860
    %v906 = vpack.c.b16 %v864, %v861
    %v907 = vpack.c.b16 %v865, %v862
    %v908 = vpack.c.b16 %v869, %v866
    %v909 = vpack.c.b16 %v870, %v867
    %v910 = vpack.c.b16 %v871, %v868
    %v911 = vpack.c.b16 %v875, %v872
    %v912 = vpack.c.b16 %v876, %v873
    %v913 = vpack.c.b16 %v877, %v874
    %v914 = vpack.c.b16 %v881, %v878
    %v915 = vpack.c.b16 %v882, %v879
    %v916 = vpack.c.b16 %v883, %v880
    %v917 = vpack.c.b16 %v887, %v884
    %v918 = vpack.c.b16 %v888, %v885
    %v919 = vpack.c.b16 %v889, %v886
    %v920 = vpack.c.b16 %v893, %v890
    %v921 = vpack.c.b16 %v894, %v891
    %v922 = vpack.c.b16 %v895, %v892
    %v923 = vpack.c.b16 %v899, %v896
    %v924 = vpack.c.b16 %v900, %v897
    %v925 = vpack.c.b16 %v901, %v898
    %950 = vmatprep.subr.bf16.mxu0 %v903
    %951 = vmatpush1.bf16.msra.mxu0 %v902
    %952 = vmatprep.subr.bf16.mxu0 %v906
    %953 = vmatpush1.bf16.msra.mxu0 %v905
    %954 = vmatprep.subr.bf16.mxu0 %v909
    %955 = vmatpush1.bf16.msra.mxu0 %v908
    %956 = vmatprep.subr.bf16.mxu0 %v912
    %957 = vmatpush1.bf16.msra.mxu0 %v911
    %958 = vmatprep.subr.bf16.mxu0 %v915
    %959 = vmatpush1.bf16.msra.mxu0 %v914
    %960 = vmatprep.subr.bf16.mxu0 %v918
    %961 = vmatpush1.bf16.msra.mxu0 %v917
    %962 = vmatprep.subr.bf16.mxu0 %v921
    %963 = vmatpush1.bf16.msra.mxu0 %v920
    %964 = vmatprep.subr.bf16.mxu0 %v924
    %965 = vmatpush1.bf16.msra.mxu0 %v923
    %966 = vmatprep.subr.bf16.mxu0 0
    %967 = vmatpush1.bf16.msra.mxu0 0
    %968 = vmatprep.subr.bf16.mxu0 0
    %969 = vmatpush1.bf16.msra.mxu0 0
    %970 = vmatprep.subr.bf16.mxu0 0
    %971 = vmatpush1.bf16.msra.mxu0 0
    %972 = vmatprep.subr.bf16.mxu0 0
    %973 = vmatpush1.bf16.msra.mxu0 0
    %974 = vmatprep.subr.bf16.mxu0 0
    %975 = vmatpush1.bf16.msra.mxu0 0
    %976 = vmatprep.subr.bf16.mxu0 0
    %977 = vmatpush1.bf16.msra.mxu0 0
    %978 = vmatprep.subr.bf16.mxu0 0
    %979 = vmatpush1.bf16.msra.mxu0 0
    %980 = vmatprep.subr.bf16.mxu0 0
    %981 = vmatpush1.bf16.msra.mxu0 0
    %982 = vmatprep.mubr.bf16.mxu0 0
    %983 = vmatmul.mubr.bf16.gmra.mrb[0].mxu0 %v772
    %v984 = vpop.f32.mrb[0].mxu0
    %v985 = vadd.f32 %v810, %v984
    %v986 = vpop.f32.mrb[0].mxu0
    %v987 = vadd.f32 %v814, %v986
    %v988 = vpop.f32.mrb[0].mxu0
    %v989 = vadd.f32 %v810, %v988
    %v990 = vpop.f32.mrb[0].mxu0
    %v991 = vadd.f32 %v814, %v990
    %992 = vdwg.mxu0
    %993 = vmatprep.subr.bf16.mxu0 0
    %994 = vmatpush1.bf16.msra.mxu0 %v904
    %995 = vmatprep.subr.bf16.mxu0 0
    %996 = vmatpush1.bf16.msra.mxu0 %v907
    %997 = vmatprep.subr.bf16.mxu0 0
    %998 = vmatpush1.bf16.msra.mxu0 %v910
    %999 = vmatprep.subr.bf16.mxu0 0
    %1000 = vmatpush1.bf16.msra.mxu0 %v913
    %1001 = vmatprep.subr.bf16.mxu0 0
    %1002 = vmatpush1.bf16.msra.mxu0 %v916
    %1003 = vmatprep.subr.bf16.mxu0 0
    %1004 = vmatpush1.bf16.msra.mxu0 %v919
    %1005 = vmatprep.subr.bf16.mxu0 0
    %1006 = vmatpush1.bf16.msra.mxu0 %v922
    %1007 = vmatprep.subr.bf16.mxu0 0
    %1008 = vmatpush1.bf16.msra.mxu0 %v925
    %1009 = vmatprep.subr.bf16.mxu0 0
    %1010 = vmatpush1.bf16.msra.mxu0 0
    %1011 = vmatprep.subr.bf16.mxu0 0
    %1012 = vmatpush1.bf16.msra.mxu0 0
    %1013 = vmatprep.subr.bf16.mxu0 0
    %1014 = vmatpush1.bf16.msra.mxu0 0
    %1015 = vmatprep.subr.bf16.mxu0 0
    %1016 = vmatpush1.bf16.msra.mxu0 0
    %1017 = vmatprep.subr.bf16.mxu0 0
    %1018 = vmatpush1.bf16.msra.mxu0 0
    %1019 = vmatprep.subr.bf16.mxu0 0
    %1020 = vmatpush1.bf16.msra.mxu0 0
    %1021 = vmatprep.subr.bf16.mxu0 0
    %1022 = vmatpush1.bf16.msra.mxu0 0
    %1023 = vmatprep.subr.bf16.mxu0 0
    %1024 = vmatpush1.bf16.msra.mxu0 0
    %1025 = vmatprep.mubr.bf16.mxu0 0
    %1026 = vmatmul.mubr.bf16.gmra.mrb[0].mxu0 %v772
    %v1027 = vpop.f32.mrb[0].mxu0
    %v1028 = vadd.f32 %v818, %v1027
    %v1029 = vpop.f32.mrb[0].mxu0
    %v1030 = vpop.f32.mrb[0].mxu0
    %v1031 = vadd.f32 %v818, %v1030
    %v1032 = vpop.f32.mrb[0].mxu0
    %1033 = vdwg.mxu0
    %v1034 = vpack.c.bf16 %v985, %v985
    %v1035 = vpack.c.bf16 %v987, %v987
    %v1036 = vpack.c.bf16 %v1028, %v1028
    %vm1037 = vcmask 261120
    %v1039 = vsel %vm1037, %v1034, 0
    %v1042 = vsel %vm1037, %v1035, 0
    %1044 = vmatprep.subr.bf16.mxu0 0
    %1045 = vmatpush1.bf16.xpose.msra.mxu0 %v1042
    %1046 = vmatprep.subr.bf16.mxu0 0
    %1047 = vmatpush1.bf16.xpose.msra.mxu0 0
    %1048 = vmatprep.subr.bf16.mxu0 0
    %1049 = vmatpush1.bf16.xpose.msra.mxu0 0
    %1050 = vmatprep.subr.bf16.mxu0 0
    %1051 = vmatpush1.bf16.xpose.msra.mxu0 0
    %1052 = vmatprep.subr.bf16.mxu0 0
    %1053 = vmatpush1.bf16.xpose.msra.mxu0 0
    %1054 = vmatprep.subr.bf16.mxu0 0
    %1055 = vmatpush1.bf16.xpose.msra.mxu0 0
    %1056 = vmatprep.subr.bf16.mxu0 0
    %1057 = vmatpush1.bf16.xpose.msra.mxu0 0
    %1058 = vmatprep.subr.bf16.mxu0 0
    %1059 = vmatpush1.bf16.xpose.msra.mxu0 0
    %1060 = vmatprep.subr.bf16.mxu0 0
    %1061 = vmatpush1.bf16.xpose.msra.mxu0 0
    %1062 = vmatprep.subr.bf16.mxu0 0
    %1063 = vmatpush1.bf16.xpose.msra.mxu0 0
    %1064 = vmatprep.subr.bf16.mxu0 0
    %1065 = vmatpush1.bf16.xpose.msra.mxu0 0
    %1066 = vmatprep.subr.bf16.mxu0 0
    %1067 = vmatpush1.bf16.xpose.msra.mxu0 0
    %1068 = vmatprep.subr.bf16.mxu0 0
    %1069 = vmatpush1.bf16.xpose.msra.mxu0 0
    %1070 = vmatprep.subr.bf16.mxu0 0
    %1071 = vmatpush1.bf16.xpose.msra.mxu0 0
    %1072 = vmatprep.subr.bf16.mxu0 0
    %1073 = vmatpush1.bf16.xpose.msra.mxu0 0
    %1074 = vmatprep.subr.bf16.mxu0 0
    %1075 = vmatpush1.bf16.xpose.msra.mxu0 0
    %1076 = vmatprep.mubr.bf16.mxu0 0
    %1077 = vmatmul.mubr.bf16.gmra.mrb[0].mxu0 %v1039
    %v1078 = vpop.f32.mrb[0].mxu0
    %v1079 = vadd.f32 0.0, %v1078
    %v1080 = vpop.f32.mrb[0].mxu0
    %v1081 = vpop.f32.mrb[0].mxu0
    %v1082 = vpop.f32.mrb[0].mxu0
    %1083 = vdwg.mxu0
    %v1084 = vmul.f32 %v1079, 0.17677669
    %v1085 = vadd.f32 %v1084, %v730
    %vm1086 = vcmask 64512
    %v1087 = vsel %vm1086, %v1085, -inf
    %1088 = vmax.xlane.f32.xlu0 %v1087
    %v1089 = vpop.xlane.xlu0 %1088
    %v1090 = vsub.f32 %v1085, %v1089
    %v1091 = vmul.f32 %v1090, 1.442695
    %v1092 = vpow.pop %v1091
    %v1093 = vsel %vm1086, %v1092, 0.0
    %1094 = vadd.xlane.f32.xlu0 %v1093
    %v1095 = vpop.xlane.xlu0 %1094
    %v1096 = vrcp.pop %v1095
    %v1097 = vmul.f32 %v1092, %v1096
    %v1098 = vpack.c.bf16 %v1097, %v1097
    %v1100 = vsel %vm1086, %v1098, 0
    %vm1102 = vcmask 1043456
    %v1104 = vsel %vm1102, %v1036, 0
    %1106 = vmatprep.subr.bf16.mxu0 0
    %1107 = vmatpush1.bf16.msra.mxu0 %v1104
    %1108 = vmatprep.subr.bf16.mxu0 0
    %1109 = vmatpush1.bf16.msra.mxu0 0
    %1110 = vmatprep.subr.bf16.mxu0 0
    %1111 = vmatpush1.bf16.msra.mxu0 0
    %1112 = vmatprep.subr.bf16.mxu0 0
    %1113 = vmatpush1.bf16.msra.mxu0 0
    %1114 = vmatprep.subr.bf16.mxu0 0
    %1115 = vmatpush1.bf16.msra.mxu0 0
    %1116 = vmatprep.subr.bf16.mxu0 0
    %1117 = vmatpush1.bf16.msra.mxu0 0
    %1118 = vmatprep.subr.bf16.mxu0 0
    %1119 = vmatpush1.bf16.msra.mxu0 0
    %1120 = vmatprep.subr.bf16.mxu0 0
    %1121 = vmatpush1.bf16.msra.mxu0 0
    %1122 = vmatprep.subr.bf16.mxu0 0
    %1123 = vmatpush1.bf16.msra.mxu0 0
    %1124 = vmatprep.subr.bf16.mxu0 0
    %1125 = vmatpush1.bf16.msra.mxu0 0
    %1126 = vmatprep.subr.bf16.mxu0 0
    %1127 = vmatpush1.bf16.msra.mxu0 0
    %1128 = vmatprep.subr.bf16.mxu0 0
    %1129 = vmatpush1.bf16.msra.mxu0 0
    %1130 = vmatprep.subr.bf16.mxu0 0
    %1131 = vmatpush1.bf16.msra.mxu0 0
    %1132 = vmatprep.subr.bf16.mxu0 0
    %1133 = vmatpush1.bf16.msra.mxu0 0
    %1134 = vmatprep.subr.bf16.mxu0 0
    %1135 = vmatpush1.bf16.msra.mxu0 0
    %1136 = vmatprep.subr.bf16.mxu0 0
    %1137 = vmatpush1.bf16.msra.mxu0 0
    %1138 = vmatprep.mubr.bf16.mxu0 0
    %1139 = vmatmul.mubr.bf16.gmra.mrb[0].mxu0 %v1100
    %v1140 = vpop.f32.mrb[0].mxu0
    %v1141 = vadd.f32 0.0, %v1140
    %v1142 = vpop.f32.mrb[0].mxu0
    %v1143 = vpop.f32.mrb[0].mxu0
    %v1144 = vpop.f32.mrb[0].mxu0
    %1145 = vdwg.mxu0
    %1146 = vst.msk [vmem:[#allocation3] sm:$0xff] %vm1037, %v1141
    %1148 = vrot.lane.b32.xlu0 %v1034, 96
    %v1149 = vpop.permute.xlu0 %1148
    %1151 = vrot.lane.b32.xlu0 %v1035, 96
    %v1152 = vpop.permute.xlu0 %1151
    %v1154 = vsel %vm1037, %v1149, 0
    %v1157 = vsel %vm1037, %v1152, 0
    %1159 = vmatprep.subr.bf16.mxu0 0
    %1160 = vmatpush1.bf16.xpose.msra.mxu0 %v1157
    %1161 = vmatprep.subr.bf16.mxu0 0
    %1162 = vmatpush1.bf16.xpose.msra.mxu0 0
    %1163 = vmatprep.subr.bf16.mxu0 0
    %1164 = vmatpush1.bf16.xpose.msra.mxu0 0
    %1165 = vmatprep.subr.bf16.mxu0 0
    %1166 = vmatpush1.bf16.xpose.msra.mxu0 0
    %1167 = vmatprep.subr.bf16.mxu0 0
    %1168 = vmatpush1.bf16.xpose.msra.mxu0 0
    %1169 = vmatprep.subr.bf16.mxu0 0
    %1170 = vmatpush1.bf16.xpose.msra.mxu0 0
    %1171 = vmatprep.subr.bf16.mxu0 0
    %1172 = vmatpush1.bf16.xpose.msra.mxu0 0
    %1173 = vmatprep.subr.bf16.mxu0 0
    %1174 = vmatpush1.bf16.xpose.msra.mxu0 0
    %1175 = vmatprep.subr.bf16.mxu0 0
    %1176 = vmatpush1.bf16.xpose.msra.mxu0 0
    %1177 = vmatprep.subr.bf16.mxu0 0
    %1178 = vmatpush1.bf16.xpose.msra.mxu0 0
    %1179 = vmatprep.subr.bf16.mxu0 0
    %1180 = vmatpush1.bf16.xpose.msra.mxu0 0
    %1181 = vmatprep.subr.bf16.mxu0 0
    %1182 = vmatpush1.bf16.xpose.msra.mxu0 0
    %1183 = vmatprep.subr.bf16.mxu0 0
    %1184 = vmatpush1.bf16.xpose.msra.mxu0 0
    %1185 = vmatprep.subr.bf16.mxu0 0
    %1186 = vmatpush1.bf16.xpose.msra.mxu0 0
    %1187 = vmatprep.subr.bf16.mxu0 0
    %1188 = vmatpush1.bf16.xpose.msra.mxu0 0
    %1189 = vmatprep.subr.bf16.mxu0 0
    %1190 = vmatpush1.bf16.xpose.msra.mxu0 0
    %1191 = vmatprep.mubr.bf16.mxu0 0
    %1192 = vmatmul.mubr.bf16.gmra.mrb[0].mxu0 %v1154
    %v1193 = vpop.f32.mrb[0].mxu0
    %v1194 = vadd.f32 0.0, %v1193
    %v1195 = vpop.f32.mrb[0].mxu0
    %v1196 = vpop.f32.mrb[0].mxu0
    %v1197 = vpop.f32.mrb[0].mxu0
    %1198 = vdwg.mxu0
    %v1199 = vmul.f32 %v1194, 0.17677669
    %v1200 = vadd.f32 %v1199, %v730
    %v1201 = vsel %vm1086, %v1200, -inf
    %1202 = vmax.xlane.f32.xlu0 %v1201
    %v1203 = vpop.xlane.xlu0 %1202
    %v1204 = vsub.f32 %v1200, %v1203
    %v1205 = vmul.f32 %v1204, 1.442695
    %v1206 = vpow.pop %v1205
    %v1207 = vsel %vm1086, %v1206, 0.0
    %1208 = vadd.xlane.f32.xlu0 %v1207
    %v1209 = vpop.xlane.xlu0 %1208
    %v1210 = vrcp.pop %v1209
    %v1211 = vmul.f32 %v1206, %v1210
    %v1212 = vpack.c.bf16 %v1211, %v1211
    %1214 = vrot.lane.b32.xlu0 %v1036, 96
    %v1215 = vpop.permute.xlu0 %1214
    %v1217 = vsel %vm1086, %v1212, 0
    %v1220 = vsel %vm1102, %v1215, 0
    %1222 = vmatprep.subr.bf16.mxu0 0
    %1223 = vmatpush1.bf16.msra.mxu0 %v1220
    %1224 = vmatprep.subr.bf16.mxu0 0
    %1225 = vmatpush1.bf16.msra.mxu0 0
    %1226 = vmatprep.subr.bf16.mxu0 0
    %1227 = vmatpush1.bf16.msra.mxu0 0
    %1228 = vmatprep.subr.bf16.mxu0 0
    %1229 = vmatpush1.bf16.msra.mxu0 0
    %1230 = vmatprep.subr.bf16.mxu0 0
    %1231 = vmatpush1.bf16.msra.mxu0 0
    %1232 = vmatprep.subr.bf16.mxu0 0
    %1233 = vmatpush1.bf16.msra.mxu0 0
    %1234 = vmatprep.subr.bf16.mxu0 0
    %1235 = vmatpush1.bf16.msra.mxu0 0
    %1236 = vmatprep.subr.bf16.mxu0 0
    %1237 = vmatpush1.bf16.msra.mxu0 0
    %1238 = vmatprep.subr.bf16.mxu0 0
    %1239 = vmatpush1.bf16.msra.mxu0 0
    %1240 = vmatprep.subr.bf16.mxu0 0
    %1241 = vmatpush1.bf16.msra.mxu0 0
    %1242 = vmatprep.subr.bf16.mxu0 0
    %1243 = vmatpush1.bf16.msra.mxu0 0
    %1244 = vmatprep.subr.bf16.mxu0 0
    %1245 = vmatpush1.bf16.msra.mxu0 0
    %1246 = vmatprep.subr.bf16.mxu0 0
    %1247 = vmatpush1.bf16.msra.mxu0 0
    %1248 = vmatprep.subr.bf16.mxu0 0
    %1249 = vmatpush1.bf16.msra.mxu0 0
    %1250 = vmatprep.subr.bf16.mxu0 0
    %1251 = vmatpush1.bf16.msra.mxu0 0
    %1252 = vmatprep.subr.bf16.mxu0 0
    %1253 = vmatpush1.bf16.msra.mxu0 0
    %1254 = vmatprep.mubr.bf16.mxu0 0
    %1255 = vmatmul.mubr.bf16.gmra.mrb[0].mxu0 %v1217
    %v1256 = vpop.f32.mrb[0].mxu0
    %v1257 = vadd.f32 0.0, %v1256
    %v1258 = vpop.f32.mrb[0].mxu0
    %v1259 = vpop.f32.mrb[0].mxu0
    %v1260 = vpop.f32.mrb[0].mxu0
    %1261 = vdwg.mxu0
    %1263 = vrot.lane.b32.xlu0 %v1257, 32
    %v1264 = vpop.permute.xlu0 %1263
    %vm1266 = vcmask 523520
    %1267 = vst.msk [vmem:[#allocation3] sm:$0xff] %vm1266, %v1264
    %1268 = vrot.lane.b32.xlu0 %v1034, 64
    %v1269 = vpop.permute.xlu0 %1268
    %1270 = vrot.lane.b32.xlu0 %v1035, 64
    %v1271 = vpop.permute.xlu0 %1270
    %v1273 = vsel %vm1037, %v1269, 0
    %v1276 = vsel %vm1037, %v1271, 0
    %1278 = vmatprep.subr.bf16.mxu0 0
    %1279 = vmatpush1.bf16.xpose.msra.mxu0 %v1276
    %1280 = vmatprep.subr.bf16.mxu0 0
    %1281 = vmatpush1.bf16.xpose.msra.mxu0 0
    %1282 = vmatprep.subr.bf16.mxu0 0
    %1283 = vmatpush1.bf16.xpose.msra.mxu0 0
    %1284 = vmatprep.subr.bf16.mxu0 0
    %1285 = vmatpush1.bf16.xpose.msra.mxu0 0
    %1286 = vmatprep.subr.bf16.mxu0 0
    %1287 = vmatpush1.bf16.xpose.msra.mxu0 0
    %1288 = vmatprep.subr.bf16.mxu0 0
    %1289 = vmatpush1.bf16.xpose.msra.mxu0 0
    %1290 = vmatprep.subr.bf16.mxu0 0
    %1291 = vmatpush1.bf16.xpose.msra.mxu0 0
    %1292 = vmatprep.subr.bf16.mxu0 0
    %1293 = vmatpush1.bf16.xpose.msra.mxu0 0
    %1294 = vmatprep.subr.bf16.mxu0 0
    %1295 = vmatpush1.bf16.xpose.msra.mxu0 0
    %1296 = vmatprep.subr.bf16.mxu0 0
    %1297 = vmatpush1.bf16.xpose.msra.mxu0 0
    %1298 = vmatprep.subr.bf16.mxu0 0
    %1299 = vmatpush1.bf16.xpose.msra.mxu0 0
    %1300 = vmatprep.subr.bf16.mxu0 0
    %1301 = vmatpush1.bf16.xpose.msra.mxu0 0
    %1302 = vmatprep.subr.bf16.mxu0 0
    %1303 = vmatpush1.bf16.xpose.msra.mxu0 0
    %1304 = vmatprep.subr.bf16.mxu0 0
    %1305 = vmatpush1.bf16.xpose.msra.mxu0 0
    %1306 = vmatprep.subr.bf16.mxu0 0
    %1307 = vmatpush1.bf16.xpose.msra.mxu0 0
    %1308 = vmatprep.subr.bf16.mxu0 0
    %1309 = vmatpush1.bf16.xpose.msra.mxu0 0
    %1310 = vmatprep.mubr.bf16.mxu0 0
    %1311 = vmatmul.mubr.bf16.gmra.mrb[0].mxu0 %v1273
    %v1312 = vpop.f32.mrb[0].mxu0
    %v1313 = vadd.f32 0.0, %v1312
    %v1314 = vpop.f32.mrb[0].mxu0
    %v1315 = vpop.f32.mrb[0].mxu0
    %v1316 = vpop.f32.mrb[0].mxu0
    %1317 = vdwg.mxu0
    %v1318 = vmul.f32 %v1313, 0.17677669
    %v1319 = vadd.f32 %v1318, %v730
    %v1320 = vsel %vm1086, %v1319, -inf
    %1321 = vmax.xlane.f32.xlu0 %v1320
    %v1322 = vpop.xlane.xlu0 %1321
    %v1323 = vsub.f32 %v1319, %v1322
    %v1324 = vmul.f32 %v1323, 1.442695
    %v1325 = vpow.pop %v1324
    %v1326 = vsel %vm1086, %v1325, 0.0
    %1327 = vadd.xlane.f32.xlu0 %v1326
    %v1328 = vpop.xlane.xlu0 %1327
    %v1329 = vrcp.pop %v1328
    %v1330 = vmul.f32 %v1325, %v1329
    %v1331 = vpack.c.bf16 %v1330, %v1330
    %1332 = vrot.lane.b32.xlu0 %v1036, 64
    %v1333 = vpop.permute.xlu0 %1332
    %v1335 = vsel %vm1086, %v1331, 0
    %v1338 = vsel %vm1102, %v1333, 0
    %1340 = vmatprep.subr.bf16.mxu0 0
    %1341 = vmatpush1.bf16.msra.mxu0 %v1338
    %1342 = vmatprep.subr.bf16.mxu0 0
    %1343 = vmatpush1.bf16.msra.mxu0 0
    %1344 = vmatprep.subr.bf16.mxu0 0
    %1345 = vmatpush1.bf16.msra.mxu0 0
    %1346 = vmatprep.subr.bf16.mxu0 0
    %1347 = vmatpush1.bf16.msra.mxu0 0
    %1348 = vmatprep.subr.bf16.mxu0 0
    %1349 = vmatpush1.bf16.msra.mxu0 0
    %1350 = vmatprep.subr.bf16.mxu0 0
    %1351 = vmatpush1.bf16.msra.mxu0 0
    %1352 = vmatprep.subr.bf16.mxu0 0
    %1353 = vmatpush1.bf16.msra.mxu0 0
    %1354 = vmatprep.subr.bf16.mxu0 0
    %1355 = vmatpush1.bf16.msra.mxu0 0
    %1356 = vmatprep.subr.bf16.mxu0 0
    %1357 = vmatpush1.bf16.msra.mxu0 0
    %1358 = vmatprep.subr.bf16.mxu0 0
    %1359 = vmatpush1.bf16.msra.mxu0 0
    %1360 = vmatprep.subr.bf16.mxu0 0
    %1361 = vmatpush1.bf16.msra.mxu0 0
    %1362 = vmatprep.subr.bf16.mxu0 0
    %1363 = vmatpush1.bf16.msra.mxu0 0
    %1364 = vmatprep.subr.bf16.mxu0 0
    %1365 = vmatpush1.bf16.msra.mxu0 0
    %1366 = vmatprep.subr.bf16.mxu0 0
    %1367 = vmatpush1.bf16.msra.mxu0 0
    %1368 = vmatprep.subr.bf16.mxu0 0
    %1369 = vmatpush1.bf16.msra.mxu0 0
    %1370 = vmatprep.subr.bf16.mxu0 0
    %1371 = vmatpush1.bf16.msra.mxu0 0
    %1372 = vmatprep.mubr.bf16.mxu0 0
    %1373 = vmatmul.mubr.bf16.gmra.mrb[0].mxu0 %v1335
    %v1374 = vpop.f32.mrb[0].mxu0
    %v1375 = vadd.f32 0.0, %v1374
    %v1376 = vpop.f32.mrb[0].mxu0
    %v1377 = vpop.f32.mrb[0].mxu0
    %v1378 = vpop.f32.mrb[0].mxu0
    %1379 = vdwg.mxu0
    %1381 = vrot.lane.b32.xlu0 %v1375, 64
    %v1382 = vpop.permute.xlu0 %1381
    %vm1384 = vcmask 785920
    %1385 = vst.msk [vmem:[#allocation3] sm:$0xff] %vm1384, %v1382
    %1386 = vrot.lane.b32.xlu0 %v1034, 32
    %v1387 = vpop.permute.xlu0 %1386
    %1388 = vrot.lane.b32.xlu0 %v1035, 32
    %v1389 = vpop.permute.xlu0 %1388
    %v1391 = vsel %vm1037, %v1387, 0
    %v1394 = vsel %vm1037, %v1389, 0
    %1396 = vmatprep.subr.bf16.mxu0 0
    %1397 = vmatpush1.bf16.xpose.msra.mxu0 %v1394
    %1398 = vmatprep.subr.bf16.mxu0 0
    %1399 = vmatpush1.bf16.xpose.msra.mxu0 0
    %1400 = vmatprep.subr.bf16.mxu0 0
    %1401 = vmatpush1.bf16.xpose.msra.mxu0 0
    %1402 = vmatprep.subr.bf16.mxu0 0
    %1403 = vmatpush1.bf16.xpose.msra.mxu0 0
    %1404 = vmatprep.subr.bf16.mxu0 0
    %1405 = vmatpush1.bf16.xpose.msra.mxu0 0
    %1406 = vmatprep.subr.bf16.mxu0 0
    %1407 = vmatpush1.bf16.xpose.msra.mxu0 0
    %1408 = vmatprep.subr.bf16.mxu0 0
    %1409 = vmatpush1.bf16.xpose.msra.mxu0 0
    %1410 = vmatprep.subr.bf16.mxu0 0
    %1411 = vmatpush1.bf16.xpose.msra.mxu0 0
    %1412 = vmatprep.subr.bf16.mxu0 0
    %1413 = vmatpush1.bf16.xpose.msra.mxu0 0
    %1414 = vmatprep.subr.bf16.mxu0 0
    %1415 = vmatpush1.bf16.xpose.msra.mxu0 0
    %1416 = vmatprep.subr.bf16.mxu0 0
    %1417 = vmatpush1.bf16.xpose.msra.mxu0 0
    %1418 = vmatprep.subr.bf16.mxu0 0
    %1419 = vmatpush1.bf16.xpose.msra.mxu0 0
    %1420 = vmatprep.subr.bf16.mxu0 0
    %1421 = vmatpush1.bf16.xpose.msra.mxu0 0
    %1422 = vmatprep.subr.bf16.mxu0 0
    %1423 = vmatpush1.bf16.xpose.msra.mxu0 0
    %1424 = vmatprep.subr.bf16.mxu0 0
    %1425 = vmatpush1.bf16.xpose.msra.mxu0 0
    %1426 = vmatprep.subr.bf16.mxu0 0
    %1427 = vmatpush1.bf16.xpose.msra.mxu0 0
    %1428 = vmatprep.mubr.bf16.mxu0 0
    %1429 = vmatmul.mubr.bf16.gmra.mrb[0].mxu0 %v1391
    %v1430 = vpop.f32.mrb[0].mxu0
    %v1431 = vadd.f32 0.0, %v1430
    %v1432 = vpop.f32.mrb[0].mxu0
    %v1433 = vpop.f32.mrb[0].mxu0
    %v1434 = vpop.f32.mrb[0].mxu0
    %1435 = vdwg.mxu0
    %v1436 = vmul.f32 %v1431, 0.17677669
    %v1437 = vadd.f32 %v1436, %v730
    %v1438 = vsel %vm1086, %v1437, -inf
    %1439 = vmax.xlane.f32.xlu0 %v1438
    %v1440 = vpop.xlane.xlu0 %1439
    %v1441 = vsub.f32 %v1437, %v1440
    %v1442 = vmul.f32 %v1441, 1.442695
    %v1443 = vpow.pop %v1442
    %v1444 = vsel %vm1086, %v1443, 0.0
    %1445 = vadd.xlane.f32.xlu0 %v1444
    %v1446 = vpop.xlane.xlu0 %1445
    %v1447 = vrcp.pop %v1446
    %v1448 = vmul.f32 %v1443, %v1447
    %v1449 = vpack.c.bf16 %v1448, %v1448
    %1450 = vrot.lane.b32.xlu0 %v1036, 32
    %v1451 = vpop.permute.xlu0 %1450
    %v1453 = vsel %vm1086, %v1449, 0
    %v1456 = vsel %vm1102, %v1451, 0
    %1458 = vmatprep.subr.bf16.mxu0 0
    %1459 = vmatpush1.bf16.msra.mxu0 %v1456
    %1460 = vmatprep.subr.bf16.mxu0 0
    %1461 = vmatpush1.bf16.msra.mxu0 0
    %1462 = vmatprep.subr.bf16.mxu0 0
    %1463 = vmatpush1.bf16.msra.mxu0 0
    %1464 = vmatprep.subr.bf16.mxu0 0
    %1465 = vmatpush1.bf16.msra.mxu0 0
    %1466 = vmatprep.subr.bf16.mxu0 0
    %1467 = vmatpush1.bf16.msra.mxu0 0
    %1468 = vmatprep.subr.bf16.mxu0 0
    %1469 = vmatpush1.bf16.msra.mxu0 0
    %1470 = vmatprep.subr.bf16.mxu0 0
    %1471 = vmatpush1.bf16.msra.mxu0 0
    %1472 = vmatprep.subr.bf16.mxu0 0
    %1473 = vmatpush1.bf16.msra.mxu0 0
    %1474 = vmatprep.subr.bf16.mxu0 0
    %1475 = vmatpush1.bf16.msra.mxu0 0
    %1476 = vmatprep.subr.bf16.mxu0 0
    %1477 = vmatpush1.bf16.msra.mxu0 0
    %1478 = vmatprep.subr.bf16.mxu0 0
    %1479 = vmatpush1.bf16.msra.mxu0 0
    %1480 = vmatprep.subr.bf16.mxu0 0
    %1481 = vmatpush1.bf16.msra.mxu0 0
    %1482 = vmatprep.subr.bf16.mxu0 0
    %1483 = vmatpush1.bf16.msra.mxu0 0
    %1484 = vmatprep.subr.bf16.mxu0 0
    %1485 = vmatpush1.bf16.msra.mxu0 0
    %1486 = vmatprep.subr.bf16.mxu0 0
    %1487 = vmatpush1.bf16.msra.mxu0 0
    %1488 = vmatprep.subr.bf16.mxu0 0
    %1489 = vmatpush1.bf16.msra.mxu0 0
    %1490 = vmatprep.mubr.bf16.mxu0 0
    %1491 = vmatmul.mubr.bf16.gmra.mrb[0].mxu0 %v1453
    %v1492 = vpop.f32.mrb[0].mxu0
    %v1493 = vadd.f32 0.0, %v1492
    %v1494 = vpop.f32.mrb[0].mxu0
    %v1495 = vpop.f32.mrb[0].mxu0
    %v1496 = vpop.f32.mrb[0].mxu0
    %1497 = vdwg.mxu0
    %1499 = vrot.lane.b32.xlu0 %v1493, 96
    %v1500 = vpop.permute.xlu0 %1499
    %vm1502 = vcmask 1048320
    %1503 = vst.msk [vmem:[#allocation3] sm:$0xff] %vm1502, %v1500
    %v1504 = vpack.c.bf16 %v989, %v989
    %v1505 = vpack.c.bf16 %v991, %v991
    %v1506 = vpack.c.bf16 %v1031, %v1031
    %v1508 = vsel %vm1037, %v1504, 0
    %v1511 = vsel %vm1037, %v1505, 0
    %1513 = vmatprep.subr.bf16.mxu0 0
    %1514 = vmatpush1.bf16.xpose.msra.mxu0 %v1511
    %1515 = vmatprep.subr.bf16.mxu0 0
    %1516 = vmatpush1.bf16.xpose.msra.mxu0 0
    %1517 = vmatprep.subr.bf16.mxu0 0
    %1518 = vmatpush1.bf16.xpose.msra.mxu0 0
    %1519 = vmatprep.subr.bf16.mxu0 0
    %1520 = vmatpush1.bf16.xpose.msra.mxu0 0
    %1521 = vmatprep.subr.bf16.mxu0 0
    %1522 = vmatpush1.bf16.xpose.msra.mxu0 0
    %1523 = vmatprep.subr.bf16.mxu0 0
    %1524 = vmatpush1.bf16.xpose.msra.mxu0 0
    %1525 = vmatprep.subr.bf16.mxu0 0
    %1526 = vmatpush1.bf16.xpose.msra.mxu0 0
    %1527 = vmatprep.subr.bf16.mxu0 0
    %1528 = vmatpush1.bf16.xpose.msra.mxu0 0
    %1529 = vmatprep.subr.bf16.mxu0 0
    %1530 = vmatpush1.bf16.xpose.msra.mxu0 0
    %1531 = vmatprep.subr.bf16.mxu0 0
    %1532 = vmatpush1.bf16.xpose.msra.mxu0 0
    %1533 = vmatprep.subr.bf16.mxu0 0
    %1534 = vmatpush1.bf16.xpose.msra.mxu0 0
    %1535 = vmatprep.subr.bf16.mxu0 0
    %1536 = vmatpush1.bf16.xpose.msra.mxu0 0
    %1537 = vmatprep.subr.bf16.mxu0 0
    %1538 = vmatpush1.bf16.xpose.msra.mxu0 0
    %1539 = vmatprep.subr.bf16.mxu0 0
    %1540 = vmatpush1.bf16.xpose.msra.mxu0 0
    %1541 = vmatprep.subr.bf16.mxu0 0
    %1542 = vmatpush1.bf16.xpose.msra.mxu0 0
    %1543 = vmatprep.subr.bf16.mxu0 0
    %1544 = vmatpush1.bf16.xpose.msra.mxu0 0
    %1545 = vmatprep.mubr.bf16.mxu0 0
    %1546 = vmatmul.mubr.bf16.gmra.mrb[0].mxu0 %v1508
    %v1547 = vpop.f32.mrb[0].mxu0
    %v1548 = vadd.f32 0.0, %v1547
    %v1549 = vpop.f32.mrb[0].mxu0
    %v1550 = vpop.f32.mrb[0].mxu0
    %v1551 = vpop.f32.mrb[0].mxu0
    %1552 = vdwg.mxu0
    %v1553 = vmul.f32 %v1548, 0.17677669
    %v1554 = vadd.f32 %v1553, %v730
    %v1555 = vsel %vm1086, %v1554, -inf
    %1556 = vmax.xlane.f32.xlu0 %v1555
    %v1557 = vpop.xlane.xlu0 %1556
    %v1558 = vsub.f32 %v1554, %v1557
    %v1559 = vmul.f32 %v1558, 1.442695
    %v1560 = vpow.pop %v1559
    %v1561 = vsel %vm1086, %v1560, 0.0
    %1562 = vadd.xlane.f32.xlu0 %v1561
    %v1563 = vpop.xlane.xlu0 %1562
    %v1564 = vrcp.pop %v1563
    %v1565 = vmul.f32 %v1560, %v1564
    %v1566 = vpack.c.bf16 %v1565, %v1565
    %v1568 = vsel %vm1086, %v1566, 0
    %v1571 = vsel %vm1102, %v1506, 0
    %1573 = vmatprep.subr.bf16.mxu0 0
    %1574 = vmatpush1.bf16.msra.mxu0 %v1571
    %1575 = vmatprep.subr.bf16.mxu0 0
    %1576 = vmatpush1.bf16.msra.mxu0 0
    %1577 = vmatprep.subr.bf16.mxu0 0
    %1578 = vmatpush1.bf16.msra.mxu0 0
    %1579 = vmatprep.subr.bf16.mxu0 0
    %1580 = vmatpush1.bf16.msra.mxu0 0
    %1581 = vmatprep.subr.bf16.mxu0 0
    %1582 = vmatpush1.bf16.msra.mxu0 0
    %1583 = vmatprep.subr.bf16.mxu0 0
    %1584 = vmatpush1.bf16.msra.mxu0 0
    %1585 = vmatprep.subr.bf16.mxu0 0
    %1586 = vmatpush1.bf16.msra.mxu0 0
    %1587 = vmatprep.subr.bf16.mxu0 0
    %1588 = vmatpush1.bf16.msra.mxu0 0
    %1589 = vmatprep.subr.bf16.mxu0 0
    %1590 = vmatpush1.bf16.msra.mxu0 0
    %1591 = vmatprep.subr.bf16.mxu0 0
    %1592 = vmatpush1.bf16.msra.mxu0 0
    %1593 = vmatprep.subr.bf16.mxu0 0
    %1594 = vmatpush1.bf16.msra.mxu0 0
    %1595 = vmatprep.subr.bf16.mxu0 0
    %1596 = vmatpush1.bf16.msra.mxu0 0
    %1597 = vmatprep.subr.bf16.mxu0 0
    %1598 = vmatpush1.bf16.msra.mxu0 0
    %1599 = vmatprep.subr.bf16.mxu0 0
    %1600 = vmatpush1.bf16.msra.mxu0 0
    %1601 = vmatprep.subr.bf16.mxu0 0
    %1602 = vmatpush1.bf16.msra.mxu0 0
    %1603 = vmatprep.subr.bf16.mxu0 0
    %1604 = vmatpush1.bf16.msra.mxu0 0
    %1605 = vmatprep.mubr.bf16.mxu0 0
    %1606 = vmatmul.mubr.bf16.gmra.mrb[0].mxu0 %v1568
    %v1607 = vpop.f32.mrb[0].mxu0
    %v1608 = vadd.f32 0.0, %v1607
    %v1609 = vpop.f32.mrb[0].mxu0
    %v1610 = vpop.f32.mrb[0].mxu0
    %v1611 = vpop.f32.mrb[0].mxu0
    %1612 = vdwg.mxu0
    %1613 = vst.msk [vmem:[#allocation3 + $0x8] sm:$0xff] %vm1037, %v1608
    %1615 = vrot.lane.b32.xlu0 %v1504, 96
    %v1616 = vpop.permute.xlu0 %1615
    %1618 = vrot.lane.b32.xlu0 %v1505, 96
    %v1619 = vpop.permute.xlu0 %1618
    %v1621 = vsel %vm1037, %v1616, 0
    %v1624 = vsel %vm1037, %v1619, 0
    %1626 = vmatprep.subr.bf16.mxu0 0
    %1627 = vmatpush1.bf16.xpose.msra.mxu0 %v1624
    %1628 = vmatprep.subr.bf16.mxu0 0
    %1629 = vmatpush1.bf16.xpose.msra.mxu0 0
    %1630 = vmatprep.subr.bf16.mxu0 0
    %1631 = vmatpush1.bf16.xpose.msra.mxu0 0
    %1632 = vmatprep.subr.bf16.mxu0 0
    %1633 = vmatpush1.bf16.xpose.msra.mxu0 0
    %1634 = vmatprep.subr.bf16.mxu0 0
    %1635 = vmatpush1.bf16.xpose.msra.mxu0 0
    %1636 = vmatprep.subr.bf16.mxu0 0
    %1637 = vmatpush1.bf16.xpose.msra.mxu0 0
    %1638 = vmatprep.subr.bf16.mxu0 0
    %1639 = vmatpush1.bf16.xpose.msra.mxu0 0
    %1640 = vmatprep.subr.bf16.mxu0 0
    %1641 = vmatpush1.bf16.xpose.msra.mxu0 0
    %1642 = vmatprep.subr.bf16.mxu0 0
    %1643 = vmatpush1.bf16.xpose.msra.mxu0 0
    %1644 = vmatprep.subr.bf16.mxu0 0
    %1645 = vmatpush1.bf16.xpose.msra.mxu0 0
    %1646 = vmatprep.subr.bf16.mxu0 0
    %1647 = vmatpush1.bf16.xpose.msra.mxu0 0
    %1648 = vmatprep.subr.bf16.mxu0 0
    %1649 = vmatpush1.bf16.xpose.msra.mxu0 0
    %1650 = vmatprep.subr.bf16.mxu0 0
    %1651 = vmatpush1.bf16.xpose.msra.mxu0 0
    %1652 = vmatprep.subr.bf16.mxu0 0
    %1653 = vmatpush1.bf16.xpose.msra.mxu0 0
    %1654 = vmatprep.subr.bf16.mxu0 0
    %1655 = vmatpush1.bf16.xpose.msra.mxu0 0
    %1656 = vmatprep.subr.bf16.mxu0 0
    %1657 = vmatpush1.bf16.xpose.msra.mxu0 0
    %1658 = vmatprep.mubr.bf16.mxu0 0
    %1659 = vmatmul.mubr.bf16.gmra.mrb[0].mxu0 %v1621
    %v1660 = vpop.f32.mrb[0].mxu0
    %v1661 = vadd.f32 0.0, %v1660
    %v1662 = vpop.f32.mrb[0].mxu0
    %v1663 = vpop.f32.mrb[0].mxu0
    %v1664 = vpop.f32.mrb[0].mxu0
    %1665 = vdwg.mxu0
    %v1666 = vmul.f32 %v1661, 0.17677669
    %v1667 = vadd.f32 %v1666, %v730
    %v1668 = vsel %vm1086, %v1667, -inf
    %1669 = vmax.xlane.f32.xlu0 %v1668
    %v1670 = vpop.xlane.xlu0 %1669
    %v1671 = vsub.f32 %v1667, %v1670
    %v1672 = vmul.f32 %v1671, 1.442695
    %v1673 = vpow.pop %v1672
    %v1674 = vsel %vm1086, %v1673, 0.0
    %1675 = vadd.xlane.f32.xlu0 %v1674
    %v1676 = vpop.xlane.xlu0 %1675
    %v1677 = vrcp.pop %v1676
    %v1678 = vmul.f32 %v1673, %v1677
    %v1679 = vpack.c.bf16 %v1678, %v1678
    %1681 = vrot.lane.b32.xlu0 %v1506, 96
    %v1682 = vpop.permute.xlu0 %1681
    %v1684 = vsel %vm1086, %v1679, 0
    %v1687 = vsel %vm1102, %v1682, 0
    %1689 = vmatprep.subr.bf16.mxu0 0
    %1690 = vmatpush1.bf16.msra.mxu0 %v1687
    %1691 = vmatprep.subr.bf16.mxu0 0
    %1692 = vmatpush1.bf16.msra.mxu0 0
    %1693 = vmatprep.subr.bf16.mxu0 0
    %1694 = vmatpush1.bf16.msra.mxu0 0
    %1695 = vmatprep.subr.bf16.mxu0 0
    %1696 = vmatpush1.bf16.msra.mxu0 0
    %1697 = vmatprep.subr.bf16.mxu0 0
    %1698 = vmatpush1.bf16.msra.mxu0 0
    %1699 = vmatprep.subr.bf16.mxu0 0
    %1700 = vmatpush1.bf16.msra.mxu0 0
    %1701 = vmatprep.subr.bf16.mxu0 0
    %1702 = vmatpush1.bf16.msra.mxu0 0
    %1703 = vmatprep.subr.bf16.mxu0 0
    %1704 = vmatpush1.bf16.msra.mxu0 0
    %1705 = vmatprep.subr.bf16.mxu0 0
    %1706 = vmatpush1.bf16.msra.mxu0 0
    %1707 = vmatprep.subr.bf16.mxu0 0
    %1708 = vmatpush1.bf16.msra.mxu0 0
    %1709 = vmatprep.subr.bf16.mxu0 0
    %1710 = vmatpush1.bf16.msra.mxu0 0
    %1711 = vmatprep.subr.bf16.mxu0 0
    %1712 = vmatpush1.bf16.msra.mxu0 0
    %1713 = vmatprep.subr.bf16.mxu0 0
    %1714 = vmatpush1.bf16.msra.mxu0 0
    %1715 = vmatprep.subr.bf16.mxu0 0
    %1716 = vmatpush1.bf16.msra.mxu0 0
    %1717 = vmatprep.subr.bf16.mxu0 0
    %1718 = vmatpush1.bf16.msra.mxu0 0
    %1719 = vmatprep.subr.bf16.mxu0 0
    %1720 = vmatpush1.bf16.msra.mxu0 0
    %1721 = vmatprep.mubr.bf16.mxu0 0
    %1722 = vmatmul.mubr.bf16.gmra.mrb[0].mxu0 %v1684
    %v1723 = vpop.f32.mrb[0].mxu0
    %v1724 = vadd.f32 0.0, %v1723
    %v1725 = vpop.f32.mrb[0].mxu0
    %v1726 = vpop.f32.mrb[0].mxu0
    %v1727 = vpop.f32.mrb[0].mxu0
    %1728 = vdwg.mxu0
    %1730 = vrot.lane.b32.xlu0 %v1724, 32
    %v1731 = vpop.permute.xlu0 %1730
    %1733 = vst.msk [vmem:[#allocation3 + $0x8] sm:$0xff] %vm1266, %v1731
    %1734 = vrot.lane.b32.xlu0 %v1504, 64
    %v1735 = vpop.permute.xlu0 %1734
    %1736 = vrot.lane.b32.xlu0 %v1505, 64
    %v1737 = vpop.permute.xlu0 %1736
    %v1739 = vsel %vm1037, %v1735, 0
    %v1742 = vsel %vm1037, %v1737, 0
    %1744 = vmatprep.subr.bf16.mxu0 0
    %1745 = vmatpush1.bf16.xpose.msra.mxu0 %v1742
    %1746 = vmatprep.subr.bf16.mxu0 0
    %1747 = vmatpush1.bf16.xpose.msra.mxu0 0
    %1748 = vmatprep.subr.bf16.mxu0 0
    %1749 = vmatpush1.bf16.xpose.msra.mxu0 0
    %1750 = vmatprep.subr.bf16.mxu0 0
    %1751 = vmatpush1.bf16.xpose.msra.mxu0 0
    %1752 = vmatprep.subr.bf16.mxu0 0
    %1753 = vmatpush1.bf16.xpose.msra.mxu0 0
    %1754 = vmatprep.subr.bf16.mxu0 0
    %1755 = vmatpush1.bf16.xpose.msra.mxu0 0
    %1756 = vmatprep.subr.bf16.mxu0 0
    %1757 = vmatpush1.bf16.xpose.msra.mxu0 0
    %1758 = vmatprep.subr.bf16.mxu0 0
    %1759 = vmatpush1.bf16.xpose.msra.mxu0 0
    %1760 = vmatprep.subr.bf16.mxu0 0
    %1761 = vmatpush1.bf16.xpose.msra.mxu0 0
    %1762 = vmatprep.subr.bf16.mxu0 0
    %1763 = vmatpush1.bf16.xpose.msra.mxu0 0
    %1764 = vmatprep.subr.bf16.mxu0 0
    %1765 = vmatpush1.bf16.xpose.msra.mxu0 0
    %1766 = vmatprep.subr.bf16.mxu0 0
    %1767 = vmatpush1.bf16.xpose.msra.mxu0 0
    %1768 = vmatprep.subr.bf16.mxu0 0
    %1769 = vmatpush1.bf16.xpose.msra.mxu0 0
    %1770 = vmatprep.subr.bf16.mxu0 0
    %1771 = vmatpush1.bf16.xpose.msra.mxu0 0
    %1772 = vmatprep.subr.bf16.mxu0 0
    %1773 = vmatpush1.bf16.xpose.msra.mxu0 0
    %1774 = vmatprep.subr.bf16.mxu0 0
    %1775 = vmatpush1.bf16.xpose.msra.mxu0 0
    %1776 = vmatprep.mubr.bf16.mxu0 0
    %1777 = vmatmul.mubr.bf16.gmra.mrb[0].mxu0 %v1739
    %v1778 = vpop.f32.mrb[0].mxu0
    %v1779 = vadd.f32 0.0, %v1778
    %v1780 = vpop.f32.mrb[0].mxu0
    %v1781 = vpop.f32.mrb[0].mxu0
    %v1782 = vpop.f32.mrb[0].mxu0
    %1783 = vdwg.mxu0
    %v1784 = vmul.f32 %v1779, 0.17677669
    %v1785 = vadd.f32 %v1784, %v730
    %v1786 = vsel %vm1086, %v1785, -inf
    %1787 = vmax.xlane.f32.xlu0 %v1786
    %v1788 = vpop.xlane.xlu0 %1787
    %v1789 = vsub.f32 %v1785, %v1788
    %v1790 = vmul.f32 %v1789, 1.442695
    %v1791 = vpow.pop %v1790
    %v1792 = vsel %vm1086, %v1791, 0.0
    %1793 = vadd.xlane.f32.xlu0 %v1792
    %v1794 = vpop.xlane.xlu0 %1793
    %v1795 = vrcp.pop %v1794
    %v1796 = vmul.f32 %v1791, %v1795
    %v1797 = vpack.c.bf16 %v1796, %v1796
    %1798 = vrot.lane.b32.xlu0 %v1506, 64
    %v1799 = vpop.permute.xlu0 %1798
    %v1801 = vsel %vm1086, %v1797, 0
    %v1804 = vsel %vm1102, %v1799, 0
    %1806 = vmatprep.subr.bf16.mxu0 0
    %1807 = vmatpush1.bf16.msra.mxu0 %v1804
    %1808 = vmatprep.subr.bf16.mxu0 0
    %1809 = vmatpush1.bf16.msra.mxu0 0
    %1810 = vmatprep.subr.bf16.mxu0 0
    %1811 = vmatpush1.bf16.msra.mxu0 0
    %1812 = vmatprep.subr.bf16.mxu0 0
    %1813 = vmatpush1.bf16.msra.mxu0 0
    %1814 = vmatprep.subr.bf16.mxu0 0
    %1815 = vmatpush1.bf16.msra.mxu0 0
    %1816 = vmatprep.subr.bf16.mxu0 0
    %1817 = vmatpush1.bf16.msra.mxu0 0
    %1818 = vmatprep.subr.bf16.mxu0 0
    %1819 = vmatpush1.bf16.msra.mxu0 0
    %1820 = vmatprep.subr.bf16.mxu0 0
    %1821 = vmatpush1.bf16.msra.mxu0 0
    %1822 = vmatprep.subr.bf16.mxu0 0
    %1823 = vmatpush1.bf16.msra.mxu0 0
    %1824 = vmatprep.subr.bf16.mxu0 0
    %1825 = vmatpush1.bf16.msra.mxu0 0
    %1826 = vmatprep.subr.bf16.mxu0 0
    %1827 = vmatpush1.bf16.msra.mxu0 0
    %1828 = vmatprep.subr.bf16.mxu0 0
    %1829 = vmatpush1.bf16.msra.mxu0 0
    %1830 = vmatprep.subr.bf16.mxu0 0
    %1831 = vmatpush1.bf16.msra.mxu0 0
    %1832 = vmatprep.subr.bf16.mxu0 0
    %1833 = vmatpush1.bf16.msra.mxu0 0
    %1834 = vmatprep.subr.bf16.mxu0 0
    %1835 = vmatpush1.bf16.msra.mxu0 0
    %1836 = vmatprep.subr.bf16.mxu0 0
    %1837 = vmatpush1.bf16.msra.mxu0 0
    %1838 = vmatprep.mubr.bf16.mxu0 0
    %1839 = vmatmul.mubr.bf16.gmra.mrb[0].mxu0 %v1801
    %v1840 = vpop.f32.mrb[0].mxu0
    %v1841 = vadd.f32 0.0, %v1840
    %v1842 = vpop.f32.mrb[0].mxu0
    %v1843 = vpop.f32.mrb[0].mxu0
    %v1844 = vpop.f32.mrb[0].mxu0
    %1845 = vdwg.mxu0
    %1847 = vrot.lane.b32.xlu0 %v1841, 64
    %v1848 = vpop.permute.xlu0 %1847
    %1850 = vst.msk [vmem:[#allocation3 + $0x8] sm:$0xff] %vm1384, %v1848
    %1851 = vrot.lane.b32.xlu0 %v1504, 32
    %v1852 = vpop.permute.xlu0 %1851
    %1853 = vrot.lane.b32.xlu0 %v1505, 32
    %v1854 = vpop.permute.xlu0 %1853
    %v1856 = vsel %vm1037, %v1852, 0
    %v1859 = vsel %vm1037, %v1854, 0
    %1861 = vmatprep.subr.bf16.mxu0 0
    %1862 = vmatpush1.bf16.xpose.msra.mxu0 %v1859
    %1863 = vmatprep.subr.bf16.mxu0 0
    %1864 = vmatpush1.bf16.xpose.msra.mxu0 0
    %1865 = vmatprep.subr.bf16.mxu0 0
    %1866 = vmatpush1.bf16.xpose.msra.mxu0 0
    %1867 = vmatprep.subr.bf16.mxu0 0
    %1868 = vmatpush1.bf16.xpose.msra.mxu0 0
    %1869 = vmatprep.subr.bf16.mxu0 0
    %1870 = vmatpush1.bf16.xpose.msra.mxu0 0
    %1871 = vmatprep.subr.bf16.mxu0 0
    %1872 = vmatpush1.bf16.xpose.msra.mxu0 0
    %1873 = vmatprep.subr.bf16.mxu0 0
    %1874 = vmatpush1.bf16.xpose.msra.mxu0 0
    %1875 = vmatprep.subr.bf16.mxu0 0
    %1876 = vmatpush1.bf16.xpose.msra.mxu0 0
    %1877 = vmatprep.subr.bf16.mxu0 0
    %1878 = vmatpush1.bf16.xpose.msra.mxu0 0
    %1879 = vmatprep.subr.bf16.mxu0 0
    %1880 = vmatpush1.bf16.xpose.msra.mxu0 0
    %1881 = vmatprep.subr.bf16.mxu0 0
    %1882 = vmatpush1.bf16.xpose.msra.mxu0 0
    %1883 = vmatprep.subr.bf16.mxu0 0
    %1884 = vmatpush1.bf16.xpose.msra.mxu0 0
    %1885 = vmatprep.subr.bf16.mxu0 0
    %1886 = vmatpush1.bf16.xpose.msra.mxu0 0
    %1887 = vmatprep.subr.bf16.mxu0 0
    %1888 = vmatpush1.bf16.xpose.msra.mxu0 0
    %1889 = vmatprep.subr.bf16.mxu0 0
    %1890 = vmatpush1.bf16.xpose.msra.mxu0 0
    %1891 = vmatprep.subr.bf16.mxu0 0
    %1892 = vmatpush1.bf16.xpose.msra.mxu0 0
    %1893 = vmatprep.mubr.bf16.mxu0 0
    %1894 = vmatmul.mubr.bf16.gmra.mrb[0].mxu0 %v1856
    %v1895 = vpop.f32.mrb[0].mxu0
    %v1896 = vadd.f32 0.0, %v1895
    %v1897 = vpop.f32.mrb[0].mxu0
    %v1898 = vpop.f32.mrb[0].mxu0
    %v1899 = vpop.f32.mrb[0].mxu0
    %1900 = vdwg.mxu0
    %v1901 = vmul.f32 %v1896, 0.17677669
    %v1902 = vadd.f32 %v1901, %v730
    %v1903 = vsel %vm1086, %v1902, -inf
    %1904 = vmax.xlane.f32.xlu0 %v1903
    %v1905 = vpop.xlane.xlu0 %1904
    %v1906 = vsub.f32 %v1902, %v1905
    %v1907 = vmul.f32 %v1906, 1.442695
    %v1908 = vpow.pop %v1907
    %v1909 = vsel %vm1086, %v1908, 0.0
    %1910 = vadd.xlane.f32.xlu0 %v1909
    %v1911 = vpop.xlane.xlu0 %1910
    %v1912 = vrcp.pop %v1911
    %v1913 = vmul.f32 %v1908, %v1912
    %v1914 = vpack.c.bf16 %v1913, %v1913
    %1915 = vrot.lane.b32.xlu0 %v1506, 32
    %v1916 = vpop.permute.xlu0 %1915
    %v1918 = vsel %vm1086, %v1914, 0
    %v1921 = vsel %vm1102, %v1916, 0
    %1923 = vmatprep.subr.bf16.mxu0 0
    %1924 = vmatpush1.bf16.msra.mxu0 %v1921
    %1925 = vmatprep.subr.bf16.mxu0 0
    %1926 = vmatpush1.bf16.msra.mxu0 0
    %1927 = vmatprep.subr.bf16.mxu0 0
    %1928 = vmatpush1.bf16.msra.mxu0 0
    %1929 = vmatprep.subr.bf16.mxu0 0
    %1930 = vmatpush1.bf16.msra.mxu0 0
    %1931 = vmatprep.subr.bf16.mxu0 0
    %1932 = vmatpush1.bf16.msra.mxu0 0
    %1933 = vmatprep.subr.bf16.mxu0 0
    %1934 = vmatpush1.bf16.msra.mxu0 0
    %1935 = vmatprep.subr.bf16.mxu0 0
    %1936 = vmatpush1.bf16.msra.mxu0 0
    %1937 = vmatprep.subr.bf16.mxu0 0
    %1938 = vmatpush1.bf16.msra.mxu0 0
    %1939 = vmatprep.subr.bf16.mxu0 0
    %1940 = vmatpush1.bf16.msra.mxu0 0
    %1941 = vmatprep.subr.bf16.mxu0 0
    %1942 = vmatpush1.bf16.msra.mxu0 0
    %1943 = vmatprep.subr.bf16.mxu0 0
    %1944 = vmatpush1.bf16.msra.mxu0 0
    %1945 = vmatprep.subr.bf16.mxu0 0
    %1946 = vmatpush1.bf16.msra.mxu0 0
    %1947 = vmatprep.subr.bf16.mxu0 0
    %1948 = vmatpush1.bf16.msra.mxu0 0
    %1949 = vmatprep.subr.bf16.mxu0 0
    %1950 = vmatpush1.bf16.msra.mxu0 0
    %1951 = vmatprep.subr.bf16.mxu0 0
    %1952 = vmatpush1.bf16.msra.mxu0 0
    %1953 = vmatprep.subr.bf16.mxu0 0
    %1954 = vmatpush1.bf16.msra.mxu0 0
    %1955 = vmatprep.mubr.bf16.mxu0 0
    %1956 = vmatmul.mubr.bf16.gmra.mrb[0].mxu0 %v1918
    %v1957 = vpop.f32.mrb[0].mxu0
    %v1958 = vadd.f32 0.0, %v1957
    %v1959 = vpop.f32.mrb[0].mxu0
    %v1960 = vpop.f32.mrb[0].mxu0
    %v1961 = vpop.f32.mrb[0].mxu0
    %1962 = vdwg.mxu0
    %1964 = vrot.lane.b32.xlu0 %v1958, 96
    %v1965 = vpop.permute.xlu0 %1964
    %1967 = vst.msk [vmem:[#allocation3 + $0x8] sm:$0xff] %vm1502, %v1965
    %v1968 = vld [vmem:[#allocation3] sm:$0xff]
    %v1969 = vld [vmem:[#allocation3 + $0x8] sm:$0xff]
    %v1970 = vpack.c.bf16 %v1969, %v1968
    %v1971 = vld [vmem:[#allocation9] sm:$0xf]
    %v1972 = vld [vmem:[#allocation9 + $0x4] sm:$0xf]
    %v1973 = vld [vmem:[#allocation9 + $0x8] sm:$0xf]
    %v1974 = vld [vmem:[#allocation9 + $0xc] sm:$0xf]
    %v1975 = vld [vmem:[#allocation9 + $0x10] sm:$0xf]
    %v1976 = vld [vmem:[#allocation9 + $0x14] sm:$0xf]
    %v1977 = vld [vmem:[#allocation9 + $0x18] sm:$0xf]
    %v1978 = vld [vmem:[#allocation9 + $0x1c] sm:$0xf]
    %v1979 = vld [vmem:[#allocation9 + $0x20] sm:$0xf]
    %v1980 = vld [vmem:[#allocation9 + $0x24] sm:$0xf]
    %v1981 = vld [vmem:[#allocation9 + $0x28] sm:$0xf]
    %v1982 = vld [vmem:[#allocation9 + $0x2c] sm:$0xf]
    %v1983 = vld [vmem:[#allocation9 + $0x30] sm:$0xf]
    %v1984 = vld [vmem:[#allocation9 + $0x34] sm:$0xf]
    %v1985 = vld [vmem:[#allocation9 + $0x38] sm:$0xf]
    %v1986 = vld [vmem:[#allocation9 + $0x3c] sm:$0xf]
    %v1987 = vld [vmem:[#allocation11] sm:$0x1]
    %v1989 = vlaneseq
    %v1990 = vshrl.u32 %v1989, 7
    %v1991 = vsub.s32 0, %v1990
    %v1992 = vrot.slane %v1987, %v1991
    %v2010 = vunpack.c.l.b16 %v1971
    %v2011 = vunpack.c.l.b16 %v1972
    %v2012 = vunpack.c.l.b16 %v1973
    %v2013 = vunpack.c.l.b16 %v1974
    %v2014 = vunpack.c.l.b16 %v1975
    %v2015 = vunpack.c.l.b16 %v1976
    %v2016 = vunpack.c.l.b16 %v1977
    %v2017 = vunpack.c.l.b16 %v1978
    %v2018 = vunpack.c.l.b16 %v1979
    %v2019 = vunpack.c.l.b16 %v1980
    %v2020 = vunpack.c.l.b16 %v1981
    %v2021 = vunpack.c.l.b16 %v1982
    %v2022 = vunpack.c.l.b16 %v1983
    %v2023 = vunpack.c.l.b16 %v1984
    %v2024 = vunpack.c.l.b16 %v1985
    %v2025 = vunpack.c.l.b16 %v1986
    %v2026 = vpack.c.b16 %v2011, %v2010
    %v2027 = vpack.c.b16 %v2013, %v2012
    %v2028 = vpack.c.b16 %v2015, %v2014
    %v2029 = vpack.c.b16 %v2017, %v2016
    %v2030 = vpack.c.b16 %v2019, %v2018
    %v2031 = vpack.c.b16 %v2021, %v2020
    %v2032 = vpack.c.b16 %v2023, %v2022
    %v2033 = vpack.c.b16 %v2025, %v2024
    %2042 = vmatprep.subr.bf16.mxu0 0
    %2043 = vmatpush1.bf16.msra.mxu0 %v2026
    %2044 = vmatprep.subr.bf16.mxu0 0
    %2045 = vmatpush1.bf16.msra.mxu0 %v2027
    %2046 = vmatprep.subr.bf16.mxu0 0
    %2047 = vmatpush1.bf16.msra.mxu0 %v2028
    %2048 = vmatprep.subr.bf16.mxu0 0
    %2049 = vmatpush1.bf16.msra.mxu0 %v2029
    %2050 = vmatprep.subr.bf16.mxu0 0
    %2051 = vmatpush1.bf16.msra.mxu0 %v2030
    %2052 = vmatprep.subr.bf16.mxu0 0
    %2053 = vmatpush1.bf16.msra.mxu0 %v2031
    %2054 = vmatprep.subr.bf16.mxu0 0
    %2055 = vmatpush1.bf16.msra.mxu0 %v2032
    %2056 = vmatprep.subr.bf16.mxu0 0
    %2057 = vmatpush1.bf16.msra.mxu0 %v2033
    %2058 = vmatprep.subr.bf16.mxu0 0
    %2059 = vmatpush1.bf16.msra.mxu0 0
    %2060 = vmatprep.subr.bf16.mxu0 0
    %2061 = vmatpush1.bf16.msra.mxu0 0
    %2062 = vmatprep.subr.bf16.mxu0 0
    %2063 = vmatpush1.bf16.msra.mxu0 0
    %2064 = vmatprep.subr.bf16.mxu0 0
    %2065 = vmatpush1.bf16.msra.mxu0 0
    %2066 = vmatprep.subr.bf16.mxu0 0
    %2067 = vmatpush1.bf16.msra.mxu0 0
    %2068 = vmatprep.subr.bf16.mxu0 0
    %2069 = vmatpush1.bf16.msra.mxu0 0
    %2070 = vmatprep.subr.bf16.mxu0 0
    %2071 = vmatpush1.bf16.msra.mxu0 0
    %2072 = vmatprep.subr.bf16.mxu0 0
    %2073 = vmatpush1.bf16.msra.mxu0 0
    %2074 = vmatprep.mubr.bf16.mxu0 0
    %2075 = vmatmul.mubr.bf16.gmra.mrb[0].mxu0 %v1970
    %v2076 = vpop.f32.mrb[0].mxu0
    %v2077 = vadd.f32 %v1992, %v2076
    %v2078 = vpop.f32.mrb[0].mxu0
    %v2079 = vpop.f32.mrb[0].mxu0
    %v2080 = vadd.f32 %v1992, %v2079
    %v2081 = vpop.f32.mrb[0].mxu0
    %2082 = vdwg.mxu0
    %v2083 = vadd.f32 %v725, %v2077
    %v2084 = vadd.f32 %v726, %v2080
    %v2085 = vld [vmem:[#allocation12] sm:$0x1]
    %v2086 = vld [vmem:[#allocation14] sm:$0x1]
    %2087 = vadd.xlane.f32.xlu0 %v2083
    %v2088 = vpop.xlane.xlu0 %2087
    %2089 = vadd.xlane.f32.xlu0 %v2084
    %v2090 = vpop.xlane.xlu0 %2089
    %v2091 = vmul.f32 %v2088, %v737
    %v2092 = vmul.f32 %v2090, %v737
    %v2093 = vsub.f32 %v2083, %v2091
    %v2094 = vsub.f32 %v2084, %v2092
    %v2095 = vmul.f32 %v2093, %v2093
    %v2096 = vmul.f32 %v2094, %v2094
    %2097 = vadd.xlane.f32.xlu0 %v2095
    %v2098 = vpop.xlane.xlu0 %2097
    %2099 = vadd.xlane.f32.xlu0 %v2096
    %v2100 = vpop.xlane.xlu0 %2099
    %v2101 = vmul.f32 %v2098, %v737
    %v2102 = vmul.f32 %v2100, %v737
    %v2103 = vadd.f32 %v2101, 1e-06
    %v2104 = vadd.f32 %v2102, 1e-06
    %v2105 = vrsqrt.pop %v2103
    %v2106 = vrsqrt.pop %v2104
    %v2107 = vmul.f32 %v2093, %v2105
    %v2108 = vmul.f32 %v2094, %v2106
    %v2110 = vlaneseq
    %v2111 = vshrl.u32 %v2110, 7
    %v2112 = vsub.s32 0, %v2111
    %v2113 = vrot.slane %v2085, %v2112
    %v2115 = vmul.f32 %v2107, %v2113
    %v2116 = vmul.f32 %v2108, %v2113
    %v2118 = vlaneseq
    %v2119 = vshrl.u32 %v2118, 7
    %v2120 = vsub.s32 0, %v2119
    %v2121 = vrot.slane %v2086, %v2120
    %v2123 = vadd.f32 %v2115, %v2121
    %v2124 = vadd.f32 %v2116, %v2121
    %v2125 = vpack.c.bf16 %v2124, %v2123
    %v2126 = vld [vmem:[%s13] sm:$0xff]
    %v2127 = vld [vmem:[%s13 + $0x8] sm:$0xff]
    %v2128 = vld [vmem:[%s13 + $0x10] sm:$0xff]
    %v2129 = vld [vmem:[%s13 + $0x18] sm:$0xff]
    %v2130 = vld [vmem:[%s13 + $0x20] sm:$0xff]
    %v2131 = vld [vmem:[%s13 + $0x28] sm:$0xff]
    %v2132 = vld [vmem:[%s13 + $0x30] sm:$0xff]
    %v2133 = vld [vmem:[%s13 + $0x38] sm:$0xff]
    %v2134 = vld [vmem:[%s13 + $0x40] sm:$0xff]
    %v2135 = vld [vmem:[%s13 + $0x48] sm:$0xff]
    %v2136 = vld [vmem:[%s13 + $0x50] sm:$0xff]
    %v2137 = vld [vmem:[%s13 + $0x58] sm:$0xff]
    %v2138 = vld [vmem:[%s13 + $0x60] sm:$0xff]
    %v2139 = vld [vmem:[%s13 + $0x68] sm:$0xff]
    %v2140 = vld [vmem:[%s13 + $0x70] sm:$0xff]
    %v2141 = vld [vmem:[%s13 + $0x78] sm:$0xff]
    %v2142 = vld [vmem:[%s13 + $0x80] sm:$0xff]
    %v2143 = vld [vmem:[%s13 + $0x88] sm:$0xff]
    %v2144 = vld [vmem:[%s13 + $0x90] sm:$0xff]
    %v2145 = vld [vmem:[%s13 + $0x98] sm:$0xff]
    %v2146 = vld [vmem:[%s13 + $0xa0] sm:$0xff]
    %v2147 = vld [vmem:[%s13 + $0xa8] sm:$0xff]
    %v2148 = vld [vmem:[%s13 + $0xb0] sm:$0xff]
    %v2149 = vld [vmem:[%s13 + $0xb8] sm:$0xff]
    %v2150 = vld [vmem:[%s13 + $0xc0] sm:$0xff]
    %v2151 = vld [vmem:[%s13 + $0xc8] sm:$0xff]
    %v2152 = vld [vmem:[%s13 + $0xd0] sm:$0xff]
    %v2153 = vld [vmem:[%s13 + $0xd8] sm:$0xff]
    %v2154 = vld [vmem:[%s13 + $0xe0] sm:$0xff]
    %v2155 = vld [vmem:[%s13 + $0xe8] sm:$0xff]
    %v2156 = vld [vmem:[%s13 + $0xf0] sm:$0xff]
    %v2157 = vld [vmem:[%s13 + $0xf8] sm:$0xff]
    %v2158 = vld [vmem:[#allocation15] sm:$0xf]
    %v2160 = vlaneseq
    %v2161 = vshrl.u32 %v2160, 7
    %v2162 = vsub.s32 0, %v2161
    %v2163 = vrot.slane %v2158, %v2162
    %v2164 = vlaneseq
    %v2165 = vshrl.u32 %v2164, 7
    %v2166 = vsub.s32 1, %v2165
    %v2167 = vrot.slane %v2158, %v2166
    %v2168 = vlaneseq
    %v2169 = vshrl.u32 %v2168, 7
    %v2170 = vsub.s32 2, %v2169
    %v2171 = vrot.slane %v2158, %v2170
    %v2172 = vlaneseq
    %v2173 = vshrl.u32 %v2172, 7
    %v2174 = vsub.s32 3, %v2173
    %v2175 = vrot.slane %v2158, %v2174
    %v2212 = vunpack.c.l.b16 %v2126
    %v2213 = vunpack.c.h.b16 %v2126
    %v2214 = vunpack.c.l.b16 %v2127
    %v2215 = vunpack.c.h.b16 %v2127
    %v2216 = vunpack.c.l.b16 %v2128
    %v2217 = vunpack.c.h.b16 %v2128
    %v2218 = vunpack.c.l.b16 %v2129
    %v2219 = vunpack.c.h.b16 %v2129
    %v2220 = vunpack.c.l.b16 %v2130
    %v2221 = vunpack.c.h.b16 %v2130
    %v2222 = vunpack.c.l.b16 %v2131
    %v2223 = vunpack.c.h.b16 %v2131
    %v2224 = vunpack.c.l.b16 %v2132
    %v2225 = vunpack.c.h.b16 %v2132
    %v2226 = vunpack.c.l.b16 %v2133
    %v2227 = vunpack.c.h.b16 %v2133
    %v2228 = vunpack.c.l.b16 %v2134
    %v2229 = vunpack.c.h.b16 %v2134
    %v2230 = vunpack.c.l.b16 %v2135
    %v2231 = vunpack.c.h.b16 %v2135
    %v2232 = vunpack.c.l.b16 %v2136
    %v2233 = vunpack.c.h.b16 %v2136
    %v2234 = vunpack.c.l.b16 %v2137
    %v2235 = vunpack.c.h.b16 %v2137
    %v2236 = vunpack.c.l.b16 %v2138
    %v2237 = vunpack.c.h.b16 %v2138
    %v2238 = vunpack.c.l.b16 %v2139
    %v2239 = vunpack.c.h.b16 %v2139
    %v2240 = vunpack.c.l.b16 %v2140
    %v2241 = vunpack.c.h.b16 %v2140
    %v2242 = vunpack.c.l.b16 %v2141
    %v2243 = vunpack.c.h.b16 %v2141
    %v2244 = vunpack.c.l.b16 %v2142
    %v2245 = vunpack.c.h.b16 %v2142
    %v2246 = vunpack.c.l.b16 %v2143
    %v2247 = vunpack.c.h.b16 %v2143
    %v2248 = vunpack.c.l.b16 %v2144
    %v2249 = vunpack.c.h.b16 %v2144
    %v2250 = vunpack.c.l.b16 %v2145
    %v2251 = vunpack.c.h.b16 %v2145
    %v2252 = vunpack.c.l.b16 %v2146
    %v2253 = vunpack.c.h.b16 %v2146
    %v2254 = vunpack.c.l.b16 %v2147
    %v2255 = vunpack.c.h.b16 %v2147
    %v2256 = vunpack.c.l.b16 %v2148
    %v2257 = vunpack.c.h.b16 %v2148
    %v2258 = vunpack.c.l.b16 %v2149
    %v2259 = vunpack.c.h.b16 %v2149
    %v2260 = vunpack.c.l.b16 %v2150
    %v2261 = vunpack.c.h.b16 %v2150
    %v2262 = vunpack.c.l.b16 %v2151
    %v2263 = vunpack.c.h.b16 %v2151
    %v2264 = vunpack.c.l.b16 %v2152
    %v2265 = vunpack.c.h.b16 %v2152
    %v2266 = vunpack.c.l.b16 %v2153
    %v2267 = vunpack.c.h.b16 %v2153
    %v2268 = vunpack.c.l.b16 %v2154
    %v2269 = vunpack.c.h.b16 %v2154
    %v2270 = vunpack.c.l.b16 %v2155
    %v2271 = vunpack.c.h.b16 %v2155
    %v2272 = vunpack.c.l.b16 %v2156
    %v2273 = vunpack.c.h.b16 %v2156
    %v2274 = vunpack.c.l.b16 %v2157
    %v2275 = vunpack.c.h.b16 %v2157
    %v2276 = vpack.c.b16 %v2216, %v2212
    %v2277 = vpack.c.b16 %v2217, %v2213
    %v2278 = vpack.c.b16 %v2218, %v2214
    %v2279 = vpack.c.b16 %v2219, %v2215
    %v2280 = vpack.c.b16 %v2224, %v2220
    %v2281 = vpack.c.b16 %v2225, %v2221
    %v2282 = vpack.c.b16 %v2226, %v2222
    %v2283 = vpack.c.b16 %v2227, %v2223
    %v2284 = vpack.c.b16 %v2232, %v2228
    %v2285 = vpack.c.b16 %v2233, %v2229
    %v2286 = vpack.c.b16 %v2234, %v2230
    %v2287 = vpack.c.b16 %v2235, %v2231
    %v2288 = vpack.c.b16 %v2240, %v2236
    %v2289 = vpack.c.b16 %v2241, %v2237
    %v2290 = vpack.c.b16 %v2242, %v2238
    %v2291 = vpack.c.b16 %v2243, %v2239
    %v2292 = vpack.c.b16 %v2248, %v2244
    %v2293 = vpack.c.b16 %v2249, %v2245
    %v2294 = vpack.c.b16 %v2250, %v2246
    %v2295 = vpack.c.b16 %v2251, %v2247
    %v2296 = vpack.c.b16 %v2256, %v2252
    %v2297 = vpack.c.b16 %v2257, %v2253
    %v2298 = vpack.c.b16 %v2258, %v2254
    %v2299 = vpack.c.b16 %v2259, %v2255
    %v2300 = vpack.c.b16 %v2264, %v2260
    %v2301 = vpack.c.b16 %v2265, %v2261
    %v2302 = vpack.c.b16 %v2266, %v2262
    %v2303 = vpack.c.b16 %v2267, %v2263
    %v2304 = vpack.c.b16 %v2272, %v2268
    %v2305 = vpack.c.b16 %v2273, %v2269
    %v2306 = vpack.c.b16 %v2274, %v2270
    %v2307 = vpack.c.b16 %v2275, %v2271
    %2340 = vmatprep.subr.bf16.mxu0 %v2277
    %2341 = vmatpush1.bf16.msra.mxu0 %v2276
    %2342 = vmatprep.subr.bf16.mxu0 %v2281
    %2343 = vmatpush1.bf16.msra.mxu0 %v2280
    %2344 = vmatprep.subr.bf16.mxu0 %v2285
    %2345 = vmatpush1.bf16.msra.mxu0 %v2284
    %2346 = vmatprep.subr.bf16.mxu0 %v2289
    %2347 = vmatpush1.bf16.msra.mxu0 %v2288
    %2348 = vmatprep.subr.bf16.mxu0 %v2293
    %2349 = vmatpush1.bf16.msra.mxu0 %v2292
    %2350 = vmatprep.subr.bf16.mxu0 %v2297
    %2351 = vmatpush1.bf16.msra.mxu0 %v2296
    %2352 = vmatprep.subr.bf16.mxu0 %v2301
    %2353 = vmatpush1.bf16.msra.mxu0 %v2300
    %2354 = vmatprep.subr.bf16.mxu0 %v2305
    %2355 = vmatpush1.bf16.msra.mxu0 %v2304
    %2356 = vmatprep.subr.bf16.mxu0 0
    %2357 = vmatpush1.bf16.msra.mxu0 0
    %2358 = vmatprep.subr.bf16.mxu0 0
    %2359 = vmatpush1.bf16.msra.mxu0 0
    %2360 = vmatprep.subr.bf16.mxu0 0
    %2361 = vmatpush1.bf16.msra.mxu0 0
    %2362 = vmatprep.subr.bf16.mxu0 0
    %2363 = vmatpush1.bf16.msra.mxu0 0
    %2364 = vmatprep.subr.bf16.mxu0 0
    %2365 = vmatpush1.bf16.msra.mxu0 0
    %2366 = vmatprep.subr.bf16.mxu0 0
    %2367 = vmatpush1.bf16.msra.mxu0 0
    %2368 = vmatprep.subr.bf16.mxu0 0
    %2369 = vmatpush1.bf16.msra.mxu0 0
    %2370 = vmatprep.subr.bf16.mxu0 0
    %2371 = vmatpush1.bf16.msra.mxu0 0
    %2372 = vmatprep.mubr.bf16.mxu0 0
    %2373 = vmatmul.mubr.bf16.gmra.mrb[0].mxu0 %v2125
    %v2374 = vpop.f32.mrb[0].mxu0
    %v2375 = vadd.f32 %v2163, %v2374
    %v2376 = vpop.f32.mrb[0].mxu0
    %v2377 = vadd.f32 %v2167, %v2376
    %v2378 = vpop.f32.mrb[0].mxu0
    %v2379 = vadd.f32 %v2163, %v2378
    %v2380 = vpop.f32.mrb[0].mxu0
    %v2381 = vadd.f32 %v2167, %v2380
    %2382 = vdwg.mxu0
    %2383 = vmatprep.subr.bf16.mxu0 %v2279
    %2384 = vmatpush1.bf16.msra.mxu0 %v2278
    %2385 = vmatprep.subr.bf16.mxu0 %v2283
    %2386 = vmatpush1.bf16.msra.mxu0 %v2282
    %2387 = vmatprep.subr.bf16.mxu0 %v2287
    %2388 = vmatpush1.bf16.msra.mxu0 %v2286
    %2389 = vmatprep.subr.bf16.mxu0 %v2291
    %2390 = vmatpush1.bf16.msra.mxu0 %v2290
    %2391 = vmatprep.subr.bf16.mxu0 %v2295
    %2392 = vmatpush1.bf16.msra.mxu0 %v2294
    %2393 = vmatprep.subr.bf16.mxu0 %v2299
    %2394 = vmatpush1.bf16.msra.mxu0 %v2298
    %2395 = vmatprep.subr.bf16.mxu0 %v2303
    %2396 = vmatpush1.bf16.msra.mxu0 %v2302
    %2397 = vmatprep.subr.bf16.mxu0 %v2307
    %2398 = vmatpush1.bf16.msra.mxu0 %v2306
    %2399 = vmatprep.subr.bf16.mxu0 0
    %2400 = vmatpush1.bf16.msra.mxu0 0
    %2401 = vmatprep.subr.bf16.mxu0 0
    %2402 = vmatpush1.bf16.msra.mxu0 0
    %2403 = vmatprep.subr.bf16.mxu0 0
    %2404 = vmatpush1.bf16.msra.mxu0 0
    %2405 = vmatprep.subr.bf16.mxu0 0
    %2406 = vmatpush1.bf16.msra.mxu0 0
    %2407 = vmatprep.subr.bf16.mxu0 0
    %2408 = vmatpush1.bf16.msra.mxu0 0
    %2409 = vmatprep.subr.bf16.mxu0 0
    %2410 = vmatpush1.bf16.msra.mxu0 0
    %2411 = vmatprep.subr.bf16.mxu0 0
    %2412 = vmatpush1.bf16.msra.mxu0 0
    %2413 = vmatprep.subr.bf16.mxu0 0
    %2414 = vmatpush1.bf16.msra.mxu0 0
    %2415 = vmatprep.mubr.bf16.mxu0 0
    %2416 = vmatmul.mubr.bf16.gmra.mrb[0].mxu0 %v2125
    %v2417 = vpop.f32.mrb[0].mxu0
    %v2418 = vadd.f32 %v2171, %v2417
    %v2419 = vpop.f32.mrb[0].mxu0
    %v2420 = vadd.f32 %v2175, %v2419
    %v2421 = vpop.f32.mrb[0].mxu0
    %v2422 = vadd.f32 %v2171, %v2421
    %v2423 = vpop.f32.mrb[0].mxu0
    %v2424 = vadd.f32 %v2175, %v2423
    %2425 = vdwg.mxu0
    %v2426 = vmul.f32 %v2375, 0.5
    %v2427 = vmul.f32 %v2377, 0.5
    %v2428 = vmul.f32 %v2418, 0.5
    %v2429 = vmul.f32 %v2420, 0.5
    %v2430 = vmul.f32 %v2379, 0.5
    %v2431 = vmul.f32 %v2381, 0.5
    %v2432 = vmul.f32 %v2422, 0.5
    %v2433 = vmul.f32 %v2424, 0.5
    %v2434 = vmul.f32 %v2375, 0.70710677
    %v2435 = vmul.f32 %v2377, 0.70710677
    %v2436 = vmul.f32 %v2418, 0.70710677
    %v2437 = vmul.f32 %v2420, 0.70710677
    %v2438 = vmul.f32 %v2379, 0.70710677
    %v2439 = vmul.f32 %v2381, 0.70710677
    %v2440 = vmul.f32 %v2422, 0.70710677
    %v2441 = vmul.f32 %v2424, 0.70710677
    %v2442 = verf.f32.pop %v2434
    %v2443 = verf.f32.pop %v2435
    %v2444 = verf.f32.pop %v2436
    %v2445 = verf.f32.pop %v2437
    %v2446 = verf.f32.pop %v2438
    %v2447 = verf.f32.pop %v2439
    %v2448 = verf.f32.pop %v2440
    %v2449 = verf.f32.pop %v2441
    %v2450 = vadd.f32 %v2442, 1.0
    %v2451 = vadd.f32 %v2443, 1.0
    %v2452 = vadd.f32 %v2444, 1.0
    %v2453 = vadd.f32 %v2445, 1.0
    %v2454 = vadd.f32 %v2446, 1.0
    %v2455 = vadd.f32 %v2447, 1.0
    %v2456 = vadd.f32 %v2448, 1.0
    %v2457 = vadd.f32 %v2449, 1.0
    %v2458 = vmul.f32 %v2426, %v2450
    %v2459 = vmul.f32 %v2427, %v2451
    %v2460 = vmul.f32 %v2428, %v2452
    %v2461 = vmul.f32 %v2429, %v2453
    %v2462 = vmul.f32 %v2430, %v2454
    %v2463 = vmul.f32 %v2431, %v2455
    %v2464 = vmul.f32 %v2432, %v2456
    %v2465 = vmul.f32 %v2433, %v2457
    %v2466 = vpack.c.bf16 %v2462, %v2458
    %v2467 = vpack.c.bf16 %v2463, %v2459
    %v2468 = vpack.c.bf16 %v2464, %v2460
    %v2469 = vpack.c.bf16 %v2465, %v2461
    %v2470 = vld [vmem:[%s15] sm:$0xf]
    %v2471 = vld [vmem:[%s15 + $0x4] sm:$0xf]
    %v2472 = vld [vmem:[%s15 + $0x8] sm:$0xf]
    %v2473 = vld [vmem:[%s15 + $0xc] sm:$0xf]
    %v2474 = vld [vmem:[%s15 + $0x10] sm:$0xf]
    %v2475 = vld [vmem:[%s15 + $0x14] sm:$0xf]
    %v2476 = vld [vmem:[%s15 + $0x18] sm:$0xf]
    %v2477 = vld [vmem:[%s15 + $0x1c] sm:$0xf]
    %v2478 = vld [vmem:[%s15 + $0x20] sm:$0xf]
    %v2479 = vld [vmem:[%s15 + $0x24] sm:$0xf]
    %v2480 = vld [vmem:[%s15 + $0x28] sm:$0xf]
    %v2481 = vld [vmem:[%s15 + $0x2c] sm:$0xf]
    %v2482 = vld [vmem:[%s15 + $0x30] sm:$0xf]
    %v2483 = vld [vmem:[%s15 + $0x34] sm:$0xf]
    %v2484 = vld [vmem:[%s15 + $0x38] sm:$0xf]
    %v2485 = vld [vmem:[%s15 + $0x3c] sm:$0xf]
    %v2486 = vld [vmem:[%s15 + $0x40] sm:$0xf]
    %v2487 = vld [vmem:[%s15 + $0x44] sm:$0xf]
    %v2488 = vld [vmem:[%s15 + $0x48] sm:$0xf]
    %v2489 = vld [vmem:[%s15 + $0x4c] sm:$0xf]
    %v2490 = vld [vmem:[%s15 + $0x50] sm:$0xf]
    %v2491 = vld [vmem:[%s15 + $0x54] sm:$0xf]
    %v2492 = vld [vmem:[%s15 + $0x58] sm:$0xf]
    %v2493 = vld [vmem:[%s15 + $0x5c] sm:$0xf]
    %v2494 = vld [vmem:[%s15 + $0x60] sm:$0xf]
    %v2495 = vld [vmem:[%s15 + $0x64] sm:$0xf]
    %v2496 = vld [vmem:[%s15 + $0x68] sm:$0xf]
    %v2497 = vld [vmem:[%s15 + $0x6c] sm:$0xf]
    %v2498 = vld [vmem:[%s15 + $0x70] sm:$0xf]
    %v2499 = vld [vmem:[%s15 + $0x74] sm:$0xf]
    %v2500 = vld [vmem:[%s15 + $0x78] sm:$0xf]
    %v2501 = vld [vmem:[%s15 + $0x7c] sm:$0xf]
    %v2502 = vld [vmem:[%s15 + $0x80] sm:$0xf]
    %v2503 = vld [vmem:[%s15 + $0x84] sm:$0xf]
    %v2504 = vld [vmem:[%s15 + $0x88] sm:$0xf]
    %v2505 = vld [vmem:[%s15 + $0x8c] sm:$0xf]
    %v2506 = vld [vmem:[%s15 + $0x90] sm:$0xf]
    %v2507 = vld [vmem:[%s15 + $0x94] sm:$0xf]
    %v2508 = vld [vmem:[%s15 + $0x98] sm:$0xf]
    %v2509 = vld [vmem:[%s15 + $0x9c] sm:$0xf]
    %v2510 = vld [vmem:[%s15 + $0xa0] sm:$0xf]
    %v2511 = vld [vmem:[%s15 + $0xa4] sm:$0xf]
    %v2512 = vld [vmem:[%s15 + $0xa8] sm:$0xf]
    %v2513 = vld [vmem:[%s15 + $0xac] sm:$0xf]
    %v2514 = vld [vmem:[%s15 + $0xb0] sm:$0xf]
    %v2515 = vld [vmem:[%s15 + $0xb4] sm:$0xf]
    %v2516 = vld [vmem:[%s15 + $0xb8] sm:$0xf]
    %v2517 = vld [vmem:[%s15 + $0xbc] sm:$0xf]
    %v2518 = vld [vmem:[%s15 + $0xc0] sm:$0xf]
    %v2519 = vld [vmem:[%s15 + $0xc4] sm:$0xf]
    %v2520 = vld [vmem:[%s15 + $0xc8] sm:$0xf]
    %v2521 = vld [vmem:[%s15 + $0xcc] sm:$0xf]
    %v2522 = vld [vmem:[%s15 + $0xd0] sm:$0xf]
    %v2523 = vld [vmem:[%s15 + $0xd4] sm:$0xf]
    %v2524 = vld [vmem:[%s15 + $0xd8] sm:$0xf]
    %v2525 = vld [vmem:[%s15 + $0xdc] sm:$0xf]
    %v2526 = vld [vmem:[%s15 + $0xe0] sm:$0xf]
    %v2527 = vld [vmem:[%s15 + $0xe4] sm:$0xf]
    %v2528 = vld [vmem:[%s15 + $0xe8] sm:$0xf]
    %v2529 = vld [vmem:[%s15 + $0xec] sm:$0xf]
    %v2530 = vld [vmem:[%s15 + $0xf0] sm:$0xf]
    %v2531 = vld [vmem:[%s15 + $0xf4] sm:$0xf]
    %v2532 = vld [vmem:[%s15 + $0xf8] sm:$0xf]
    %v2533 = vld [vmem:[%s15 + $0xfc] sm:$0xf]
    %v2534 = vld [vmem:[#allocation17] sm:$0x1]
    %v2536 = vlaneseq
    %v2537 = vshrl.u32 %v2536, 7
    %v2538 = vsub.s32 0, %v2537
    %v2539 = vrot.slane %v2534, %v2538
    %v2605 = vunpack.c.l.b16 %v2470
    %v2606 = vunpack.c.l.b16 %v2471
    %v2607 = vunpack.c.l.b16 %v2472
    %v2608 = vunpack.c.l.b16 %v2473
    %v2609 = vunpack.c.l.b16 %v2474
    %v2610 = vunpack.c.l.b16 %v2475
    %v2611 = vunpack.c.l.b16 %v2476
    %v2612 = vunpack.c.l.b16 %v2477
    %v2613 = vunpack.c.l.b16 %v2478
    %v2614 = vunpack.c.l.b16 %v2479
    %v2615 = vunpack.c.l.b16 %v2480
    %v2616 = vunpack.c.l.b16 %v2481
    %v2617 = vunpack.c.l.b16 %v2482
    %v2618 = vunpack.c.l.b16 %v2483
    %v2619 = vunpack.c.l.b16 %v2484
    %v2620 = vunpack.c.l.b16 %v2485
    %v2621 = vunpack.c.l.b16 %v2486
    %v2622 = vunpack.c.l.b16 %v2487
    %v2623 = vunpack.c.l.b16 %v2488
    %v2624 = vunpack.c.l.b16 %v2489
    %v2625 = vunpack.c.l.b16 %v2490
    %v2626 = vunpack.c.l.b16 %v2491
    %v2627 = vunpack.c.l.b16 %v2492
    %v2628 = vunpack.c.l.b16 %v2493
    %v2629 = vunpack.c.l.b16 %v2494
    %v2630 = vunpack.c.l.b16 %v2495
    %v2631 = vunpack.c.l.b16 %v2496
    %v2632 = vunpack.c.l.b16 %v2497
    %v2633 = vunpack.c.l.b16 %v2498
    %v2634 = vunpack.c.l.b16 %v2499
    %v2635 = vunpack.c.l.b16 %v2500
    %v2636 = vunpack.c.l.b16 %v2501
    %v2637 = vunpack.c.l.b16 %v2502
    %v2638 = vunpack.c.l.b16 %v2503
    %v2639 = vunpack.c.l.b16 %v2504
    %v2640 = vunpack.c.l.b16 %v2505
    %v2641 = vunpack.c.l.b16 %v2506
    %v2642 = vunpack.c.l.b16 %v2507
    %v2643 = vunpack.c.l.b16 %v2508
    %v2644 = vunpack.c.l.b16 %v2509
    %v2645 = vunpack.c.l.b16 %v2510
    %v2646 = vunpack.c.l.b16 %v2511
    %v2647 = vunpack.c.l.b16 %v2512
    %v2648 = vunpack.c.l.b16 %v2513
    %v2649 = vunpack.c.l.b16 %v2514
    %v2650 = vunpack.c.l.b16 %v2515
    %v2651 = vunpack.c.l.b16 %v2516
    %v2652 = vunpack.c.l.b16 %v2517
    %v2653 = vunpack.c.l.b16 %v2518
    %v2654 = vunpack.c.l.b16 %v2519
    %v2655 = vunpack.c.l.b16 %v2520
    %v2656 = vunpack.c.l.b16 %v2521
    %v2657 = vunpack.c.l.b16 %v2522
    %v2658 = vunpack.c.l.b16 %v2523
    %v2659 = vunpack.c.l.b16 %v2524
    %v2660 = vunpack.c.l.b16 %v2525
    %v2661 = vunpack.c.l.b16 %v2526
    %v2662 = vunpack.c.l.b16 %v2527
    %v2663 = vunpack.c.l.b16 %v2528
    %v2664 = vunpack.c.l.b16 %v2529
    %v2665 = vunpack.c.l.b16 %v2530
    %v2666 = vunpack.c.l.b16 %v2531
    %v2667 = vunpack.c.l.b16 %v2532
    %v2668 = vunpack.c.l.b16 %v2533
    %v2669 = vpack.c.b16 %v2606, %v2605
    %v2670 = vpack.c.b16 %v2608, %v2607
    %v2671 = vpack.c.b16 %v2610, %v2609
    %v2672 = vpack.c.b16 %v2612, %v2611
    %v2673 = vpack.c.b16 %v2614, %v2613
    %v2674 = vpack.c.b16 %v2616, %v2615
    %v2675 = vpack.c.b16 %v2618, %v2617
    %v2676 = vpack.c.b16 %v2620, %v2619
    %v2677 = vpack.c.b16 %v2622, %v2621
    %v2678 = vpack.c.b16 %v2624, %v2623
    %v2679 = vpack.c.b16 %v2626, %v2625
    %v2680 = vpack.c.b16 %v2628, %v2627
    %v2681 = vpack.c.b16 %v2630, %v2629
    %v2682 = vpack.c.b16 %v2632, %v2631
    %v2683 = vpack.c.b16 %v2634, %v2633
    %v2684 = vpack.c.b16 %v2636, %v2635
    %v2685 = vpack.c.b16 %v2638, %v2637
    %v2686 = vpack.c.b16 %v2640, %v2639
    %v2687 = vpack.c.b16 %v2642, %v2641
    %v2688 = vpack.c.b16 %v2644, %v2643
    %v2689 = vpack.c.b16 %v2646, %v2645
    %v2690 = vpack.c.b16 %v2648, %v2647
    %v2691 = vpack.c.b16 %v2650, %v2649
    %v2692 = vpack.c.b16 %v2652, %v2651
    %v2693 = vpack.c.b16 %v2654, %v2653
    %v2694 = vpack.c.b16 %v2656, %v2655
    %v2695 = vpack.c.b16 %v2658, %v2657
    %v2696 = vpack.c.b16 %v2660, %v2659
    %v2697 = vpack.c.b16 %v2662, %v2661
    %v2698 = vpack.c.b16 %v2664, %v2663
    %v2699 = vpack.c.b16 %v2666, %v2665
    %v2700 = vpack.c.b16 %v2668, %v2667
    %2733 = vmatprep.subr.bf16.mxu0 0
    %2734 = vmatpush1.bf16.msra.mxu0 %v2669
    %2735 = vmatprep.subr.bf16.mxu0 0
    %2736 = vmatpush1.bf16.msra.mxu0 %v2670
    %2737 = vmatprep.subr.bf16.mxu0 0
    %2738 = vmatpush1.bf16.msra.mxu0 %v2671
    %2739 = vmatprep.subr.bf16.mxu0 0
    %2740 = vmatpush1.bf16.msra.mxu0 %v2672
    %2741 = vmatprep.subr.bf16.mxu0 0
    %2742 = vmatpush1.bf16.msra.mxu0 %v2673
    %2743 = vmatprep.subr.bf16.mxu0 0
    %2744 = vmatpush1.bf16.msra.mxu0 %v2674
    %2745 = vmatprep.subr.bf16.mxu0 0
    %2746 = vmatpush1.bf16.msra.mxu0 %v2675
    %2747 = vmatprep.subr.bf16.mxu0 0
    %2748 = vmatpush1.bf16.msra.mxu0 %v2676
    %2749 = vmatprep.subr.bf16.mxu0 0
    %2750 = vmatpush1.bf16.msra.mxu0 %v2677
    %2751 = vmatprep.subr.bf16.mxu0 0
    %2752 = vmatpush1.bf16.msra.mxu0 %v2678
    %2753 = vmatprep.subr.bf16.mxu0 0
    %2754 = vmatpush1.bf16.msra.mxu0 %v2679
    %2755 = vmatprep.subr.bf16.mxu0 0
    %2756 = vmatpush1.bf16.msra.mxu0 %v2680
    %2757 = vmatprep.subr.bf16.mxu0 0
    %2758 = vmatpush1.bf16.msra.mxu0 %v2681
    %2759 = vmatprep.subr.bf16.mxu0 0
    %2760 = vmatpush1.bf16.msra.mxu0 %v2682
    %2761 = vmatprep.subr.bf16.mxu0 0
    %2762 = vmatpush1.bf16.msra.mxu0 %v2683
    %2763 = vmatprep.subr.bf16.mxu0 0
    %2764 = vmatpush1.bf16.msra.mxu0 %v2684
    %2765 = vmatprep.mubr.bf16.mxu0 %v2467
    %2766 = vmatmul.mubr.bf16.gmra.mrb[0].mxu0 %v2466
    %v2767 = vpop.f32.mrb[0].mxu0
    %v2768 = vadd.f32 %v2539, %v2767
    %v2769 = vpop.f32.mrb[0].mxu0
    %v2770 = vpop.f32.mrb[0].mxu0
    %v2771 = vadd.f32 %v2539, %v2770
    %v2772 = vpop.f32.mrb[0].mxu0
    %2773 = vdwg.mxu0
    %2774 = vmatprep.subr.bf16.mxu0 0
    %2775 = vmatpush1.bf16.msra.mxu0 %v2685
    %2776 = vmatprep.subr.bf16.mxu0 0
    %2777 = vmatpush1.bf16.msra.mxu0 %v2686
    %2778 = vmatprep.subr.bf16.mxu0 0
    %2779 = vmatpush1.bf16.msra.mxu0 %v2687
    %2780 = vmatprep.subr.bf16.mxu0 0
    %2781 = vmatpush1.bf16.msra.mxu0 %v2688
    %2782 = vmatprep.subr.bf16.mxu0 0
    %2783 = vmatpush1.bf16.msra.mxu0 %v2689
    %2784 = vmatprep.subr.bf16.mxu0 0
    %2785 = vmatpush1.bf16.msra.mxu0 %v2690
    %2786 = vmatprep.subr.bf16.mxu0 0
    %2787 = vmatpush1.bf16.msra.mxu0 %v2691
    %2788 = vmatprep.subr.bf16.mxu0 0
    %2789 = vmatpush1.bf16.msra.mxu0 %v2692
    %2790 = vmatprep.subr.bf16.mxu0 0
    %2791 = vmatpush1.bf16.msra.mxu0 %v2693
    %2792 = vmatprep.subr.bf16.mxu0 0
    %2793 = vmatpush1.bf16.msra.mxu0 %v2694
    %2794 = vmatprep.subr.bf16.mxu0 0
    %2795 = vmatpush1.bf16.msra.mxu0 %v2695
    %2796 = vmatprep.subr.bf16.mxu0 0
    %2797 = vmatpush1.bf16.msra.mxu0 %v2696
    %2798 = vmatprep.subr.bf16.mxu0 0
    %2799 = vmatpush1.bf16.msra.mxu0 %v2697
    %2800 = vmatprep.subr.bf16.mxu0 0
    %2801 = vmatpush1.bf16.msra.mxu0 %v2698
    %2802 = vmatprep.subr.bf16.mxu0 0
    %2803 = vmatpush1.bf16.msra.mxu0 %v2699
    %2804 = vmatprep.subr.bf16.mxu0 0
    %2805 = vmatpush1.bf16.msra.mxu0 %v2700
    %2806 = vmatprep.mubr.bf16.mxu0 %v2469
    %2807 = vmatmul.mubr.bf16.gmra.mrb[0].mxu0 %v2468
    %v2808 = vpop.f32.mrb[0].mxu0
    %v2809 = vadd.f32 %v2768, %v2808
    %v2810 = vpop.f32.mrb[0].mxu0
    %v2811 = vpop.f32.mrb[0].mxu0
    %v2812 = vadd.f32 %v2771, %v2811
    %v2813 = vpop.f32.mrb[0].mxu0
    %2814 = vdwg.mxu0
    %v2815 = vadd.f32 %v2083, %v2809
    %v2816 = vadd.f32 %v2084, %v2812
    %s2817 = scalar_lea.vmem %s5, 1
    %v2818 = vld [vmem:[%s2817] sm:$0x1]
    %s2819 = scalar_lea.vmem [#allocation6], 1
    %v2820 = vld [vmem:[%s2819] sm:$0x1]
    %2821 = vadd.xlane.f32.xlu0 %v2815
    %v2822 = vpop.xlane.xlu0 %2821
    %2823 = vadd.xlane.f32.xlu0 %v2816
    %v2824 = vpop.xlane.xlu0 %2823
    %v2825 = vmul.f32 %v2822, %v737
    %v2826 = vmul.f32 %v2824, %v737
    %v2827 = vsub.f32 %v2815, %v2825
    %v2828 = vsub.f32 %v2816, %v2826
    %v2829 = vmul.f32 %v2827, %v2827
    %v2830 = vmul.f32 %v2828, %v2828
    %2831 = vadd.xlane.f32.xlu0 %v2829
    %v2832 = vpop.xlane.xlu0 %2831
    %2833 = vadd.xlane.f32.xlu0 %v2830
    %v2834 = vpop.xlane.xlu0 %2833
    %v2835 = vmul.f32 %v2832, %v737
    %v2836 = vmul.f32 %v2834, %v737
    %v2837 = vadd.f32 %v2835, 1e-06
    %v2838 = vadd.f32 %v2836, 1e-06
    %v2839 = vrsqrt.pop %v2837
    %v2840 = vrsqrt.pop %v2838
    %v2841 = vmul.f32 %v2827, %v2839
    %v2842 = vmul.f32 %v2828, %v2840
    %v2844 = vlaneseq
    %v2845 = vshrl.u32 %v2844, 7
    %v2846 = vsub.s32 0, %v2845
    %v2847 = vrot.slane %v2818, %v2846
    %v2849 = vmul.f32 %v2841, %v2847
    %v2850 = vmul.f32 %v2842, %v2847
    %v2852 = vlaneseq
    %v2853 = vshrl.u32 %v2852, 7
    %v2854 = vsub.s32 0, %v2853
    %v2855 = vrot.slane %v2820, %v2854
    %v2857 = vadd.f32 %v2849, %v2855
    %v2858 = vadd.f32 %v2850, %v2855
    %v2859 = vpack.c.bf16 %v2858, %v2857
    %s2860 = scalar_lea.vmem %s7, 192
    %v2861 = vld [vmem:[%s2860] sm:$0xff]
    %v2862 = vld [vmem:[%s2860 + $0x8] sm:$0xf]
    %v2863 = vld [vmem:[%s2860 + $0xc] sm:$0xff]
    %v2864 = vld [vmem:[%s2860 + $0x14] sm:$0xf]
    %v2865 = vld [vmem:[%s2860 + $0x18] sm:$0xff]
    %v2866 = vld [vmem:[%s2860 + $0x20] sm:$0xf]
    %v2867 = vld [vmem:[%s2860 + $0x24] sm:$0xff]
    %v2868 = vld [vmem:[%s2860 + $0x2c] sm:$0xf]
    %v2869 = vld [vmem:[%s2860 + $0x30] sm:$0xff]
    %v2870 = vld [vmem:[%s2860 + $0x38] sm:$0xf]
    %v2871 = vld [vmem:[%s2860 + $0x3c] sm:$0xff]
    %v2872 = vld [vmem:[%s2860 + $0x44] sm:$0xf]
    %v2873 = vld [vmem:[%s2860 + $0x48] sm:$0xff]
    %v2874 = vld [vmem:[%s2860 + $0x50] sm:$0xf]
    %v2875 = vld [vmem:[%s2860 + $0x54] sm:$0xff]
    %v2876 = vld [vmem:[%s2860 + $0x5c] sm:$0xf]
    %v2877 = vld [vmem:[%s2860 + $0x60] sm:$0xff]
    %v2878 = vld [vmem:[%s2860 + $0x68] sm:$0xf]
    %v2879 = vld [vmem:[%s2860 + $0x6c] sm:$0xff]
    %v2880 = vld [vmem:[%s2860 + $0x74] sm:$0xf]
    %v2881 = vld [vmem:[%s2860 + $0x78] sm:$0xff]
    %v2882 = vld [vmem:[%s2860 + $0x80] sm:$0xf]
    %v2883 = vld [vmem:[%s2860 + $0x84] sm:$0xff]
    %v2884 = vld [vmem:[%s2860 + $0x8c] sm:$0xf]
    %v2885 = vld [vmem:[%s2860 + $0x90] sm:$0xff]
    %v2886 = vld [vmem:[%s2860 + $0x98] sm:$0xf]
    %v2887 = vld [vmem:[%s2860 + $0x9c] sm:$0xff]
    %v2888 = vld [vmem:[%s2860 + $0xa4] sm:$0xf]
    %v2889 = vld [vmem:[%s2860 + $0xa8] sm:$0xff]
    %v2890 = vld [vmem:[%s2860 + $0xb0] sm:$0xf]
    %v2891 = vld [vmem:[%s2860 + $0xb4] sm:$0xff]
    %v2892 = vld [vmem:[%s2860 + $0xbc] sm:$0xf]
    %s2893 = scalar_lea.vmem [#allocation8], 3
    %v2894 = vld [vmem:[%s2893] sm:$0x7]
    %v2896 = vlaneseq
    %v2897 = vshrl.u32 %v2896, 7
    %v2898 = vsub.s32 0, %v2897
    %v2899 = vrot.slane %v2894, %v2898
    %v2900 = vlaneseq
    %v2901 = vshrl.u32 %v2900, 7
    %v2902 = vsub.s32 1, %v2901
    %v2903 = vrot.slane %v2894, %v2902
    %v2904 = vlaneseq
    %v2905 = vshrl.u32 %v2904, 7
    %v2906 = vsub.s32 2, %v2905
    %v2907 = vrot.slane %v2894, %v2906
    %v2943 = vunpack.c.l.b16 %v2861
    %v2944 = vunpack.c.h.b16 %v2861
    %v2945 = vunpack.c.l.b16 %v2862
    %v2946 = vunpack.c.l.b16 %v2863
    %v2947 = vunpack.c.h.b16 %v2863
    %v2948 = vunpack.c.l.b16 %v2864
    %v2949 = vunpack.c.l.b16 %v2865
    %v2950 = vunpack.c.h.b16 %v2865
    %v2951 = vunpack.c.l.b16 %v2866
    %v2952 = vunpack.c.l.b16 %v2867
    %v2953 = vunpack.c.h.b16 %v2867
    %v2954 = vunpack.c.l.b16 %v2868
    %v2955 = vunpack.c.l.b16 %v2869
    %v2956 = vunpack.c.h.b16 %v2869
    %v2957 = vunpack.c.l.b16 %v2870
    %v2958 = vunpack.c.l.b16 %v2871
    %v2959 = vunpack.c.h.b16 %v2871
    %v2960 = vunpack.c.l.b16 %v2872
    %v2961 = vunpack.c.l.b16 %v2873
    %v2962 = vunpack.c.h.b16 %v2873
    %v2963 = vunpack.c.l.b16 %v2874
    %v2964 = vunpack.c.l.b16 %v2875
    %v2965 = vunpack.c.h.b16 %v2875
    %v2966 = vunpack.c.l.b16 %v2876
    %v2967 = vunpack.c.l.b16 %v2877
    %v2968 = vunpack.c.h.b16 %v2877
    %v2969 = vunpack.c.l.b16 %v2878
    %v2970 = vunpack.c.l.b16 %v2879
    %v2971 = vunpack.c.h.b16 %v2879
    %v2972 = vunpack.c.l.b16 %v2880
    %v2973 = vunpack.c.l.b16 %v2881
    %v2974 = vunpack.c.h.b16 %v2881
    %v2975 = vunpack.c.l.b16 %v2882
    %v2976 = vunpack.c.l.b16 %v2883
    %v2977 = vunpack.c.h.b16 %v2883
    %v2978 = vunpack.c.l.b16 %v2884
    %v2979 = vunpack.c.l.b16 %v2885
    %v2980 = vunpack.c.h.b16 %v2885
    %v2981 = vunpack.c.l.b16 %v2886
    %v2982 = vunpack.c.l.b16 %v2887
    %v2983 = vunpack.c.h.b16 %v2887
    %v2984 = vunpack.c.l.b16 %v2888
    %v2985 = vunpack.c.l.b16 %v2889
    %v2986 = vunpack.c.h.b16 %v2889
    %v2987 = vunpack.c.l.b16 %v2890
    %v2988 = vunpack.c.l.b16 %v2891
    %v2989 = vunpack.c.h.b16 %v2891
    %v2990 = vunpack.c.l.b16 %v2892
    %v2991 = vpack.c.b16 %v2946, %v2943
    %v2992 = vpack.c.b16 %v2947, %v2944
    %v2993 = vpack.c.b16 %v2948, %v2945
    %v2994 = vpack.c.b16 %v2952, %v2949
    %v2995 = vpack.c.b16 %v2953, %v2950
    %v2996 = vpack.c.b16 %v2954, %v2951
    %v2997 = vpack.c.b16 %v2958, %v2955
    %v2998 = vpack.c.b16 %v2959, %v2956
    %v2999 = vpack.c.b16 %v2960, %v2957
    %v3000 = vpack.c.b16 %v2964, %v2961
    %v3001 = vpack.c.b16 %v2965, %v2962
    %v3002 = vpack.c.b16 %v2966, %v2963
    %v3003 = vpack.c.b16 %v2970, %v2967
    %v3004 = vpack.c.b16 %v2971, %v2968
    %v3005 = vpack.c.b16 %v2972, %v2969
    %v3006 = vpack.c.b16 %v2976, %v2973
    %v3007 = vpack.c.b16 %v2977, %v2974
    %v3008 = vpack.c.b16 %v2978, %v2975
    %v3009 = vpack.c.b16 %v2982, %v2979
    %v3010 = vpack.c.b16 %v2983, %v2980
    %v3011 = vpack.c.b16 %v2984, %v2981
    %v3012 = vpack.c.b16 %v2988, %v2985
    %v3013 = vpack.c.b16 %v2989, %v2986
    %v3014 = vpack.c.b16 %v2990, %v2987
    %3039 = vmatprep.subr.bf16.mxu0 %v2992
    %3040 = vmatpush1.bf16.msra.mxu0 %v2991
    %3041 = vmatprep.subr.bf16.mxu0 %v2995
    %3042 = vmatpush1.bf16.msra.mxu0 %v2994
    %3043 = vmatprep.subr.bf16.mxu0 %v2998
    %3044 = vmatpush1.bf16.msra.mxu0 %v2997
    %3045 = vmatprep.subr.bf16.mxu0 %v3001
    %3046 = vmatpush1.bf16.msra.mxu0 %v3000
    %3047 = vmatprep.subr.bf16.mxu0 %v3004
    %3048 = vmatpush1.bf16.msra.mxu0 %v3003
    %3049 = vmatprep.subr.bf16.mxu0 %v3007
    %3050 = vmatpush1.bf16.msra.mxu0 %v3006
    %3051 = vmatprep.subr.bf16.mxu0 %v3010
    %3052 = vmatpush1.bf16.msra.mxu0 %v3009
    %3053 = vmatprep.subr.bf16.mxu0 %v3013
    %3054 = vmatpush1.bf16.msra.mxu0 %v3012
    %3055 = vmatprep.subr.bf16.mxu0 0
    %3056 = vmatpush1.bf16.msra.mxu0 0
    %3057 = vmatprep.subr.bf16.mxu0 0
    %3058 = vmatpush1.bf16.msra.mxu0 0
    %3059 = vmatprep.subr.bf16.mxu0 0
    %3060 = vmatpush1.bf16.msra.mxu0 0
    %3061 = vmatprep.subr.bf16.mxu0 0
    %3062 = vmatpush1.bf16.msra.mxu0 0
    %3063 = vmatprep.subr.bf16.mxu0 0
    %3064 = vmatpush1.bf16.msra.mxu0 0
    %3065 = vmatprep.subr.bf16.mxu0 0
    %3066 = vmatpush1.bf16.msra.mxu0 0
    %3067 = vmatprep.subr.bf16.mxu0 0
    %3068 = vmatpush1.bf16.msra.mxu0 0
    %3069 = vmatprep.subr.bf16.mxu0 0
    %3070 = vmatpush1.bf16.msra.mxu0 0
    %3071 = vmatprep.mubr.bf16.mxu0 0
    %3072 = vmatmul.mubr.bf16.gmra.mrb[0].mxu0 %v2859
    %v3073 = vpop.f32.mrb[0].mxu0
    %v3074 = vadd.f32 %v2899, %v3073
    %v3075 = vpop.f32.mrb[0].mxu0
    %v3076 = vadd.f32 %v2903, %v3075
    %v3077 = vpop.f32.mrb[0].mxu0
    %v3078 = vadd.f32 %v2899, %v3077
    %v3079 = vpop.f32.mrb[0].mxu0
    %v3080 = vadd.f32 %v2903, %v3079
    %3081 = vdwg.mxu0
    %3082 = vmatprep.subr.bf16.mxu0 0
    %3083 = vmatpush1.bf16.msra.mxu0 %v2993
    %3084 = vmatprep.subr.bf16.mxu0 0
    %3085 = vmatpush1.bf16.msra.mxu0 %v2996
    %3086 = vmatprep.subr.bf16.mxu0 0
    %3087 = vmatpush1.bf16.msra.mxu0 %v2999
    %3088 = vmatprep.subr.bf16.mxu0 0
    %3089 = vmatpush1.bf16.msra.mxu0 %v3002
    %3090 = vmatprep.subr.bf16.mxu0 0
    %3091 = vmatpush1.bf16.msra.mxu0 %v3005
    %3092 = vmatprep.subr.bf16.mxu0 0
    %3093 = vmatpush1.bf16.msra.mxu0 %v3008
    %3094 = vmatprep.subr.bf16.mxu0 0
    %3095 = vmatpush1.bf16.msra.mxu0 %v3011
    %3096 = vmatprep.subr.bf16.mxu0 0
    %3097 = vmatpush1.bf16.msra.mxu0 %v3014
    %3098 = vmatprep.subr.bf16.mxu0 0
    %3099 = vmatpush1.bf16.msra.mxu0 0
    %3100 = vmatprep.subr.bf16.mxu0 0
    %3101 = vmatpush1.bf16.msra.mxu0 0
    %3102 = vmatprep.subr.bf16.mxu0 0
    %3103 = vmatpush1.bf16.msra.mxu0 0
    %3104 = vmatprep.subr.bf16.mxu0 0
    %3105 = vmatpush1.bf16.msra.mxu0 0
    %3106 = vmatprep.subr.bf16.mxu0 0
    %3107 = vmatpush1.bf16.msra.mxu0 0
    %3108 = vmatprep.subr.bf16.mxu0 0
    %3109 = vmatpush1.bf16.msra.mxu0 0
    %3110 = vmatprep.subr.bf16.mxu0 0
    %3111 = vmatpush1.bf16.msra.mxu0 0
    %3112 = vmatprep.subr.bf16.mxu0 0
    %3113 = vmatpush1.bf16.msra.mxu0 0
    %3114 = vmatprep.mubr.bf16.mxu0 0
    %3115 = vmatmul.mubr.bf16.gmra.mrb[0].mxu0 %v2859
    %v3116 = vpop.f32.mrb[0].mxu0
    %v3117 = vadd.f32 %v2907, %v3116
    %v3118 = vpop.f32.mrb[0].mxu0
    %v3119 = vpop.f32.mrb[0].mxu0
    %v3120 = vadd.f32 %v2907, %v3119
    %v3121 = vpop.f32.mrb[0].mxu0
    %3122 = vdwg.mxu0
    %v3123 = vpack.c.bf16 %v3074, %v3074
    %v3124 = vpack.c.bf16 %v3076, %v3076
    %v3125 = vpack.c.bf16 %v3117, %v3117
    %v3127 = vsel %vm1037, %v3123, 0
    %v3130 = vsel %vm1037, %v3124, 0
    %3132 = vmatprep.subr.bf16.mxu0 0
    %3133 = vmatpush1.bf16.xpose.msra.mxu0 %v3130
    %3134 = vmatprep.subr.bf16.mxu0 0
    %3135 = vmatpush1.bf16.xpose.msra.mxu0 0
    %3136 = vmatprep.subr.bf16.mxu0 0
    %3137 = vmatpush1.bf16.xpose.msra.mxu0 0
    %3138 = vmatprep.subr.bf16.mxu0 0
    %3139 = vmatpush1.bf16.xpose.msra.mxu0 0
    %3140 = vmatprep.subr.bf16.mxu0 0
    %3141 = vmatpush1.bf16.xpose.msra.mxu0 0
    %3142 = vmatprep.subr.bf16.mxu0 0
    %3143 = vmatpush1.bf16.xpose.msra.mxu0 0
    %3144 = vmatprep.subr.bf16.mxu0 0
    %3145 = vmatpush1.bf16.xpose.msra.mxu0 0
    %3146 = vmatprep.subr.bf16.mxu0 0
    %3147 = vmatpush1.bf16.xpose.msra.mxu0 0
    %3148 = vmatprep.subr.bf16.mxu0 0
    %3149 = vmatpush1.bf16.xpose.msra.mxu0 0
    %3150 = vmatprep.subr.bf16.mxu0 0
    %3151 = vmatpush1.bf16.xpose.msra.mxu0 0
    %3152 = vmatprep.subr.bf16.mxu0 0
    %3153 = vmatpush1.bf16.xpose.msra.mxu0 0
    %3154 = vmatprep.subr.bf16.mxu0 0
    %3155 = vmatpush1.bf16.xpose.msra.mxu0 0
    %3156 = vmatprep.subr.bf16.mxu0 0
    %3157 = vmatpush1.bf16.xpose.msra.mxu0 0
    %3158 = vmatprep.subr.bf16.mxu0 0
    %3159 = vmatpush1.bf16.xpose.msra.mxu0 0
    %3160 = vmatprep.subr.bf16.mxu0 0
    %3161 = vmatpush1.bf16.xpose.msra.mxu0 0
    %3162 = vmatprep.subr.bf16.mxu0 0
    %3163 = vmatpush1.bf16.xpose.msra.mxu0 0
    %3164 = vmatprep.mubr.bf16.mxu0 0
    %3165 = vmatmul.mubr.bf16.gmra.mrb[0].mxu0 %v3127
    %v3166 = vpop.f32.mrb[0].mxu0
    %v3167 = vadd.f32 0.0, %v3166
    %v3168 = vpop.f32.mrb[0].mxu0
    %v3169 = vpop.f32.mrb[0].mxu0
    %v3170 = vpop.f32.mrb[0].mxu0
    %3171 = vdwg.mxu0
    %v3172 = vmul.f32 %v3167, 0.17677669
    %v3173 = vadd.f32 %v3172, %v730
    %v3174 = vsel %vm1086, %v3173, -inf
    %3175 = vmax.xlane.f32.xlu0 %v3174
    %v3176 = vpop.xlane.xlu0 %3175
    %v3177 = vsub.f32 %v3173, %v3176
    %v3178 = vmul.f32 %v3177, 1.442695
    %v3179 = vpow.pop %v3178
    %v3180 = vsel %vm1086, %v3179, 0.0
    %3181 = vadd.xlane.f32.xlu0 %v3180
    %v3182 = vpop.xlane.xlu0 %3181
    %v3183 = vrcp.pop %v3182
    %v3184 = vmul.f32 %v3179, %v3183
    %v3185 = vpack.c.bf16 %v3184, %v3184
    %v3187 = vsel %vm1086, %v3185, 0
    %v3190 = vsel %vm1102, %v3125, 0
    %3192 = vmatprep.subr.bf16.mxu0 0
    %3193 = vmatpush1.bf16.msra.mxu0 %v3190
    %3194 = vmatprep.subr.bf16.mxu0 0
    %3195 = vmatpush1.bf16.msra.mxu0 0
    %3196 = vmatprep.subr.bf16.mxu0 0
    %3197 = vmatpush1.bf16.msra.mxu0 0
    %3198 = vmatprep.subr.bf16.mxu0 0
    %3199 = vmatpush1.bf16.msra.mxu0 0
    %3200 = vmatprep.subr.bf16.mxu0 0
    %3201 = vmatpush1.bf16.msra.mxu0 0
    %3202 = vmatprep.subr.bf16.mxu0 0
    %3203 = vmatpush1.bf16.msra.mxu0 0
    %3204 = vmatprep.subr.bf16.mxu0 0
    %3205 = vmatpush1.bf16.msra.mxu0 0
    %3206 = vmatprep.subr.bf16.mxu0 0
    %3207 = vmatpush1.bf16.msra.mxu0 0
    %3208 = vmatprep.subr.bf16.mxu0 0
    %3209 = vmatpush1.bf16.msra.mxu0 0
    %3210 = vmatprep.subr.bf16.mxu0 0
    %3211 = vmatpush1.bf16.msra.mxu0 0
    %3212 = vmatprep.subr.bf16.mxu0 0
    %3213 = vmatpush1.bf16.msra.mxu0 0
    %3214 = vmatprep.subr.bf16.mxu0 0
    %3215 = vmatpush1.bf16.msra.mxu0 0
    %3216 = vmatprep.subr.bf16.mxu0 0
    %3217 = vmatpush1.bf16.msra.mxu0 0
    %3218 = vmatprep.subr.bf16.mxu0 0
    %3219 = vmatpush1.bf16.msra.mxu0 0
    %3220 = vmatprep.subr.bf16.mxu0 0
    %3221 = vmatpush1.bf16.msra.mxu0 0
    %3222 = vmatprep.subr.bf16.mxu0 0
    %3223 = vmatpush1.bf16.msra.mxu0 0
    %3224 = vmatprep.mubr.bf16.mxu0 0
    %3225 = vmatmul.mubr.bf16.gmra.mrb[0].mxu0 %v3187
    %v3226 = vpop.f32.mrb[0].mxu0
    %v3227 = vadd.f32 0.0, %v3226
    %v3228 = vpop.f32.mrb[0].mxu0
    %v3229 = vpop.f32.mrb[0].mxu0
    %v3230 = vpop.f32.mrb[0].mxu0
    %3231 = vdwg.mxu0
    %3232 = vst.msk [vmem:[#allocation3] sm:$0xff] %vm1037, %v3227
    %3234 = vrot.lane.b32.xlu0 %v3123, 96
    %v3235 = vpop.permute.xlu0 %3234
    %3237 = vrot.lane.b32.xlu0 %v3124, 96
    %v3238 = vpop.permute.xlu0 %3237
    %v3240 = vsel %vm1037, %v3235, 0
    %v3243 = vsel %vm1037, %v3238, 0
    %3245 = vmatprep.subr.bf16.mxu0 0
    %3246 = vmatpush1.bf16.xpose.msra.mxu0 %v3243
    %3247 = vmatprep.subr.bf16.mxu0 0
    %3248 = vmatpush1.bf16.xpose.msra.mxu0 0
    %3249 = vmatprep.subr.bf16.mxu0 0
    %3250 = vmatpush1.bf16.xpose.msra.mxu0 0
    %3251 = vmatprep.subr.bf16.mxu0 0
    %3252 = vmatpush1.bf16.xpose.msra.mxu0 0
    %3253 = vmatprep.subr.bf16.mxu0 0
    %3254 = vmatpush1.bf16.xpose.msra.mxu0 0
    %3255 = vmatprep.subr.bf16.mxu0 0
    %3256 = vmatpush1.bf16.xpose.msra.mxu0 0
    %3257 = vmatprep.subr.bf16.mxu0 0
    %3258 = vmatpush1.bf16.xpose.msra.mxu0 0
    %3259 = vmatprep.subr.bf16.mxu0 0
    %3260 = vmatpush1.bf16.xpose.msra.mxu0 0
    %3261 = vmatprep.subr.bf16.mxu0 0
    %3262 = vmatpush1.bf16.xpose.msra.mxu0 0
    %3263 = vmatprep.subr.bf16.mxu0 0
    %3264 = vmatpush1.bf16.xpose.msra.mxu0 0
    %3265 = vmatprep.subr.bf16.mxu0 0
    %3266 = vmatpush1.bf16.xpose.msra.mxu0 0
    %3267 = vmatprep.subr.bf16.mxu0 0
    %3268 = vmatpush1.bf16.xpose.msra.mxu0 0
    %3269 = vmatprep.subr.bf16.mxu0 0
    %3270 = vmatpush1.bf16.xpose.msra.mxu0 0
    %3271 = vmatprep.subr.bf16.mxu0 0
    %3272 = vmatpush1.bf16.xpose.msra.mxu0 0
    %3273 = vmatprep.subr.bf16.mxu0 0
    %3274 = vmatpush1.bf16.xpose.msra.mxu0 0
    %3275 = vmatprep.subr.bf16.mxu0 0
    %3276 = vmatpush1.bf16.xpose.msra.mxu0 0
    %3277 = vmatprep.mubr.bf16.mxu0 0
    %3278 = vmatmul.mubr.bf16.gmra.mrb[0].mxu0 %v3240
    %v3279 = vpop.f32.mrb[0].mxu0
    %v3280 = vadd.f32 0.0, %v3279
    %v3281 = vpop.f32.mrb[0].mxu0
    %v3282 = vpop.f32.mrb[0].mxu0
    %v3283 = vpop.f32.mrb[0].mxu0
    %3284 = vdwg.mxu0
    %v3285 = vmul.f32 %v3280, 0.17677669
    %v3286 = vadd.f32 %v3285, %v730
    %v3287 = vsel %vm1086, %v3286, -inf
    %3288 = vmax.xlane.f32.xlu0 %v3287
    %v3289 = vpop.xlane.xlu0 %3288
    %v3290 = vsub.f32 %v3286, %v3289
    %v3291 = vmul.f32 %v3290, 1.442695
    %v3292 = vpow.pop %v3291
    %v3293 = vsel %vm1086, %v3292, 0.0
    %3294 = vadd.xlane.f32.xlu0 %v3293
    %v3295 = vpop.xlane.xlu0 %3294
    %v3296 = vrcp.pop %v3295
    %v3297 = vmul.f32 %v3292, %v3296
    %v3298 = vpack.c.bf16 %v3297, %v3297
    %3300 = vrot.lane.b32.xlu0 %v3125, 96
    %v3301 = vpop.permute.xlu0 %3300
    %v3303 = vsel %vm1086, %v3298, 0
    %v3306 = vsel %vm1102, %v3301, 0
    %3308 = vmatprep.subr.bf16.mxu0 0
    %3309 = vmatpush1.bf16.msra.mxu0 %v3306
    %3310 = vmatprep.subr.bf16.mxu0 0
    %3311 = vmatpush1.bf16.msra.mxu0 0
    %3312 = vmatprep.subr.bf16.mxu0 0
    %3313 = vmatpush1.bf16.msra.mxu0 0
    %3314 = vmatprep.subr.bf16.mxu0 0
    %3315 = vmatpush1.bf16.msra.mxu0 0
    %3316 = vmatprep.subr.bf16.mxu0 0
    %3317 = vmatpush1.bf16.msra.mxu0 0
    %3318 = vmatprep.subr.bf16.mxu0 0
    %3319 = vmatpush1.bf16.msra.mxu0 0
    %3320 = vmatprep.subr.bf16.mxu0 0
    %3321 = vmatpush1.bf16.msra.mxu0 0
    %3322 = vmatprep.subr.bf16.mxu0 0
    %3323 = vmatpush1.bf16.msra.mxu0 0
    %3324 = vmatprep.subr.bf16.mxu0 0
    %3325 = vmatpush1.bf16.msra.mxu0 0
    %3326 = vmatprep.subr.bf16.mxu0 0
    %3327 = vmatpush1.bf16.msra.mxu0 0
    %3328 = vmatprep.subr.bf16.mxu0 0
    %3329 = vmatpush1.bf16.msra.mxu0 0
    %3330 = vmatprep.subr.bf16.mxu0 0
    %3331 = vmatpush1.bf16.msra.mxu0 0
    %3332 = vmatprep.subr.bf16.mxu0 0
    %3333 = vmatpush1.bf16.msra.mxu0 0
    %3334 = vmatprep.subr.bf16.mxu0 0
    %3335 = vmatpush1.bf16.msra.mxu0 0
    %3336 = vmatprep.subr.bf16.mxu0 0
    %3337 = vmatpush1.bf16.msra.mxu0 0
    %3338 = vmatprep.subr.bf16.mxu0 0
    %3339 = vmatpush1.bf16.msra.mxu0 0
    %3340 = vmatprep.mubr.bf16.mxu0 0
    %3341 = vmatmul.mubr.bf16.gmra.mrb[0].mxu0 %v3303
    %v3342 = vpop.f32.mrb[0].mxu0
    %v3343 = vadd.f32 0.0, %v3342
    %v3344 = vpop.f32.mrb[0].mxu0
    %v3345 = vpop.f32.mrb[0].mxu0
    %v3346 = vpop.f32.mrb[0].mxu0
    %3347 = vdwg.mxu0
    %3349 = vrot.lane.b32.xlu0 %v3343, 32
    %v3350 = vpop.permute.xlu0 %3349
    %3352 = vst.msk [vmem:[#allocation3] sm:$0xff] %vm1266, %v3350
    %3353 = vrot.lane.b32.xlu0 %v3123, 64
    %v3354 = vpop.permute.xlu0 %3353
    %3355 = vrot.lane.b32.xlu0 %v3124, 64
    %v3356 = vpop.permute.xlu0 %3355
    %v3358 = vsel %vm1037, %v3354, 0
    %v3361 = vsel %vm1037, %v3356, 0
    %3363 = vmatprep.subr.bf16.mxu0 0
    %3364 = vmatpush1.bf16.xpose.msra.mxu0 %v3361
    %3365 = vmatprep.subr.bf16.mxu0 0
    %3366 = vmatpush1.bf16.xpose.msra.mxu0 0
    %3367 = vmatprep.subr.bf16.mxu0 0
    %3368 = vmatpush1.bf16.xpose.msra.mxu0 0
    %3369 = vmatprep.subr.bf16.mxu0 0
    %3370 = vmatpush1.bf16.xpose.msra.mxu0 0
    %3371 = vmatprep.subr.bf16.mxu0 0
    %3372 = vmatpush1.bf16.xpose.msra.mxu0 0
    %3373 = vmatprep.subr.bf16.mxu0 0
    %3374 = vmatpush1.bf16.xpose.msra.mxu0 0
    %3375 = vmatprep.subr.bf16.mxu0 0
    %3376 = vmatpush1.bf16.xpose.msra.mxu0 0
    %3377 = vmatprep.subr.bf16.mxu0 0
    %3378 = vmatpush1.bf16.xpose.msra.mxu0 0
    %3379 = vmatprep.subr.bf16.mxu0 0
    %3380 = vmatpush1.bf16.xpose.msra.mxu0 0
    %3381 = vmatprep.subr.bf16.mxu0 0
    %3382 = vmatpush1.bf16.xpose.msra.mxu0 0
    %3383 = vmatprep.subr.bf16.mxu0 0
    %3384 = vmatpush1.bf16.xpose.msra.mxu0 0
    %3385 = vmatprep.subr.bf16.mxu0 0
    %3386 = vmatpush1.bf16.xpose.msra.mxu0 0
    %3387 = vmatprep.subr.bf16.mxu0 0
    %3388 = vmatpush1.bf16.xpose.msra.mxu0 0
    %3389 = vmatprep.subr.bf16.mxu0 0
    %3390 = vmatpush1.bf16.xpose.msra.mxu0 0
    %3391 = vmatprep.subr.bf16.mxu0 0
    %3392 = vmatpush1.bf16.xpose.msra.mxu0 0
    %3393 = vmatprep.subr.bf16.mxu0 0
    %3394 = vmatpush1.bf16.xpose.msra.mxu0 0
    %3395 = vmatprep.mubr.bf16.mxu0 0
    %3396 = vmatmul.mubr.bf16.gmra.mrb[0].mxu0 %v3358
    %v3397 = vpop.f32.mrb[0].mxu0
    %v3398 = vadd.f32 0.0, %v3397
    %v3399 = vpop.f32.mrb[0].mxu0
    %v3400 = vpop.f32.mrb[0].mxu0
    %v3401 = vpop.f32.mrb[0].mxu0
    %3402 = vdwg.mxu0
    %v3403 = vmul.f32 %v3398, 0.17677669
    %v3404 = vadd.f32 %v3403, %v730
    %v3405 = vsel %vm1086, %v3404, -inf
    %3406 = vmax.xlane.f32.xlu0 %v3405
    %v3407 = vpop.xlane.xlu0 %3406
    %v3408 = vsub.f32 %v3404, %v3407
    %v3409 = vmul.f32 %v3408, 1.442695
    %v3410 = vpow.pop %v3409
    %v3411 = vsel %vm1086, %v3410, 0.0
    %3412 = vadd.xlane.f32.xlu0 %v3411
    %v3413 = vpop.xlane.xlu0 %3412
    %v3414 = vrcp.pop %v3413
    %v3415 = vmul.f32 %v3410, %v3414
    %v3416 = vpack.c.bf16 %v3415, %v3415
    %3417 = vrot.lane.b32.xlu0 %v3125, 64
    %v3418 = vpop.permute.xlu0 %3417
    %v3420 = vsel %vm1086, %v3416, 0
    %v3423 = vsel %vm1102, %v3418, 0
    %3425 = vmatprep.subr.bf16.mxu0 0
    %3426 = vmatpush1.bf16.msra.mxu0 %v3423
    %3427 = vmatprep.subr.bf16.mxu0 0
    %3428 = vmatpush1.bf16.msra.mxu0 0
    %3429 = vmatprep.subr.bf16.mxu0 0
    %3430 = vmatpush1.bf16.msra.mxu0 0
    %3431 = vmatprep.subr.bf16.mxu0 0
    %3432 = vmatpush1.bf16.msra.mxu0 0
    %3433 = vmatprep.subr.bf16.mxu0 0
    %3434 = vmatpush1.bf16.msra.mxu0 0
    %3435 = vmatprep.subr.bf16.mxu0 0
    %3436 = vmatpush1.bf16.msra.mxu0 0
    %3437 = vmatprep.subr.bf16.mxu0 0
    %3438 = vmatpush1.bf16.msra.mxu0 0
    %3439 = vmatprep.subr.bf16.mxu0 0
    %3440 = vmatpush1.bf16.msra.mxu0 0
    %3441 = vmatprep.subr.bf16.mxu0 0
    %3442 = vmatpush1.bf16.msra.mxu0 0
    %3443 = vmatprep.subr.bf16.mxu0 0
    %3444 = vmatpush1.bf16.msra.mxu0 0
    %3445 = vmatprep.subr.bf16.mxu0 0
    %3446 = vmatpush1.bf16.msra.mxu0 0
    %3447 = vmatprep.subr.bf16.mxu0 0
    %3448 = vmatpush1.bf16.msra.mxu0 0
    %3449 = vmatprep.subr.bf16.mxu0 0
    %3450 = vmatpush1.bf16.msra.mxu0 0
    %3451 = vmatprep.subr.bf16.mxu0 0
    %3452 = vmatpush1.bf16.msra.mxu0 0
    %3453 = vmatprep.subr.bf16.mxu0 0
    %3454 = vmatpush1.bf16.msra.mxu0 0
    %3455 = vmatprep.subr.bf16.mxu0 0
    %3456 = vmatpush1.bf16.msra.mxu0 0
    %3457 = vmatprep.mubr.bf16.mxu0 0
    %3458 = vmatmul.mubr.bf16.gmra.mrb[0].mxu0 %v3420
    %v3459 = vpop.f32.mrb[0].mxu0
    %v3460 = vadd.f32 0.0, %v3459
    %v3461 = vpop.f32.mrb[0].mxu0
    %v3462 = vpop.f32.mrb[0].mxu0
    %v3463 = vpop.f32.mrb[0].mxu0
    %3464 = vdwg.mxu0
    %3466 = vrot.lane.b32.xlu0 %v3460, 64
    %v3467 = vpop.permute.xlu0 %3466
    %3469 = vst.msk [vmem:[#allocation3] sm:$0xff] %vm1384, %v3467
    %3470 = vrot.lane.b32.xlu0 %v3123, 32
    %v3471 = vpop.permute.xlu0 %3470
    %3472 = vrot.lane.b32.xlu0 %v3124, 32
    %v3473 = vpop.permute.xlu0 %3472
    %v3475 = vsel %vm1037, %v3471, 0
    %v3478 = vsel %vm1037, %v3473, 0
    %3480 = vmatprep.subr.bf16.mxu0 0
    %3481 = vmatpush1.bf16.xpose.msra.mxu0 %v3478
    %3482 = vmatprep.subr.bf16.mxu0 0
    %3483 = vmatpush1.bf16.xpose.msra.mxu0 0
    %3484 = vmatprep.subr.bf16.mxu0 0
    %3485 = vmatpush1.bf16.xpose.msra.mxu0 0
    %3486 = vmatprep.subr.bf16.mxu0 0
    %3487 = vmatpush1.bf16.xpose.msra.mxu0 0
    %3488 = vmatprep.subr.bf16.mxu0 0
    %3489 = vmatpush1.bf16.xpose.msra.mxu0 0
    %3490 = vmatprep.subr.bf16.mxu0 0
    %3491 = vmatpush1.bf16.xpose.msra.mxu0 0
    %3492 = vmatprep.subr.bf16.mxu0 0
    %3493 = vmatpush1.bf16.xpose.msra.mxu0 0
    %3494 = vmatprep.subr.bf16.mxu0 0
    %3495 = vmatpush1.bf16.xpose.msra.mxu0 0
    %3496 = vmatprep.subr.bf16.mxu0 0
    %3497 = vmatpush1.bf16.xpose.msra.mxu0 0
    %3498 = vmatprep.subr.bf16.mxu0 0
    %3499 = vmatpush1.bf16.xpose.msra.mxu0 0
    %3500 = vmatprep.subr.bf16.mxu0 0
    %3501 = vmatpush1.bf16.xpose.msra.mxu0 0
    %3502 = vmatprep.subr.bf16.mxu0 0
    %3503 = vmatpush1.bf16.xpose.msra.mxu0 0
    %3504 = vmatprep.subr.bf16.mxu0 0
    %3505 = vmatpush1.bf16.xpose.msra.mxu0 0
    %3506 = vmatprep.subr.bf16.mxu0 0
    %3507 = vmatpush1.bf16.xpose.msra.mxu0 0
    %3508 = vmatprep.subr.bf16.mxu0 0
    %3509 = vmatpush1.bf16.xpose.msra.mxu0 0
    %3510 = vmatprep.subr.bf16.mxu0 0
    %3511 = vmatpush1.bf16.xpose.msra.mxu0 0
    %3512 = vmatprep.mubr.bf16.mxu0 0
    %3513 = vmatmul.mubr.bf16.gmra.mrb[0].mxu0 %v3475
    %v3514 = vpop.f32.mrb[0].mxu0
    %v3515 = vadd.f32 0.0, %v3514
    %v3516 = vpop.f32.mrb[0].mxu0
    %v3517 = vpop.f32.mrb[0].mxu0
    %v3518 = vpop.f32.mrb[0].mxu0
    %3519 = vdwg.mxu0
    %v3520 = vmul.f32 %v3515, 0.17677669
    %v3521 = vadd.f32 %v3520, %v730
    %v3522 = vsel %vm1086, %v3521, -inf
    %3523 = vmax.xlane.f32.xlu0 %v3522
    %v3524 = vpop.xlane.xlu0 %3523
    %v3525 = vsub.f32 %v3521, %v3524
    %v3526 = vmul.f32 %v3525, 1.442695
    %v3527 = vpow.pop %v3526
    %v3528 = vsel %vm1086, %v3527, 0.0
    %3529 = vadd.xlane.f32.xlu0 %v3528
    %v3530 = vpop.xlane.xlu0 %3529
    %v3531 = vrcp.pop %v3530
    %v3532 = vmul.f32 %v3527, %v3531
    %v3533 = vpack.c.bf16 %v3532, %v3532
    %3534 = vrot.lane.b32.xlu0 %v3125, 32
    %v3535 = vpop.permute.xlu0 %3534
    %v3537 = vsel %vm1086, %v3533, 0
    %v3540 = vsel %vm1102, %v3535, 0
    %3542 = vmatprep.subr.bf16.mxu0 0
    %3543 = vmatpush1.bf16.msra.mxu0 %v3540
    %3544 = vmatprep.subr.bf16.mxu0 0
    %3545 = vmatpush1.bf16.msra.mxu0 0
    %3546 = vmatprep.subr.bf16.mxu0 0
    %3547 = vmatpush1.bf16.msra.mxu0 0
    %3548 = vmatprep.subr.bf16.mxu0 0
    %3549 = vmatpush1.bf16.msra.mxu0 0
    %3550 = vmatprep.subr.bf16.mxu0 0
    %3551 = vmatpush1.bf16.msra.mxu0 0
    %3552 = vmatprep.subr.bf16.mxu0 0
    %3553 = vmatpush1.bf16.msra.mxu0 0
    %3554 = vmatprep.subr.bf16.mxu0 0
    %3555 = vmatpush1.bf16.msra.mxu0 0
    %3556 = vmatprep.subr.bf16.mxu0 0
    %3557 = vmatpush1.bf16.msra.mxu0 0
    %3558 = vmatprep.subr.bf16.mxu0 0
    %3559 = vmatpush1.bf16.msra.mxu0 0
    %3560 = vmatprep.subr.bf16.mxu0 0
    %3561 = vmatpush1.bf16.msra.mxu0 0
    %3562 = vmatprep.subr.bf16.mxu0 0
    %3563 = vmatpush1.bf16.msra.mxu0 0
    %3564 = vmatprep.subr.bf16.mxu0 0
    %3565 = vmatpush1.bf16.msra.mxu0 0
    %3566 = vmatprep.subr.bf16.mxu0 0
    %3567 = vmatpush1.bf16.msra.mxu0 0
    %3568 = vmatprep.subr.bf16.mxu0 0
    %3569 = vmatpush1.bf16.msra.mxu0 0
    %3570 = vmatprep.subr.bf16.mxu0 0
    %3571 = vmatpush1.bf16.msra.mxu0 0
    %3572 = vmatprep.subr.bf16.mxu0 0
    %3573 = vmatpush1.bf16.msra.mxu0 0
    %3574 = vmatprep.mubr.bf16.mxu0 0
    %3575 = vmatmul.mubr.bf16.gmra.mrb[0].mxu0 %v3537
    %v3576 = vpop.f32.mrb[0].mxu0
    %v3577 = vadd.f32 0.0, %v3576
    %v3578 = vpop.f32.mrb[0].mxu0
    %v3579 = vpop.f32.mrb[0].mxu0
    %v3580 = vpop.f32.mrb[0].mxu0
    %3581 = vdwg.mxu0
    %3583 = vrot.lane.b32.xlu0 %v3577, 96
    %v3584 = vpop.permute.xlu0 %3583
    %3586 = vst.msk [vmem:[#allocation3] sm:$0xff] %vm1502, %v3584
    %v3587 = vpack.c.bf16 %v3078, %v3078
    %v3588 = vpack.c.bf16 %v3080, %v3080
    %v3589 = vpack.c.bf16 %v3120, %v3120
    %v3591 = vsel %vm1037, %v3587, 0
    %v3594 = vsel %vm1037, %v3588, 0
    %3596 = vmatprep.subr.bf16.mxu0 0
    %3597 = vmatpush1.bf16.xpose.msra.mxu0 %v3594
    %3598 = vmatprep.subr.bf16.mxu0 0
    %3599 = vmatpush1.bf16.xpose.msra.mxu0 0
    %3600 = vmatprep.subr.bf16.mxu0 0
    %3601 = vmatpush1.bf16.xpose.msra.mxu0 0
    %3602 = vmatprep.subr.bf16.mxu0 0
    %3603 = vmatpush1.bf16.xpose.msra.mxu0 0
    %3604 = vmatprep.subr.bf16.mxu0 0
    %3605 = vmatpush1.bf16.xpose.msra.mxu0 0
    %3606 = vmatprep.subr.bf16.mxu0 0
    %3607 = vmatpush1.bf16.xpose.msra.mxu0 0
    %3608 = vmatprep.subr.bf16.mxu0 0
    %3609 = vmatpush1.bf16.xpose.msra.mxu0 0
    %3610 = vmatprep.subr.bf16.mxu0 0
    %3611 = vmatpush1.bf16.xpose.msra.mxu0 0
    %3612 = vmatprep.subr.bf16.mxu0 0
    %3613 = vmatpush1.bf16.xpose.msra.mxu0 0
    %3614 = vmatprep.subr.bf16.mxu0 0
    %3615 = vmatpush1.bf16.xpose.msra.mxu0 0
    %3616 = vmatprep.subr.bf16.mxu0 0
    %3617 = vmatpush1.bf16.xpose.msra.mxu0 0
    %3618 = vmatprep.subr.bf16.mxu0 0
    %3619 = vmatpush1.bf16.xpose.msra.mxu0 0
    %3620 = vmatprep.subr.bf16.mxu0 0
    %3621 = vmatpush1.bf16.xpose.msra.mxu0 0
    %3622 = vmatprep.subr.bf16.mxu0 0
    %3623 = vmatpush1.bf16.xpose.msra.mxu0 0
    %3624 = vmatprep.subr.bf16.mxu0 0
    %3625 = vmatpush1.bf16.xpose.msra.mxu0 0
    %3626 = vmatprep.subr.bf16.mxu0 0
    %3627 = vmatpush1.bf16.xpose.msra.mxu0 0
    %3628 = vmatprep.mubr.bf16.mxu0 0
    %3629 = vmatmul.mubr.bf16.gmra.mrb[0].mxu0 %v3591
    %v3630 = vpop.f32.mrb[0].mxu0
    %v3631 = vadd.f32 0.0, %v3630
    %v3632 = vpop.f32.mrb[0].mxu0
    %v3633 = vpop.f32.mrb[0].mxu0
    %v3634 = vpop.f32.mrb[0].mxu0
    %3635 = vdwg.mxu0
    %v3636 = vmul.f32 %v3631, 0.17677669
    %v3637 = vadd.f32 %v3636, %v730
    %v3638 = vsel %vm1086, %v3637, -inf
    %3639 = vmax.xlane.f32.xlu0 %v3638
    %v3640 = vpop.xlane.xlu0 %3639
    %v3641 = vsub.f32 %v3637, %v3640
    %v3642 = vmul.f32 %v3641, 1.442695
    %v3643 = vpow.pop %v3642
    %v3644 = vsel %vm1086, %v3643, 0.0
    %3645 = vadd.xlane.f32.xlu0 %v3644
    %v3646 = vpop.xlane.xlu0 %3645
    %v3647 = vrcp.pop %v3646
    %v3648 = vmul.f32 %v3643, %v3647
    %v3649 = vpack.c.bf16 %v3648, %v3648
    %v3651 = vsel %vm1086, %v3649, 0
    %v3654 = vsel %vm1102, %v3589, 0
    %3656 = vmatprep.subr.bf16.mxu0 0
    %3657 = vmatpush1.bf16.msra.mxu0 %v3654
    %3658 = vmatprep.subr.bf16.mxu0 0
    %3659 = vmatpush1.bf16.msra.mxu0 0
    %3660 = vmatprep.subr.bf16.mxu0 0
    %3661 = vmatpush1.bf16.msra.mxu0 0
    %3662 = vmatprep.subr.bf16.mxu0 0
    %3663 = vmatpush1.bf16.msra.mxu0 0
    %3664 = vmatprep.subr.bf16.mxu0 0
    %3665 = vmatpush1.bf16.msra.mxu0 0
    %3666 = vmatprep.subr.bf16.mxu0 0
    %3667 = vmatpush1.bf16.msra.mxu0 0
    %3668 = vmatprep.subr.bf16.mxu0 0
    %3669 = vmatpush1.bf16.msra.mxu0 0
    %3670 = vmatprep.subr.bf16.mxu0 0
    %3671 = vmatpush1.bf16.msra.mxu0 0
    %3672 = vmatprep.subr.bf16.mxu0 0
    %3673 = vmatpush1.bf16.msra.mxu0 0
    %3674 = vmatprep.subr.bf16.mxu0 0
    %3675 = vmatpush1.bf16.msra.mxu0 0
    %3676 = vmatprep.subr.bf16.mxu0 0
    %3677 = vmatpush1.bf16.msra.mxu0 0
    %3678 = vmatprep.subr.bf16.mxu0 0
    %3679 = vmatpush1.bf16.msra.mxu0 0
    %3680 = vmatprep.subr.bf16.mxu0 0
    %3681 = vmatpush1.bf16.msra.mxu0 0
    %3682 = vmatprep.subr.bf16.mxu0 0
    %3683 = vmatpush1.bf16.msra.mxu0 0
    %3684 = vmatprep.subr.bf16.mxu0 0
    %3685 = vmatpush1.bf16.msra.mxu0 0
    %3686 = vmatprep.subr.bf16.mxu0 0
    %3687 = vmatpush1.bf16.msra.mxu0 0
    %3688 = vmatprep.mubr.bf16.mxu0 0
    %3689 = vmatmul.mubr.bf16.gmra.mrb[0].mxu0 %v3651
    %v3690 = vpop.f32.mrb[0].mxu0
    %v3691 = vadd.f32 0.0, %v3690
    %v3692 = vpop.f32.mrb[0].mxu0
    %v3693 = vpop.f32.mrb[0].mxu0
    %v3694 = vpop.f32.mrb[0].mxu0
    %3695 = vdwg.mxu0
    %3696 = vst.msk [vmem:[#allocation3 + $0x8] sm:$0xff] %vm1037, %v3691
    %3698 = vrot.lane.b32.xlu0 %v3587, 96
    %v3699 = vpop.permute.xlu0 %3698
    %3701 = vrot.lane.b32.xlu0 %v3588, 96
    %v3702 = vpop.permute.xlu0 %3701
    %v3704 = vsel %vm1037, %v3699, 0
    %v3707 = vsel %vm1037, %v3702, 0
    %3709 = vmatprep.subr.bf16.mxu0 0
    %3710 = vmatpush1.bf16.xpose.msra.mxu0 %v3707
    %3711 = vmatprep.subr.bf16.mxu0 0
    %3712 = vmatpush1.bf16.xpose.msra.mxu0 0
    %3713 = vmatprep.subr.bf16.mxu0 0
    %3714 = vmatpush1.bf16.xpose.msra.mxu0 0
    %3715 = vmatprep.subr.bf16.mxu0 0
    %3716 = vmatpush1.bf16.xpose.msra.mxu0 0
    %3717 = vmatprep.subr.bf16.mxu0 0
    %3718 = vmatpush1.bf16.xpose.msra.mxu0 0
    %3719 = vmatprep.subr.bf16.mxu0 0
    %3720 = vmatpush1.bf16.xpose.msra.mxu0 0
    %3721 = vmatprep.subr.bf16.mxu0 0
    %3722 = vmatpush1.bf16.xpose.msra.mxu0 0
    %3723 = vmatprep.subr.bf16.mxu0 0
    %3724 = vmatpush1.bf16.xpose.msra.mxu0 0
    %3725 = vmatprep.subr.bf16.mxu0 0
    %3726 = vmatpush1.bf16.xpose.msra.mxu0 0
    %3727 = vmatprep.subr.bf16.mxu0 0
    %3728 = vmatpush1.bf16.xpose.msra.mxu0 0
    %3729 = vmatprep.subr.bf16.mxu0 0
    %3730 = vmatpush1.bf16.xpose.msra.mxu0 0
    %3731 = vmatprep.subr.bf16.mxu0 0
    %3732 = vmatpush1.bf16.xpose.msra.mxu0 0
    %3733 = vmatprep.subr.bf16.mxu0 0
    %3734 = vmatpush1.bf16.xpose.msra.mxu0 0
    %3735 = vmatprep.subr.bf16.mxu0 0
    %3736 = vmatpush1.bf16.xpose.msra.mxu0 0
    %3737 = vmatprep.subr.bf16.mxu0 0
    %3738 = vmatpush1.bf16.xpose.msra.mxu0 0
    %3739 = vmatprep.subr.bf16.mxu0 0
    %3740 = vmatpush1.bf16.xpose.msra.mxu0 0
    %3741 = vmatprep.mubr.bf16.mxu0 0
    %3742 = vmatmul.mubr.bf16.gmra.mrb[0].mxu0 %v3704
    %v3743 = vpop.f32.mrb[0].mxu0
    %v3744 = vadd.f32 0.0, %v3743
    %v3745 = vpop.f32.mrb[0].mxu0
    %v3746 = vpop.f32.mrb[0].mxu0
    %v3747 = vpop.f32.mrb[0].mxu0
    %3748 = vdwg.mxu0
    %v3749 = vmul.f32 %v3744, 0.17677669
    %v3750 = vadd.f32 %v3749, %v730
    %v3751 = vsel %vm1086, %v3750, -inf
    %3752 = vmax.xlane.f32.xlu0 %v3751
    %v3753 = vpop.xlane.xlu0 %3752
    %v3754 = vsub.f32 %v3750, %v3753
    %v3755 = vmul.f32 %v3754, 1.442695
    %v3756 = vpow.pop %v3755
    %v3757 = vsel %vm1086, %v3756, 0.0
    %3758 = vadd.xlane.f32.xlu0 %v3757
    %v3759 = vpop.xlane.xlu0 %3758
    %v3760 = vrcp.pop %v3759
    %v3761 = vmul.f32 %v3756, %v3760
    %v3762 = vpack.c.bf16 %v3761, %v3761
    %3764 = vrot.lane.b32.xlu0 %v3589, 96
    %v3765 = vpop.permute.xlu0 %3764
    %v3767 = vsel %vm1086, %v3762, 0
    %v3770 = vsel %vm1102, %v3765, 0
    %3772 = vmatprep.subr.bf16.mxu0 0
    %3773 = vmatpush1.bf16.msra.mxu0 %v3770
    %3774 = vmatprep.subr.bf16.mxu0 0
    %3775 = vmatpush1.bf16.msra.mxu0 0
    %3776 = vmatprep.subr.bf16.mxu0 0
    %3777 = vmatpush1.bf16.msra.mxu0 0
    %3778 = vmatprep.subr.bf16.mxu0 0
    %3779 = vmatpush1.bf16.msra.mxu0 0
    %3780 = vmatprep.subr.bf16.mxu0 0
    %3781 = vmatpush1.bf16.msra.mxu0 0
    %3782 = vmatprep.subr.bf16.mxu0 0
    %3783 = vmatpush1.bf16.msra.mxu0 0
    %3784 = vmatprep.subr.bf16.mxu0 0
    %3785 = vmatpush1.bf16.msra.mxu0 0
    %3786 = vmatprep.subr.bf16.mxu0 0
    %3787 = vmatpush1.bf16.msra.mxu0 0
    %3788 = vmatprep.subr.bf16.mxu0 0
    %3789 = vmatpush1.bf16.msra.mxu0 0
    %3790 = vmatprep.subr.bf16.mxu0 0
    %3791 = vmatpush1.bf16.msra.mxu0 0
    %3792 = vmatprep.subr.bf16.mxu0 0
    %3793 = vmatpush1.bf16.msra.mxu0 0
    %3794 = vmatprep.subr.bf16.mxu0 0
    %3795 = vmatpush1.bf16.msra.mxu0 0
    %3796 = vmatprep.subr.bf16.mxu0 0
    %3797 = vmatpush1.bf16.msra.mxu0 0
    %3798 = vmatprep.subr.bf16.mxu0 0
    %3799 = vmatpush1.bf16.msra.mxu0 0
    %3800 = vmatprep.subr.bf16.mxu0 0
    %3801 = vmatpush1.bf16.msra.mxu0 0
    %3802 = vmatprep.subr.bf16.mxu0 0
    %3803 = vmatpush1.bf16.msra.mxu0 0
    %3804 = vmatprep.mubr.bf16.mxu0 0
    %3805 = vmatmul.mubr.bf16.gmra.mrb[0].mxu0 %v3767
    %v3806 = vpop.f32.mrb[0].mxu0
    %v3807 = vadd.f32 0.0, %v3806
    %v3808 = vpop.f32.mrb[0].mxu0
    %v3809 = vpop.f32.mrb[0].mxu0
    %v3810 = vpop.f32.mrb[0].mxu0
    %3811 = vdwg.mxu0
    %3813 = vrot.lane.b32.xlu0 %v3807, 32
    %v3814 = vpop.permute.xlu0 %3813
    %3816 = vst.msk [vmem:[#allocation3 + $0x8] sm:$0xff] %vm1266, %v3814
    %3817 = vrot.lane.b32.xlu0 %v3587, 64
    %v3818 = vpop.permute.xlu0 %3817
    %3819 = vrot.lane.b32.xlu0 %v3588, 64
    %v3820 = vpop.permute.xlu0 %3819
    %v3822 = vsel %vm1037, %v3818, 0
    %v3825 = vsel %vm1037, %v3820, 0
    %3827 = vmatprep.subr.bf16.mxu0 0
    %3828 = vmatpush1.bf16.xpose.msra.mxu0 %v3825
    %3829 = vmatprep.subr.bf16.mxu0 0
    %3830 = vmatpush1.bf16.xpose.msra.mxu0 0
    %3831 = vmatprep.subr.bf16.mxu0 0
    %3832 = vmatpush1.bf16.xpose.msra.mxu0 0
    %3833 = vmatprep.subr.bf16.mxu0 0
    %3834 = vmatpush1.bf16.xpose.msra.mxu0 0
    %3835 = vmatprep.subr.bf16.mxu0 0
    %3836 = vmatpush1.bf16.xpose.msra.mxu0 0
    %3837 = vmatprep.subr.bf16.mxu0 0
    %3838 = vmatpush1.bf16.xpose.msra.mxu0 0
    %3839 = vmatprep.subr.bf16.mxu0 0
    %3840 = vmatpush1.bf16.xpose.msra.mxu0 0
    %3841 = vmatprep.subr.bf16.mxu0 0
    %3842 = vmatpush1.bf16.xpose.msra.mxu0 0
    %3843 = vmatprep.subr.bf16.mxu0 0
    %3844 = vmatpush1.bf16.xpose.msra.mxu0 0
    %3845 = vmatprep.subr.bf16.mxu0 0
    %3846 = vmatpush1.bf16.xpose.msra.mxu0 0
    %3847 = vmatprep.subr.bf16.mxu0 0
    %3848 = vmatpush1.bf16.xpose.msra.mxu0 0
    %3849 = vmatprep.subr.bf16.mxu0 0
    %3850 = vmatpush1.bf16.xpose.msra.mxu0 0
    %3851 = vmatprep.subr.bf16.mxu0 0
    %3852 = vmatpush1.bf16.xpose.msra.mxu0 0
    %3853 = vmatprep.subr.bf16.mxu0 0
    %3854 = vmatpush1.bf16.xpose.msra.mxu0 0
    %3855 = vmatprep.subr.bf16.mxu0 0
    %3856 = vmatpush1.bf16.xpose.msra.mxu0 0
    %3857 = vmatprep.subr.bf16.mxu0 0
    %3858 = vmatpush1.bf16.xpose.msra.mxu0 0
    %3859 = vmatprep.mubr.bf16.mxu0 0
    %3860 = vmatmul.mubr.bf16.gmra.mrb[0].mxu0 %v3822
    %v3861 = vpop.f32.mrb[0].mxu0
    %v3862 = vadd.f32 0.0, %v3861
    %v3863 = vpop.f32.mrb[0].mxu0
    %v3864 = vpop.f32.mrb[0].mxu0
    %v3865 = vpop.f32.mrb[0].mxu0
    %3866 = vdwg.mxu0
    %v3867 = vmul.f32 %v3862, 0.17677669
    %v3868 = vadd.f32 %v3867, %v730
    %v3869 = vsel %vm1086, %v3868, -inf
    %3870 = vmax.xlane.f32.xlu0 %v3869
    %v3871 = vpop.xlane.xlu0 %3870
    %v3872 = vsub.f32 %v3868, %v3871
    %v3873 = vmul.f32 %v3872, 1.442695
    %v3874 = vpow.pop %v3873
    %v3875 = vsel %vm1086, %v3874, 0.0
    %3876 = vadd.xlane.f32.xlu0 %v3875
    %v3877 = vpop.xlane.xlu0 %3876
    %v3878 = vrcp.pop %v3877
    %v3879 = vmul.f32 %v3874, %v3878
    %v3880 = vpack.c.bf16 %v3879, %v3879
    %3881 = vrot.lane.b32.xlu0 %v3589, 64
    %v3882 = vpop.permute.xlu0 %3881
    %v3884 = vsel %vm1086, %v3880, 0
    %v3887 = vsel %vm1102, %v3882, 0
    %3889 = vmatprep.subr.bf16.mxu0 0
    %3890 = vmatpush1.bf16.msra.mxu0 %v3887
    %3891 = vmatprep.subr.bf16.mxu0 0
    %3892 = vmatpush1.bf16.msra.mxu0 0
    %3893 = vmatprep.subr.bf16.mxu0 0
    %3894 = vmatpush1.bf16.msra.mxu0 0
    %3895 = vmatprep.subr.bf16.mxu0 0
    %3896 = vmatpush1.bf16.msra.mxu0 0
    %3897 = vmatprep.subr.bf16.mxu0 0
    %3898 = vmatpush1.bf16.msra.mxu0 0
    %3899 = vmatprep.subr.bf16.mxu0 0
    %3900 = vmatpush1.bf16.msra.mxu0 0
    %3901 = vmatprep.subr.bf16.mxu0 0
    %3902 = vmatpush1.bf16.msra.mxu0 0
    %3903 = vmatprep.subr.bf16.mxu0 0
    %3904 = vmatpush1.bf16.msra.mxu0 0
    %3905 = vmatprep.subr.bf16.mxu0 0
    %3906 = vmatpush1.bf16.msra.mxu0 0
    %3907 = vmatprep.subr.bf16.mxu0 0
    %3908 = vmatpush1.bf16.msra.mxu0 0
    %3909 = vmatprep.subr.bf16.mxu0 0
    %3910 = vmatpush1.bf16.msra.mxu0 0
    %3911 = vmatprep.subr.bf16.mxu0 0
    %3912 = vmatpush1.bf16.msra.mxu0 0
    %3913 = vmatprep.subr.bf16.mxu0 0
    %3914 = vmatpush1.bf16.msra.mxu0 0
    %3915 = vmatprep.subr.bf16.mxu0 0
    %3916 = vmatpush1.bf16.msra.mxu0 0
    %3917 = vmatprep.subr.bf16.mxu0 0
    %3918 = vmatpush1.bf16.msra.mxu0 0
    %3919 = vmatprep.subr.bf16.mxu0 0
    %3920 = vmatpush1.bf16.msra.mxu0 0
    %3921 = vmatprep.mubr.bf16.mxu0 0
    %3922 = vmatmul.mubr.bf16.gmra.mrb[0].mxu0 %v3884
    %v3923 = vpop.f32.mrb[0].mxu0
    %v3924 = vadd.f32 0.0, %v3923
    %v3925 = vpop.f32.mrb[0].mxu0
    %v3926 = vpop.f32.mrb[0].mxu0
    %v3927 = vpop.f32.mrb[0].mxu0
    %3928 = vdwg.mxu0
    %3930 = vrot.lane.b32.xlu0 %v3924, 64
    %v3931 = vpop.permute.xlu0 %3930
    %3933 = vst.msk [vmem:[#allocation3 + $0x8] sm:$0xff] %vm1384, %v3931
    %3934 = vrot.lane.b32.xlu0 %v3587, 32
    %v3935 = vpop.permute.xlu0 %3934
    %3936 = vrot.lane.b32.xlu0 %v3588, 32
    %v3937 = vpop.permute.xlu0 %3936
    %v3939 = vsel %vm1037, %v3935, 0
    %v3942 = vsel %vm1037, %v3937, 0
    %3944 = vmatprep.subr.bf16.mxu0 0
    %3945 = vmatpush1.bf16.xpose.msra.mxu0 %v3942
    %3946 = vmatprep.subr.bf16.mxu0 0
    %3947 = vmatpush1.bf16.xpose.msra.mxu0 0
    %3948 = vmatprep.subr.bf16.mxu0 0
    %3949 = vmatpush1.bf16.xpose.msra.mxu0 0
    %3950 = vmatprep.subr.bf16.mxu0 0
    %3951 = vmatpush1.bf16.xpose.msra.mxu0 0
    %3952 = vmatprep.subr.bf16.mxu0 0
    %3953 = vmatpush1.bf16.xpose.msra.mxu0 0
    %3954 = vmatprep.subr.bf16.mxu0 0
    %3955 = vmatpush1.bf16.xpose.msra.mxu0 0
    %3956 = vmatprep.subr.bf16.mxu0 0
    %3957 = vmatpush1.bf16.xpose.msra.mxu0 0
    %3958 = vmatprep.subr.bf16.mxu0 0
    %3959 = vmatpush1.bf16.xpose.msra.mxu0 0
    %3960 = vmatprep.subr.bf16.mxu0 0
    %3961 = vmatpush1.bf16.xpose.msra.mxu0 0
    %3962 = vmatprep.subr.bf16.mxu0 0
    %3963 = vmatpush1.bf16.xpose.msra.mxu0 0
    %3964 = vmatprep.subr.bf16.mxu0 0
    %3965 = vmatpush1.bf16.xpose.msra.mxu0 0
    %3966 = vmatprep.subr.bf16.mxu0 0
    %3967 = vmatpush1.bf16.xpose.msra.mxu0 0
    %3968 = vmatprep.subr.bf16.mxu0 0
    %3969 = vmatpush1.bf16.xpose.msra.mxu0 0
    %3970 = vmatprep.subr.bf16.mxu0 0
    %3971 = vmatpush1.bf16.xpose.msra.mxu0 0
    %3972 = vmatprep.subr.bf16.mxu0 0
    %3973 = vmatpush1.bf16.xpose.msra.mxu0 0
    %3974 = vmatprep.subr.bf16.mxu0 0
    %3975 = vmatpush1.bf16.xpose.msra.mxu0 0
    %3976 = vmatprep.mubr.bf16.mxu0 0
    %3977 = vmatmul.mubr.bf16.gmra.mrb[0].mxu0 %v3939
    %v3978 = vpop.f32.mrb[0].mxu0
    %v3979 = vadd.f32 0.0, %v3978
    %v3980 = vpop.f32.mrb[0].mxu0
    %v3981 = vpop.f32.mrb[0].mxu0
    %v3982 = vpop.f32.mrb[0].mxu0
    %3983 = vdwg.mxu0
    %v3984 = vmul.f32 %v3979, 0.17677669
    %v3985 = vadd.f32 %v3984, %v730
    %v3986 = vsel %vm1086, %v3985, -inf
    %3987 = vmax.xlane.f32.xlu0 %v3986
    %v3988 = vpop.xlane.xlu0 %3987
    %v3989 = vsub.f32 %v3985, %v3988
    %v3990 = vmul.f32 %v3989, 1.442695
    %v3991 = vpow.pop %v3990
    %v3992 = vsel %vm1086, %v3991, 0.0
    %3993 = vadd.xlane.f32.xlu0 %v3992
    %v3994 = vpop.xlane.xlu0 %3993
    %v3995 = vrcp.pop %v3994
    %v3996 = vmul.f32 %v3991, %v3995
    %v3997 = vpack.c.bf16 %v3996, %v3996
    %3998 = vrot.lane.b32.xlu0 %v3589, 32
    %v3999 = vpop.permute.xlu0 %3998
    %v4001 = vsel %vm1086, %v3997, 0
    %v4004 = vsel %vm1102, %v3999, 0
    %4006 = vmatprep.subr.bf16.mxu0 0
    %4007 = vmatpush1.bf16.msra.mxu0 %v4004
    %4008 = vmatprep.subr.bf16.mxu0 0
    %4009 = vmatpush1.bf16.msra.mxu0 0
    %4010 = vmatprep.subr.bf16.mxu0 0
    %4011 = vmatpush1.bf16.msra.mxu0 0
    %4012 = vmatprep.subr.bf16.mxu0 0
    %4013 = vmatpush1.bf16.msra.mxu0 0
    %4014 = vmatprep.subr.bf16.mxu0 0
    %4015 = vmatpush1.bf16.msra.mxu0 0
    %4016 = vmatprep.subr.bf16.mxu0 0
    %4017 = vmatpush1.bf16.msra.mxu0 0
    %4018 = vmatprep.subr.bf16.mxu0 0
    %4019 = vmatpush1.bf16.msra.mxu0 0
    %4020 = vmatprep.subr.bf16.mxu0 0
    %4021 = vmatpush1.bf16.msra.mxu0 0
    %4022 = vmatprep.subr.bf16.mxu0 0
    %4023 = vmatpush1.bf16.msra.mxu0 0
    %4024 = vmatprep.subr.bf16.mxu0 0
    %4025 = vmatpush1.bf16.msra.mxu0 0
    %4026 = vmatprep.subr.bf16.mxu0 0
    %4027 = vmatpush1.bf16.msra.mxu0 0
    %4028 = vmatprep.subr.bf16.mxu0 0
    %4029 = vmatpush1.bf16.msra.mxu0 0
    %4030 = vmatprep.subr.bf16.mxu0 0
    %4031 = vmatpush1.bf16.msra.mxu0 0
    %4032 = vmatprep.subr.bf16.mxu0 0
    %4033 = vmatpush1.bf16.msra.mxu0 0
    %4034 = vmatprep.subr.bf16.mxu0 0
    %4035 = vmatpush1.bf16.msra.mxu0 0
    %4036 = vmatprep.subr.bf16.mxu0 0
    %4037 = vmatpush1.bf16.msra.mxu0 0
    %4038 = vmatprep.mubr.bf16.mxu0 0
    %4039 = vmatmul.mubr.bf16.gmra.mrb[0].mxu0 %v4001
    %v4040 = vpop.f32.mrb[0].mxu0
    %v4041 = vadd.f32 0.0, %v4040
    %v4042 = vpop.f32.mrb[0].mxu0
    %v4043 = vpop.f32.mrb[0].mxu0
    %v4044 = vpop.f32.mrb[0].mxu0
    %4045 = vdwg.mxu0
    %4047 = vrot.lane.b32.xlu0 %v4041, 96
    %v4048 = vpop.permute.xlu0 %4047
    %4050 = vst.msk [vmem:[#allocation3 + $0x8] sm:$0xff] %vm1502, %v4048
    %v4051 = vld [vmem:[#allocation3] sm:$0xff]
    %v4052 = vld [vmem:[#allocation3 + $0x8] sm:$0xff]
    %v4053 = vpack.c.bf16 %v4052, %v4051
    %s4054 = scalar_lea.vmem [#allocation9], 64
    %v4055 = vld [vmem:[%s4054] sm:$0xf]
    %v4056 = vld [vmem:[%s4054 + $0x4] sm:$0xf]
    %v4057 = vld [vmem:[%s4054 + $0x8] sm:$0xf]
    %v4058 = vld [vmem:[%s4054 + $0xc] sm:$0xf]
    %v4059 = vld [vmem:[%s4054 + $0x10] sm:$0xf]
    %v4060 = vld [vmem:[%s4054 + $0x14] sm:$0xf]
    %v4061 = vld [vmem:[%s4054 + $0x18] sm:$0xf]
    %v4062 = vld [vmem:[%s4054 + $0x1c] sm:$0xf]
    %v4063 = vld [vmem:[%s4054 + $0x20] sm:$0xf]
    %v4064 = vld [vmem:[%s4054 + $0x24] sm:$0xf]
    %v4065 = vld [vmem:[%s4054 + $0x28] sm:$0xf]
    %v4066 = vld [vmem:[%s4054 + $0x2c] sm:$0xf]
    %v4067 = vld [vmem:[%s4054 + $0x30] sm:$0xf]
    %v4068 = vld [vmem:[%s4054 + $0x34] sm:$0xf]
    %v4069 = vld [vmem:[%s4054 + $0x38] sm:$0xf]
    %v4070 = vld [vmem:[%s4054 + $0x3c] sm:$0xf]
    %s4071 = scalar_lea.vmem [#allocation11], 1
    %v4072 = vld [vmem:[%s4071] sm:$0x1]
    %v4074 = vlaneseq
    %v4075 = vshrl.u32 %v4074, 7
    %v4076 = vsub.s32 0, %v4075
    %v4077 = vrot.slane %v4072, %v4076
    %v4095 = vunpack.c.l.b16 %v4055
    %v4096 = vunpack.c.l.b16 %v4056
    %v4097 = vunpack.c.l.b16 %v4057
    %v4098 = vunpack.c.l.b16 %v4058
    %v4099 = vunpack.c.l.b16 %v4059
    %v4100 = vunpack.c.l.b16 %v4060
    %v4101 = vunpack.c.l.b16 %v4061
    %v4102 = vunpack.c.l.b16 %v4062
    %v4103 = vunpack.c.l.b16 %v4063
    %v4104 = vunpack.c.l.b16 %v4064
    %v4105 = vunpack.c.l.b16 %v4065
    %v4106 = vunpack.c.l.b16 %v4066
    %v4107 = vunpack.c.l.b16 %v4067
    %v4108 = vunpack.c.l.b16 %v4068
    %v4109 = vunpack.c.l.b16 %v4069
    %v4110 = vunpack.c.l.b16 %v4070
    %v4111 = vpack.c.b16 %v4096, %v4095
    %v4112 = vpack.c.b16 %v4098, %v4097
    %v4113 = vpack.c.b16 %v4100, %v4099
    %v4114 = vpack.c.b16 %v4102, %v4101
    %v4115 = vpack.c.b16 %v4104, %v4103
    %v4116 = vpack.c.b16 %v4106, %v4105
    %v4117 = vpack.c.b16 %v4108, %v4107
    %v4118 = vpack.c.b16 %v4110, %v4109
    %4127 = vmatprep.subr.bf16.mxu0 0
    %4128 = vmatpush1.bf16.msra.mxu0 %v4111
    %4129 = vmatprep.subr.bf16.mxu0 0
    %4130 = vmatpush1.bf16.msra.mxu0 %v4112
    %4131 = vmatprep.subr.bf16.mxu0 0
    %4132 = vmatpush1.bf16.msra.mxu0 %v4113
    %4133 = vmatprep.subr.bf16.mxu0 0
    %4134 = vmatpush1.bf16.msra.mxu0 %v4114
    %4135 = vmatprep.subr.bf16.mxu0 0
    %4136 = vmatpush1.bf16.msra.mxu0 %v4115
    %4137 = vmatprep.subr.bf16.mxu0 0
    %4138 = vmatpush1.bf16.msra.mxu0 %v4116
    %4139 = vmatprep.subr.bf16.mxu0 0
    %4140 = vmatpush1.bf16.msra.mxu0 %v4117
    %4141 = vmatprep.subr.bf16.mxu0 0
    %4142 = vmatpush1.bf16.msra.mxu0 %v4118
    %4143 = vmatprep.subr.bf16.mxu0 0
    %4144 = vmatpush1.bf16.msra.mxu0 0
    %4145 = vmatprep.subr.bf16.mxu0 0
    %4146 = vmatpush1.bf16.msra.mxu0 0
    %4147 = vmatprep.subr.bf16.mxu0 0
    %4148 = vmatpush1.bf16.msra.mxu0 0
    %4149 = vmatprep.subr.bf16.mxu0 0
    %4150 = vmatpush1.bf16.msra.mxu0 0
    %4151 = vmatprep.subr.bf16.mxu0 0
    %4152 = vmatpush1.bf16.msra.mxu0 0
    %4153 = vmatprep.subr.bf16.mxu0 0
    %4154 = vmatpush1.bf16.msra.mxu0 0
    %4155 = vmatprep.subr.bf16.mxu0 0
    %4156 = vmatpush1.bf16.msra.mxu0 0
    %4157 = vmatprep.subr.bf16.mxu0 0
    %4158 = vmatpush1.bf16.msra.mxu0 0
    %4159 = vmatprep.mubr.bf16.mxu0 0
    %4160 = vmatmul.mubr.bf16.gmra.mrb[0].mxu0 %v4053
    %v4161 = vpop.f32.mrb[0].mxu0
    %v4162 = vadd.f32 %v4077, %v4161
    %v4163 = vpop.f32.mrb[0].mxu0
    %v4164 = vpop.f32.mrb[0].mxu0
    %v4165 = vadd.f32 %v4077, %v4164
    %v4166 = vpop.f32.mrb[0].mxu0
    %4167 = vdwg.mxu0
    %v4168 = vadd.f32 %v2815, %v4162
    %v4169 = vadd.f32 %v2816, %v4165
    %s4170 = scalar_lea.vmem [#allocation12], 1
    %v4171 = vld [vmem:[%s4170] sm:$0x1]
    %s4172 = scalar_lea.vmem [#allocation14], 1
    %v4173 = vld [vmem:[%s4172] sm:$0x1]
    %4174 = vadd.xlane.f32.xlu0 %v4168
    %v4175 = vpop.xlane.xlu0 %4174
    %4176 = vadd.xlane.f32.xlu0 %v4169
    %v4177 = vpop.xlane.xlu0 %4176
    %v4178 = vmul.f32 %v4175, %v737
    %v4179 = vmul.f32 %v4177, %v737
    %v4180 = vsub.f32 %v4168, %v4178
    %v4181 = vsub.f32 %v4169, %v4179
    %v4182 = vmul.f32 %v4180, %v4180
    %v4183 = vmul.f32 %v4181, %v4181
    %4184 = vadd.xlane.f32.xlu0 %v4182
    %v4185 = vpop.xlane.xlu0 %4184
    %4186 = vadd.xlane.f32.xlu0 %v4183
    %v4187 = vpop.xlane.xlu0 %4186
    %v4188 = vmul.f32 %v4185, %v737
    %v4189 = vmul.f32 %v4187, %v737
    %v4190 = vadd.f32 %v4188, 1e-06
    %v4191 = vadd.f32 %v4189, 1e-06
    %v4192 = vrsqrt.pop %v4190
    %v4193 = vrsqrt.pop %v4191
    %v4194 = vmul.f32 %v4180, %v4192
    %v4195 = vmul.f32 %v4181, %v4193
    %v4197 = vlaneseq
    %v4198 = vshrl.u32 %v4197, 7
    %v4199 = vsub.s32 0, %v4198
    %v4200 = vrot.slane %v4171, %v4199
    %v4202 = vmul.f32 %v4194, %v4200
    %v4203 = vmul.f32 %v4195, %v4200
    %v4205 = vlaneseq
    %v4206 = vshrl.u32 %v4205, 7
    %v4207 = vsub.s32 0, %v4206
    %v4208 = vrot.slane %v4173, %v4207
    %v4210 = vadd.f32 %v4202, %v4208
    %v4211 = vadd.f32 %v4203, %v4208
    %v4212 = vpack.c.bf16 %v4211, %v4210
    %s4213 = scalar_lea.vmem %s13, 256
    %v4214 = vld [vmem:[%s4213] sm:$0xff]
    %v4215 = vld [vmem:[%s4213 + $0x8] sm:$0xff]
    %v4216 = vld [vmem:[%s4213 + $0x10] sm:$0xff]
    %v4217 = vld [vmem:[%s4213 + $0x18] sm:$0xff]
    %v4218 = vld [vmem:[%s4213 + $0x20] sm:$0xff]
    %v4219 = vld [vmem:[%s4213 + $0x28] sm:$0xff]
    %v4220 = vld [vmem:[%s4213 + $0x30] sm:$0xff]
    %v4221 = vld [vmem:[%s4213 + $0x38] sm:$0xff]
    %v4222 = vld [vmem:[%s4213 + $0x40] sm:$0xff]
    %v4223 = vld [vmem:[%s4213 + $0x48] sm:$0xff]
    %v4224 = vld [vmem:[%s4213 + $0x50] sm:$0xff]
    %v4225 = vld [vmem:[%s4213 + $0x58] sm:$0xff]
    %v4226 = vld [vmem:[%s4213 + $0x60] sm:$0xff]
    %v4227 = vld [vmem:[%s4213 + $0x68] sm:$0xff]
    %v4228 = vld [vmem:[%s4213 + $0x70] sm:$0xff]
    %v4229 = vld [vmem:[%s4213 + $0x78] sm:$0xff]
    %v4230 = vld [vmem:[%s4213 + $0x80] sm:$0xff]
    %v4231 = vld [vmem:[%s4213 + $0x88] sm:$0xff]
    %v4232 = vld [vmem:[%s4213 + $0x90] sm:$0xff]
    %v4233 = vld [vmem:[%s4213 + $0x98] sm:$0xff]
    %v4234 = vld [vmem:[%s4213 + $0xa0] sm:$0xff]
    %v4235 = vld [vmem:[%s4213 + $0xa8] sm:$0xff]
    %v4236 = vld [vmem:[%s4213 + $0xb0] sm:$0xff]
    %v4237 = vld [vmem:[%s4213 + $0xb8] sm:$0xff]
    %v4238 = vld [vmem:[%s4213 + $0xc0] sm:$0xff]
    %v4239 = vld [vmem:[%s4213 + $0xc8] sm:$0xff]
    %v4240 = vld [vmem:[%s4213 + $0xd0] sm:$0xff]
    %v4241 = vld [vmem:[%s4213 + $0xd8] sm:$0xff]
    %v4242 = vld [vmem:[%s4213 + $0xe0] sm:$0xff]
    %v4243 = vld [vmem:[%s4213 + $0xe8] sm:$0xff]
    %v4244 = vld [vmem:[%s4213 + $0xf0] sm:$0xff]
    %v4245 = vld [vmem:[%s4213 + $0xf8] sm:$0xff]
    %s4246 = scalar_lea.vmem [#allocation15], 4
    %v4247 = vld [vmem:[%s4246] sm:$0xf]
    %v4249 = vlaneseq
    %v4250 = vshrl.u32 %v4249, 7
    %v4251 = vsub.s32 0, %v4250
    %v4252 = vrot.slane %v4247, %v4251
    %v4253 = vlaneseq
    %v4254 = vshrl.u32 %v4253, 7
    %v4255 = vsub.s32 1, %v4254
    %v4256 = vrot.slane %v4247, %v4255
    %v4257 = vlaneseq
    %v4258 = vshrl.u32 %v4257, 7
    %v4259 = vsub.s32 2, %v4258
    %v4260 = vrot.slane %v4247, %v4259
    %v4261 = vlaneseq
    %v4262 = vshrl.u32 %v4261, 7
    %v4263 = vsub.s32 3, %v4262
    %v4264 = vrot.slane %v4247, %v4263
    %v4301 = vunpack.c.l.b16 %v4214
    %v4302 = vunpack.c.h.b16 %v4214
    %v4303 = vunpack.c.l.b16 %v4215
    %v4304 = vunpack.c.h.b16 %v4215
    %v4305 = vunpack.c.l.b16 %v4216
    %v4306 = vunpack.c.h.b16 %v4216
    %v4307 = vunpack.c.l.b16 %v4217
    %v4308 = vunpack.c.h.b16 %v4217
    %v4309 = vunpack.c.l.b16 %v4218
    %v4310 = vunpack.c.h.b16 %v4218
    %v4311 = vunpack.c.l.b16 %v4219
    %v4312 = vunpack.c.h.b16 %v4219
    %v4313 = vunpack.c.l.b16 %v4220
    %v4314 = vunpack.c.h.b16 %v4220
    %v4315 = vunpack.c.l.b16 %v4221
    %v4316 = vunpack.c.h.b16 %v4221
    %v4317 = vunpack.c.l.b16 %v4222
    %v4318 = vunpack.c.h.b16 %v4222
    %v4319 = vunpack.c.l.b16 %v4223
    %v4320 = vunpack.c.h.b16 %v4223
    %v4321 = vunpack.c.l.b16 %v4224
    %v4322 = vunpack.c.h.b16 %v4224
    %v4323 = vunpack.c.l.b16 %v4225
    %v4324 = vunpack.c.h.b16 %v4225
    %v4325 = vunpack.c.l.b16 %v4226
    %v4326 = vunpack.c.h.b16 %v4226
    %v4327 = vunpack.c.l.b16 %v4227
    %v4328 = vunpack.c.h.b16 %v4227
    %v4329 = vunpack.c.l.b16 %v4228
    %v4330 = vunpack.c.h.b16 %v4228
    %v4331 = vunpack.c.l.b16 %v4229
    %v4332 = vunpack.c.h.b16 %v4229
    %v4333 = vunpack.c.l.b16 %v4230
    %v4334 = vunpack.c.h.b16 %v4230
    %v4335 = vunpack.c.l.b16 %v4231
    %v4336 = vunpack.c.h.b16 %v4231
    %v4337 = vunpack.c.l.b16 %v4232
    %v4338 = vunpack.c.h.b16 %v4232
    %v4339 = vunpack.c.l.b16 %v4233
    %v4340 = vunpack.c.h.b16 %v4233
    %v4341 = vunpack.c.l.b16 %v4234
    %v4342 = vunpack.c.h.b16 %v4234
    %v4343 = vunpack.c.l.b16 %v4235
    %v4344 = vunpack.c.h.b16 %v4235
    %v4345 = vunpack.c.l.b16 %v4236
    %v4346 = vunpack.c.h.b16 %v4236
    %v4347 = vunpack.c.l.b16 %v4237
    %v4348 = vunpack.c.h.b16 %v4237
    %v4349 = vunpack.c.l.b16 %v4238
    %v4350 = vunpack.c.h.b16 %v4238
    %v4351 = vunpack.c.l.b16 %v4239
    %v4352 = vunpack.c.h.b16 %v4239
    %v4353 = vunpack.c.l.b16 %v4240
    %v4354 = vunpack.c.h.b16 %v4240
    %v4355 = vunpack.c.l.b16 %v4241
    %v4356 = vunpack.c.h.b16 %v4241
    %v4357 = vunpack.c.l.b16 %v4242
    %v4358 = vunpack.c.h.b16 %v4242
    %v4359 = vunpack.c.l.b16 %v4243
    %v4360 = vunpack.c.h.b16 %v4243
    %v4361 = vunpack.c.l.b16 %v4244
    %v4362 = vunpack.c.h.b16 %v4244
    %v4363 = vunpack.c.l.b16 %v4245
    %v4364 = vunpack.c.h.b16 %v4245
    %v4365 = vpack.c.b16 %v4305, %v4301
    %v4366 = vpack.c.b16 %v4306, %v4302
    %v4367 = vpack.c.b16 %v4307, %v4303
    %v4368 = vpack.c.b16 %v4308, %v4304
    %v4369 = vpack.c.b16 %v4313, %v4309
    %v4370 = vpack.c.b16 %v4314, %v4310
    %v4371 = vpack.c.b16 %v4315, %v4311
    %v4372 = vpack.c.b16 %v4316, %v4312
    %v4373 = vpack.c.b16 %v4321, %v4317
    %v4374 = vpack.c.b16 %v4322, %v4318
    %v4375 = vpack.c.b16 %v4323, %v4319
    %v4376 = vpack.c.b16 %v4324, %v4320
    %v4377 = vpack.c.b16 %v4329, %v4325
    %v4378 = vpack.c.b16 %v4330, %v4326
    %v4379 = vpack.c.b16 %v4331, %v4327
    %v4380 = vpack.c.b16 %v4332, %v4328
    %v4381 = vpack.c.b16 %v4337, %v4333
    %v4382 = vpack.c.b16 %v4338, %v4334
    %v4383 = vpack.c.b16 %v4339, %v4335
    %v4384 = vpack.c.b16 %v4340, %v4336
    %v4385 = vpack.c.b16 %v4345, %v4341
    %v4386 = vpack.c.b16 %v4346, %v4342
    %v4387 = vpack.c.b16 %v4347, %v4343
    %v4388 = vpack.c.b16 %v4348, %v4344
    %v4389 = vpack.c.b16 %v4353, %v4349
    %v4390 = vpack.c.b16 %v4354, %v4350
    %v4391 = vpack.c.b16 %v4355, %v4351
    %v4392 = vpack.c.b16 %v4356, %v4352
    %v4393 = vpack.c.b16 %v4361, %v4357
    %v4394 = vpack.c.b16 %v4362, %v4358
    %v4395 = vpack.c.b16 %v4363, %v4359
    %v4396 = vpack.c.b16 %v4364, %v4360
    %4429 = vmatprep.subr.bf16.mxu0 %v4366
    %4430 = vmatpush1.bf16.msra.mxu0 %v4365
    %4431 = vmatprep.subr.bf16.mxu0 %v4370
    %4432 = vmatpush1.bf16.msra.mxu0 %v4369
    %4433 = vmatprep.subr.bf16.mxu0 %v4374
    %4434 = vmatpush1.bf16.msra.mxu0 %v4373
    %4435 = vmatprep.subr.bf16.mxu0 %v4378
    %4436 = vmatpush1.bf16.msra.mxu0 %v4377
    %4437 = vmatprep.subr.bf16.mxu0 %v4382
    %4438 = vmatpush1.bf16.msra.mxu0 %v4381
    %4439 = vmatprep.subr.bf16.mxu0 %v4386
    %4440 = vmatpush1.bf16.msra.mxu0 %v4385
    %4441 = vmatprep.subr.bf16.mxu0 %v4390
    %4442 = vmatpush1.bf16.msra.mxu0 %v4389
    %4443 = vmatprep.subr.bf16.mxu0 %v4394
    %4444 = vmatpush1.bf16.msra.mxu0 %v4393
    %4445 = vmatprep.subr.bf16.mxu0 0
    %4446 = vmatpush1.bf16.msra.mxu0 0
    %4447 = vmatprep.subr.bf16.mxu0 0
    %4448 = vmatpush1.bf16.msra.mxu0 0
    %4449 = vmatprep.subr.bf16.mxu0 0
    %4450 = vmatpush1.bf16.msra.mxu0 0
    %4451 = vmatprep.subr.bf16.mxu0 0
    %4452 = vmatpush1.bf16.msra.mxu0 0
    %4453 = vmatprep.subr.bf16.mxu0 0
    %4454 = vmatpush1.bf16.msra.mxu0 0
    %4455 = vmatprep.subr.bf16.mxu0 0
    %4456 = vmatpush1.bf16.msra.mxu0 0
    %4457 = vmatprep.subr.bf16.mxu0 0
    %4458 = vmatpush1.bf16.msra.mxu0 0
    %4459 = vmatprep.subr.bf16.mxu0 0
    %4460 = vmatpush1.bf16.msra.mxu0 0
    %4461 = vmatprep.mubr.bf16.mxu0 0
    %4462 = vmatmul.mubr.bf16.gmra.mrb[0].mxu0 %v4212
    %v4463 = vpop.f32.mrb[0].mxu0
    %v4464 = vadd.f32 %v4252, %v4463
    %v4465 = vpop.f32.mrb[0].mxu0
    %v4466 = vadd.f32 %v4256, %v4465
    %v4467 = vpop.f32.mrb[0].mxu0
    %v4468 = vadd.f32 %v4252, %v4467
    %v4469 = vpop.f32.mrb[0].mxu0
    %v4470 = vadd.f32 %v4256, %v4469
    %4471 = vdwg.mxu0
    %4472 = vmatprep.subr.bf16.mxu0 %v4368
    %4473 = vmatpush1.bf16.msra.mxu0 %v4367
    %4474 = vmatprep.subr.bf16.mxu0 %v4372
    %4475 = vmatpush1.bf16.msra.mxu0 %v4371
    %4476 = vmatprep.subr.bf16.mxu0 %v4376
    %4477 = vmatpush1.bf16.msra.mxu0 %v4375
    %4478 = vmatprep.subr.bf16.mxu0 %v4380
    %4479 = vmatpush1.bf16.msra.mxu0 %v4379
    %4480 = vmatprep.subr.bf16.mxu0 %v4384
    %4481 = vmatpush1.bf16.msra.mxu0 %v4383
    %4482 = vmatprep.subr.bf16.mxu0 %v4388
    %4483 = vmatpush1.bf16.msra.mxu0 %v4387
    %4484 = vmatprep.subr.bf16.mxu0 %v4392
    %4485 = vmatpush1.bf16.msra.mxu0 %v4391
    %4486 = vmatprep.subr.bf16.mxu0 %v4396
    %4487 = vmatpush1.bf16.msra.mxu0 %v4395
    %4488 = vmatprep.subr.bf16.mxu0 0
    %4489 = vmatpush1.bf16.msra.mxu0 0
    %4490 = vmatprep.subr.bf16.mxu0 0
    %4491 = vmatpush1.bf16.msra.mxu0 0
    %4492 = vmatprep.subr.bf16.mxu0 0
    %4493 = vmatpush1.bf16.msra.mxu0 0
    %4494 = vmatprep.subr.bf16.mxu0 0
    %4495 = vmatpush1.bf16.msra.mxu0 0
    %4496 = vmatprep.subr.bf16.mxu0 0
    %4497 = vmatpush1.bf16.msra.mxu0 0
    %4498 = vmatprep.subr.bf16.mxu0 0
    %4499 = vmatpush1.bf16.msra.mxu0 0
    %4500 = vmatprep.subr.bf16.mxu0 0
    %4501 = vmatpush1.bf16.msra.mxu0 0
    %4502 = vmatprep.subr.bf16.mxu0 0
    %4503 = vmatpush1.bf16.msra.mxu0 0
    %4504 = vmatprep.mubr.bf16.mxu0 0
    %4505 = vmatmul.mubr.bf16.gmra.mrb[0].mxu0 %v4212
    %v4506 = vpop.f32.mrb[0].mxu0
    %v4507 = vadd.f32 %v4260, %v4506
    %v4508 = vpop.f32.mrb[0].mxu0
    %v4509 = vadd.f32 %v4264, %v4508
    %v4510 = vpop.f32.mrb[0].mxu0
    %v4511 = vadd.f32 %v4260, %v4510
    %v4512 = vpop.f32.mrb[0].mxu0
    %v4513 = vadd.f32 %v4264, %v4512
    %4514 = vdwg.mxu0
    %v4515 = vmul.f32 %v4464, 0.5
    %v4516 = vmul.f32 %v4466, 0.5
    %v4517 = vmul.f32 %v4507, 0.5
    %v4518 = vmul.f32 %v4509, 0.5
    %v4519 = vmul.f32 %v4468, 0.5
    %v4520 = vmul.f32 %v4470, 0.5
    %v4521 = vmul.f32 %v4511, 0.5
    %v4522 = vmul.f32 %v4513, 0.5
    %v4523 = vmul.f32 %v4464, 0.70710677
    %v4524 = vmul.f32 %v4466, 0.70710677
    %v4525 = vmul.f32 %v4507, 0.70710677
    %v4526 = vmul.f32 %v4509, 0.70710677
    %v4527 = vmul.f32 %v4468, 0.70710677
    %v4528 = vmul.f32 %v4470, 0.70710677
    %v4529 = vmul.f32 %v4511, 0.70710677
    %v4530 = vmul.f32 %v4513, 0.70710677
    %v4531 = verf.f32.pop %v4523
    %v4532 = verf.f32.pop %v4524
    %v4533 = verf.f32.pop %v4525
    %v4534 = verf.f32.pop %v4526
    %v4535 = verf.f32.pop %v4527
    %v4536 = verf.f32.pop %v4528
    %v4537 = verf.f32.pop %v4529
    %v4538 = verf.f32.pop %v4530
    %v4539 = vadd.f32 %v4531, 1.0
    %v4540 = vadd.f32 %v4532, 1.0
    %v4541 = vadd.f32 %v4533, 1.0
    %v4542 = vadd.f32 %v4534, 1.0
    %v4543 = vadd.f32 %v4535, 1.0
    %v4544 = vadd.f32 %v4536, 1.0
    %v4545 = vadd.f32 %v4537, 1.0
    %v4546 = vadd.f32 %v4538, 1.0
    %v4547 = vmul.f32 %v4515, %v4539
    %v4548 = vmul.f32 %v4516, %v4540
    %v4549 = vmul.f32 %v4517, %v4541
    %v4550 = vmul.f32 %v4518, %v4542
    %v4551 = vmul.f32 %v4519, %v4543
    %v4552 = vmul.f32 %v4520, %v4544
    %v4553 = vmul.f32 %v4521, %v4545
    %v4554 = vmul.f32 %v4522, %v4546
    %v4555 = vpack.c.bf16 %v4551, %v4547
    %v4556 = vpack.c.bf16 %v4552, %v4548
    %v4557 = vpack.c.bf16 %v4553, %v4549
    %v4558 = vpack.c.bf16 %v4554, %v4550
    %s4559 = scalar_lea.vmem %s15, 256
    %v4560 = vld [vmem:[%s4559] sm:$0xf]
    %v4561 = vld [vmem:[%s4559 + $0x4] sm:$0xf]
    %v4562 = vld [vmem:[%s4559 + $0x8] sm:$0xf]
    %v4563 = vld [vmem:[%s4559 + $0xc] sm:$0xf]
    %v4564 = vld [vmem:[%s4559 + $0x10] sm:$0xf]
    %v4565 = vld [vmem:[%s4559 + $0x14] sm:$0xf]
    %v4566 = vld [vmem:[%s4559 + $0x18] sm:$0xf]
    %v4567 = vld [vmem:[%s4559 + $0x1c] sm:$0xf]
    %v4568 = vld [vmem:[%s4559 + $0x20] sm:$0xf]
    %v4569 = vld [vmem:[%s4559 + $0x24] sm:$0xf]
    %v4570 = vld [vmem:[%s4559 + $0x28] sm:$0xf]
    %v4571 = vld [vmem:[%s4559 + $0x2c] sm:$0xf]
    %v4572 = vld [vmem:[%s4559 + $0x30] sm:$0xf]
    %v4573 = vld [vmem:[%s4559 + $0x34] sm:$0xf]
    %v4574 = vld [vmem:[%s4559 + $0x38] sm:$0xf]
    %v4575 = vld [vmem:[%s4559 + $0x3c] sm:$0xf]
    %v4576 = vld [vmem:[%s4559 + $0x40] sm:$0xf]
    %v4577 = vld [vmem:[%s4559 + $0x44] sm:$0xf]
    %v4578 = vld [vmem:[%s4559 + $0x48] sm:$0xf]
    %v4579 = vld [vmem:[%s4559 + $0x4c] sm:$0xf]
    %v4580 = vld [vmem:[%s4559 + $0x50] sm:$0xf]
    %v4581 = vld [vmem:[%s4559 + $0x54] sm:$0xf]
    %v4582 = vld [vmem:[%s4559 + $0x58] sm:$0xf]
    %v4583 = vld [vmem:[%s4559 + $0x5c] sm:$0xf]
    %v4584 = vld [vmem:[%s4559 + $0x60] sm:$0xf]
    %v4585 = vld [vmem:[%s4559 + $0x64] sm:$0xf]
    %v4586 = vld [vmem:[%s4559 + $0x68] sm:$0xf]
    %v4587 = vld [vmem:[%s4559 + $0x6c] sm:$0xf]
    %v4588 = vld [vmem:[%s4559 + $0x70] sm:$0xf]
    %v4589 = vld [vmem:[%s4559 + $0x74] sm:$0xf]
    %v4590 = vld [vmem:[%s4559 + $0x78] sm:$0xf]
    %v4591 = vld [vmem:[%s4559 + $0x7c] sm:$0xf]
    %v4592 = vld [vmem:[%s4559 + $0x80] sm:$0xf]
    %v4593 = vld [vmem:[%s4559 + $0x84] sm:$0xf]
    %v4594 = vld [vmem:[%s4559 + $0x88] sm:$0xf]
    %v4595 = vld [vmem:[%s4559 + $0x8c] sm:$0xf]
    %v4596 = vld [vmem:[%s4559 + $0x90] sm:$0xf]
    %v4597 = vld [vmem:[%s4559 + $0x94] sm:$0xf]
    %v4598 = vld [vmem:[%s4559 + $0x98] sm:$0xf]
    %v4599 = vld [vmem:[%s4559 + $0x9c] sm:$0xf]
    %v4600 = vld [vmem:[%s4559 + $0xa0] sm:$0xf]
    %v4601 = vld [vmem:[%s4559 + $0xa4] sm:$0xf]
    %v4602 = vld [vmem:[%s4559 + $0xa8] sm:$0xf]
    %v4603 = vld [vmem:[%s4559 + $0xac] sm:$0xf]
    %v4604 = vld [vmem:[%s4559 + $0xb0] sm:$0xf]
    %v4605 = vld [vmem:[%s4559 + $0xb4] sm:$0xf]
    %v4606 = vld [vmem:[%s4559 + $0xb8] sm:$0xf]
    %v4607 = vld [vmem:[%s4559 + $0xbc] sm:$0xf]
    %v4608 = vld [vmem:[%s4559 + $0xc0] sm:$0xf]
    %v4609 = vld [vmem:[%s4559 + $0xc4] sm:$0xf]
    %v4610 = vld [vmem:[%s4559 + $0xc8] sm:$0xf]
    %v4611 = vld [vmem:[%s4559 + $0xcc] sm:$0xf]
    %v4612 = vld [vmem:[%s4559 + $0xd0] sm:$0xf]
    %v4613 = vld [vmem:[%s4559 + $0xd4] sm:$0xf]
    %v4614 = vld [vmem:[%s4559 + $0xd8] sm:$0xf]
    %v4615 = vld [vmem:[%s4559 + $0xdc] sm:$0xf]
    %v4616 = vld [vmem:[%s4559 + $0xe0] sm:$0xf]
    %v4617 = vld [vmem:[%s4559 + $0xe4] sm:$0xf]
    %v4618 = vld [vmem:[%s4559 + $0xe8] sm:$0xf]
    %v4619 = vld [vmem:[%s4559 + $0xec] sm:$0xf]
    %v4620 = vld [vmem:[%s4559 + $0xf0] sm:$0xf]
    %v4621 = vld [vmem:[%s4559 + $0xf4] sm:$0xf]
    %v4622 = vld [vmem:[%s4559 + $0xf8] sm:$0xf]
    %v4623 = vld [vmem:[%s4559 + $0xfc] sm:$0xf]
    %s4624 = scalar_lea.vmem [#allocation17], 1
    %v4625 = vld [vmem:[%s4624] sm:$0x1]
    %v4627 = vlaneseq
    %v4628 = vshrl.u32 %v4627, 7
    %v4629 = vsub.s32 0, %v4628
    %v4630 = vrot.slane %v4625, %v4629
    %v4696 = vunpack.c.l.b16 %v4560
    %v4697 = vunpack.c.l.b16 %v4561
    %v4698 = vunpack.c.l.b16 %v4562
    %v4699 = vunpack.c.l.b16 %v4563
    %v4700 = vunpack.c.l.b16 %v4564
    %v4701 = vunpack.c.l.b16 %v4565
    %v4702 = vunpack.c.l.b16 %v4566
    %v4703 = vunpack.c.l.b16 %v4567
    %v4704 = vunpack.c.l.b16 %v4568
    %v4705 = vunpack.c.l.b16 %v4569
    %v4706 = vunpack.c.l.b16 %v4570
    %v4707 = vunpack.c.l.b16 %v4571
    %v4708 = vunpack.c.l.b16 %v4572
    %v4709 = vunpack.c.l.b16 %v4573
    %v4710 = vunpack.c.l.b16 %v4574
    %v4711 = vunpack.c.l.b16 %v4575
    %v4712 = vunpack.c.l.b16 %v4576
    %v4713 = vunpack.c.l.b16 %v4577
    %v4714 = vunpack.c.l.b16 %v4578
    %v4715 = vunpack.c.l.b16 %v4579
    %v4716 = vunpack.c.l.b16 %v4580
    %v4717 = vunpack.c.l.b16 %v4581
    %v4718 = vunpack.c.l.b16 %v4582
    %v4719 = vunpack.c.l.b16 %v4583
    %v4720 = vunpack.c.l.b16 %v4584
    %v4721 = vunpack.c.l.b16 %v4585
    %v4722 = vunpack.c.l.b16 %v4586
    %v4723 = vunpack.c.l.b16 %v4587
    %v4724 = vunpack.c.l.b16 %v4588
    %v4725 = vunpack.c.l.b16 %v4589
    %v4726 = vunpack.c.l.b16 %v4590
    %v4727 = vunpack.c.l.b16 %v4591
    %v4728 = vunpack.c.l.b16 %v4592
    %v4729 = vunpack.c.l.b16 %v4593
    %v4730 = vunpack.c.l.b16 %v4594
    %v4731 = vunpack.c.l.b16 %v4595
    %v4732 = vunpack.c.l.b16 %v4596
    %v4733 = vunpack.c.l.b16 %v4597
    %v4734 = vunpack.c.l.b16 %v4598
    %v4735 = vunpack.c.l.b16 %v4599
    %v4736 = vunpack.c.l.b16 %v4600
    %v4737 = vunpack.c.l.b16 %v4601
    %v4738 = vunpack.c.l.b16 %v4602
    %v4739 = vunpack.c.l.b16 %v4603
    %v4740 = vunpack.c.l.b16 %v4604
    %v4741 = vunpack.c.l.b16 %v4605
    %v4742 = vunpack.c.l.b16 %v4606
    %v4743 = vunpack.c.l.b16 %v4607
    %v4744 = vunpack.c.l.b16 %v4608
    %v4745 = vunpack.c.l.b16 %v4609
    %v4746 = vunpack.c.l.b16 %v4610
    %v4747 = vunpack.c.l.b16 %v4611
    %v4748 = vunpack.c.l.b16 %v4612
    %v4749 = vunpack.c.l.b16 %v4613
    %v4750 = vunpack.c.l.b16 %v4614
    %v4751 = vunpack.c.l.b16 %v4615
    %v4752 = vunpack.c.l.b16 %v4616
    %v4753 = vunpack.c.l.b16 %v4617
    %v4754 = vunpack.c.l.b16 %v4618
    %v4755 = vunpack.c.l.b16 %v4619
    %v4756 = vunpack.c.l.b16 %v4620
    %v4757 = vunpack.c.l.b16 %v4621
    %v4758 = vunpack.c.l.b16 %v4622
    %v4759 = vunpack.c.l.b16 %v4623
    %v4760 = vpack.c.b16 %v4697, %v4696
    %v4761 = vpack.c.b16 %v4699, %v4698
    %v4762 = vpack.c.b16 %v4701, %v4700
    %v4763 = vpack.c.b16 %v4703, %v4702
    %v4764 = vpack.c.b16 %v4705, %v4704
    %v4765 = vpack.c.b16 %v4707, %v4706
    %v4766 = vpack.c.b16 %v4709, %v4708
    %v4767 = vpack.c.b16 %v4711, %v4710
    %v4768 = vpack.c.b16 %v4713, %v4712
    %v4769 = vpack.c.b16 %v4715, %v4714
    %v4770 = vpack.c.b16 %v4717, %v4716
    %v4771 = vpack.c.b16 %v4719, %v4718
    %v4772 = vpack.c.b16 %v4721, %v4720
    %v4773 = vpack.c.b16 %v4723, %v4722
    %v4774 = vpack.c.b16 %v4725, %v4724
    %v4775 = vpack.c.b16 %v4727, %v4726
    %v4776 = vpack.c.b16 %v4729, %v4728
    %v4777 = vpack.c.b16 %v4731, %v4730
    %v4778 = vpack.c.b16 %v4733, %v4732
    %v4779 = vpack.c.b16 %v4735, %v4734
    %v4780 = vpack.c.b16 %v4737, %v4736
    %v4781 = vpack.c.b16 %v4739, %v4738
    %v4782 = vpack.c.b16 %v4741, %v4740
    %v4783 = vpack.c.b16 %v4743, %v4742
    %v4784 = vpack.c.b16 %v4745, %v4744
    %v4785 = vpack.c.b16 %v4747, %v4746
    %v4786 = vpack.c.b16 %v4749, %v4748
    %v4787 = vpack.c.b16 %v4751, %v4750
    %v4788 = vpack.c.b16 %v4753, %v4752
    %v4789 = vpack.c.b16 %v4755, %v4754
    %v4790 = vpack.c.b16 %v4757, %v4756
    %v4791 = vpack.c.b16 %v4759, %v4758
    %4824 = vmatprep.subr.bf16.mxu0 0
    %4825 = vmatpush1.bf16.msra.mxu0 %v4760
    %4826 = vmatprep.subr.bf16.mxu0 0
    %4827 = vmatpush1.bf16.msra.mxu0 %v4761
    %4828 = vmatprep.subr.bf16.mxu0 0
    %4829 = vmatpush1.bf16.msra.mxu0 %v4762
    %4830 = vmatprep.subr.bf16.mxu0 0
    %4831 = vmatpush1.bf16.msra.mxu0 %v4763
    %4832 = vmatprep.subr.bf16.mxu0 0
    %4833 = vmatpush1.bf16.msra.mxu0 %v4764
    %4834 = vmatprep.subr.bf16.mxu0 0
    %4835 = vmatpush1.bf16.msra.mxu0 %v4765
    %4836 = vmatprep.subr.bf16.mxu0 0
    %4837 = vmatpush1.bf16.msra.mxu0 %v4766
    %4838 = vmatprep.subr.bf16.mxu0 0
    %4839 = vmatpush1.bf16.msra.mxu0 %v4767
    %4840 = vmatprep.subr.bf16.mxu0 0
    %4841 = vmatpush1.bf16.msra.mxu0 %v4768
    %4842 = vmatprep.subr.bf16.mxu0 0
    %4843 = vmatpush1.bf16.msra.mxu0 %v4769
    %4844 = vmatprep.subr.bf16.mxu0 0
    %4845 = vmatpush1.bf16.msra.mxu0 %v4770
    %4846 = vmatprep.subr.bf16.mxu0 0
    %4847 = vmatpush1.bf16.msra.mxu0 %v4771
    %4848 = vmatprep.subr.bf16.mxu0 0
    %4849 = vmatpush1.bf16.msra.mxu0 %v4772
    %4850 = vmatprep.subr.bf16.mxu0 0
    %4851 = vmatpush1.bf16.msra.mxu0 %v4773
    %4852 = vmatprep.subr.bf16.mxu0 0
    %4853 = vmatpush1.bf16.msra.mxu0 %v4774
    %4854 = vmatprep.subr.bf16.mxu0 0
    %4855 = vmatpush1.bf16.msra.mxu0 %v4775
    %4856 = vmatprep.mubr.bf16.mxu0 %v4556
    %4857 = vmatmul.mubr.bf16.gmra.mrb[0].mxu0 %v4555
    %v4858 = vpop.f32.mrb[0].mxu0
    %v4859 = vadd.f32 %v4630, %v4858
    %v4860 = vpop.f32.mrb[0].mxu0
    %v4861 = vpop.f32.mrb[0].mxu0
    %v4862 = vadd.f32 %v4630, %v4861
    %v4863 = vpop.f32.mrb[0].mxu0
    %4864 = vdwg.mxu0
    %4865 = vmatprep.subr.bf16.mxu0 0
    %4866 = vmatpush1.bf16.msra.mxu0 %v4776
    %4867 = vmatprep.subr.bf16.mxu0 0
    %4868 = vmatpush1.bf16.msra.mxu0 %v4777
    %4869 = vmatprep.subr.bf16.mxu0 0
    %4870 = vmatpush1.bf16.msra.mxu0 %v4778
    %4871 = vmatprep.subr.bf16.mxu0 0
    %4872 = vmatpush1.bf16.msra.mxu0 %v4779
    %4873 = vmatprep.subr.bf16.mxu0 0
    %4874 = vmatpush1.bf16.msra.mxu0 %v4780
    %4875 = vmatprep.subr.bf16.mxu0 0
    %4876 = vmatpush1.bf16.msra.mxu0 %v4781
    %4877 = vmatprep.subr.bf16.mxu0 0
    %4878 = vmatpush1.bf16.msra.mxu0 %v4782
    %4879 = vmatprep.subr.bf16.mxu0 0
    %4880 = vmatpush1.bf16.msra.mxu0 %v4783
    %4881 = vmatprep.subr.bf16.mxu0 0
    %4882 = vmatpush1.bf16.msra.mxu0 %v4784
    %4883 = vmatprep.subr.bf16.mxu0 0
    %4884 = vmatpush1.bf16.msra.mxu0 %v4785
    %4885 = vmatprep.subr.bf16.mxu0 0
    %4886 = vmatpush1.bf16.msra.mxu0 %v4786
    %4887 = vmatprep.subr.bf16.mxu0 0
    %4888 = vmatpush1.bf16.msra.mxu0 %v4787
    %4889 = vmatprep.subr.bf16.mxu0 0
    %4890 = vmatpush1.bf16.msra.mxu0 %v4788
    %4891 = vmatprep.subr.bf16.mxu0 0
    %4892 = vmatpush1.bf16.msra.mxu0 %v4789
    %4893 = vmatprep.subr.bf16.mxu0 0
    %4894 = vmatpush1.bf16.msra.mxu0 %v4790
    %4895 = vmatprep.subr.bf16.mxu0 0
    %4896 = vmatpush1.bf16.msra.mxu0 %v4791
    %4897 = vmatprep.mubr.bf16.mxu0 %v4558
    %4898 = vmatmul.mubr.bf16.gmra.mrb[0].mxu0 %v4557
    %v4899 = vpop.f32.mrb[0].mxu0
    %v4900 = vadd.f32 %v4859, %v4899
    %v4901 = vpop.f32.mrb[0].mxu0
    %v4902 = vpop.f32.mrb[0].mxu0
    %v4903 = vadd.f32 %v4862, %v4902
    %v4904 = vpop.f32.mrb[0].mxu0
    %4905 = vdwg.mxu0
    %v4906 = vadd.f32 %v4168, %v4900
    %v4907 = vadd.f32 %v4169, %v4903
    %v4908 = vld [vmem:[%s17] sm:$0x1]
    %v4909 = vld [vmem:[%s18] sm:$0x1]
    %4910 = vadd.xlane.f32.xlu0 %v4906
    %v4911 = vpop.xlane.xlu0 %4910
    %4912 = vadd.xlane.f32.xlu0 %v4907
    %v4913 = vpop.xlane.xlu0 %4912
    %v4914 = vmul.f32 %v4911, %v737
    %v4915 = vmul.f32 %v4913, %v737
    %v4916 = vsub.f32 %v4906, %v4914
    %v4917 = vsub.f32 %v4907, %v4915
    %v4918 = vmul.f32 %v4916, %v4916
    %v4919 = vmul.f32 %v4917, %v4917
    %4920 = vadd.xlane.f32.xlu0 %v4918
    %v4921 = vpop.xlane.xlu0 %4920
    %4922 = vadd.xlane.f32.xlu0 %v4919
    %v4923 = vpop.xlane.xlu0 %4922
    %v4924 = vmul.f32 %v4921, %v737
    %v4925 = vmul.f32 %v4923, %v737
    %v4926 = vadd.f32 %v4924, 1e-06
    %v4927 = vadd.f32 %v4925, 1e-06
    %v4928 = vrsqrt.pop %v4926
    %v4929 = vrsqrt.pop %v4927
    %v4930 = vmul.f32 %v4916, %v4928
    %v4931 = vmul.f32 %v4917, %v4929
    %v4933 = vlaneseq
    %v4934 = vshrl.u32 %v4933, 7
    %v4935 = vsub.s32 0, %v4934
    %v4936 = vrot.slane %v4908, %v4935
    %v4938 = vmul.f32 %v4930, %v4936
    %v4939 = vmul.f32 %v4931, %v4936
    %v4941 = vlaneseq
    %v4942 = vshrl.u32 %v4941, 7
    %v4943 = vsub.s32 0, %v4942
    %v4944 = vrot.slane %v4909, %v4943
    %v4946 = vadd.f32 %v4938, %v4944
    %v4947 = vadd.f32 %v4939, %v4944
    %4948 = vst [vmem:[%s19] sm:$0xff] %v4946
    %4949 = vst [vmem:[%s19 + $0x8] sm:$0xff] %v4947
    // Predicated region
    $region114: #{blip_image_model.1} parent=1 // pred_check
      _
    $region115: #{blip_image_model.1} parent=1 // pred_check_branch
      %4951 = sbr.rel (0) target = $region117
    $region116: #{blip_image_model.1} parent=1 // pred_region
      _
    $region117: #{blip_image_model.1} parent=1 // pred_fallthru
      _
    // Predicated region
    $region118: #{blip_image_model.1} parent=1 // pred_check
      _
    $region119: #{blip_image_model.1} parent=1 // pred_check_branch
      %4953 = sbr.rel (0) target = $region121
    $region120: #{blip_image_model.1} parent=1 // pred_region
      _
    $region121: #{blip_image_model.1} parent=1 // pred_fallthru
      _
    %4954 = vsyncpa [#allocation5], 1
    %4955 = vsyncpa [#allocation7], 1
    %4956 = vsyncpa [#allocation10], 1
    %4957 = vsyncpa [#allocation13], 1
    %4958 = vsyncpa [#allocation16], 1

</llo_original>
